<compile_context>
chip_gen: v7x
topology: tpu7x:2x2x1
jax: 0.10.0
libtpu: 0.0.40
codegen_flags: <defaults>
</compile_context>

<pallas_src>
import functools

import numpy as np
import jax
import jax.numpy as jnp
from jax import lax
from jax.experimental import pallas as pl
from jax.experimental.pallas import tpu as pltpu


H_IN = W_IN = 16   # input spatial size implied by the 32*4*4 regressor input
C_IN = 1           # module is built for 1-channel (MNIST-style) inputs


# -----------------------------------------------------------------------------
# One-time parameter preprocessing (host side): fold each 7x7/stride-2 conv
# (kernel taps + static im2col selection) into a dense matmul weight.
# Pure weight/layout plumbing -- no input data involved.
# -----------------------------------------------------------------------------
def _conv7s2_as_matmul(w, b, h_in, w_in, out_layout):
    """w: (7,7,cin,cout) [= torch OIHW transposed to HWIO], b: (cout,).
    Returns (W_eff, b_eff), W_eff: (h_in*w_in*cin, ho*wo*cout).
      input-row order : (iy, ix, ci)                       (HWC)
      output-col order: 'hwc' -> (oy, ox, co) ; 'chw' -> (co, oy, ox) (= torch flatten)
    """
    k = int(w.shape[0])
    cin, cout = int(w.shape[2]), int(w.shape[3])
    pad, stride = (k - 1) // 2, 2
    ho, wo = h_in // stride, w_in // stride
    wnp = np.asarray(w, np.float32)
    W = np.zeros((h_in * w_in * cin, ho * wo * cout), np.float32)
    for oy in range(ho):
        for ox in range(wo):
            for dy in range(k):
                iy = stride * oy + dy - pad
                if iy < 0 or iy >= h_in:
                    continue
                for dx in range(k):
                    ix = stride * ox + dx - pad
                    if ix < 0 or ix >= w_in:
                        continue
                    r0 = (iy * w_in + ix) * cin
                    if out_layout == "hwc":
                        c0 = (oy * wo + ox) * cout
                        W[r0:r0 + cin, c0:c0 + cout] = wnp[dy, dx]
                    else:  # "chw"
                        p = oy * wo + ox
                        W[r0:r0 + cin, p::ho * wo] = wnp[dy, dx]
    bnp = np.asarray(b, np.float32).reshape(cout)
    b_eff = np.tile(bnp, ho * wo) if out_layout == "hwc" else np.repeat(bnp, ho * wo)
    return W, b_eff.reshape(1, -1)


def prepare_params(params):
    """Build effective (conv-as-matmul) weights once, outside the jitted forward."""
    w1e, b1e = _conv7s2_as_matmul(params["conv1_w"], params["conv1_b"], H_IN, W_IN, "hwc")
    w2e, b2e = _conv7s2_as_matmul(params["conv2_w"], params["conv2_b"],
                                  H_IN // 2, W_IN // 2, "chw")
    # Last linear layer padded 6 -> 8 output lanes (zero-filled extra columns).
    w4 = np.zeros((64, 8), np.float32)
    w4[:, :6] = np.asarray(params["fc2_w"], np.float32)
    b4 = np.zeros((1, 8), np.float32)
    b4[0, :6] = np.asarray(params["fc2_b"], np.float32).reshape(-1)
    return {
        "w1e": jnp.asarray(w1e, jnp.bfloat16), "b1e": jnp.asarray(b1e, jnp.float32),
        "w2e": jnp.asarray(w2e, jnp.bfloat16), "b2e": jnp.asarray(b2e, jnp.float32),
        "w3": jnp.asarray(params["fc1_w"], jnp.bfloat16),
        "b3": jnp.asarray(params["fc1_b"], jnp.float32).reshape(1, -1),
        "w4": jnp.asarray(w4, jnp.float32), "b4": jnp.asarray(b4, jnp.float32),
    }


# -----------------------------------------------------------------------------
# The single fused kernel.
# -----------------------------------------------------------------------------
def _fused_stn_kernel(xflat_ref, ximgT_ref, w1_ref, b1_ref, w2_ref, b2_ref,
                      w3_ref, b3_ref, w4_ref, b4_ref, o_ref, theta_ref,
                      *, n, h, w):
    f32 = jnp.float32

    # ---- localization net: 2 folded-conv matmuls + 2-layer regressor (bf16 MXU, f32 acc)
    x = xflat_ref[...]                                                     # (n, h*w) f32
    a1 = jnp.dot(x.astype(w1_ref.dtype), w1_ref[...],
                 preferred_element_type=f32) + b1_ref[...]
    a1 = jnp.maximum(a1, 0.0)                                              # (n, 1024)  conv1+ReLU, (oy,ox,co)
    a2 = jnp.dot(a1.astype(w2_ref.dtype), w2_ref[...],
                 preferred_element_type=f32) + b2_ref[...]
    a2 = jnp.maximum(a2, 0.0)                                              # (n, 512)   conv2+ReLU, (co,oy,ox) = torch flatten
    h1 = jnp.dot(a2.astype(w3_ref.dtype), w3_ref[...],
                 preferred_element_type=f32) + b3_ref[...]
    h1 = jnp.maximum(h1, 0.0)                                              # (n, 64)
    theta = jnp.dot(h1, w4_ref[...], preferred_element_type=f32) + b4_ref[...]   # (n, 8), cols 0..5 used
    theta_ref[...] = theta

    # ---- F.affine_grid + F.grid_sample (bilinear, 'zeros', align_corners=False),
    #      factored per bilinear corner: row-gather matmul + weighted column
    #      one-hot + sublane reduce.  Output pixels live on the 128-lane axis.
    hw = h * w
    oo = lax.broadcasted_iota(jnp.int32, (1, hw), 1).astype(f32)           # output flat pixel index
    oi = jnp.floor(oo * (1.0 / w))                                         # output row
    oj = oo - oi * w                                                       # output col
    xbase = (2.0 * oj + 1.0) * (1.0 / w) - 1.0                             # affine_grid, align_corners=False
    ybase = (2.0 * oi + 1.0) * (1.0 / h) - 1.0
    riota = lax.broadcasted_iota(jnp.int32, (h, hw), 0)                    # candidate source row
    qiota = lax.broadcasted_iota(jnp.int32, (w, hw), 0)                    # candidate source col

    for b in range(n):                                                     # tiny static batch, unrolled
        t = theta[b:b + 1, :]
        gx = t[:, 0:1] * xbase + t[:, 1:2] * ybase + t[:, 2:3]
        gy = t[:, 3:4] * xbase + t[:, 4:5] * ybase + t[:, 5:6]
        ix = (gx + 1.0) * (0.5 * w) - 0.5                                  # unnormalize, align_corners=False
        iy = (gy + 1.0) * (0.5 * h) - 0.5
        ix0f = jnp.floor(ix)
        iy0f = jnp.floor(iy)
        wx1 = ix - ix0f
        wy1 = iy - iy0f
        ix0 = jnp.clip(ix0f, -2.0, float(w) + 1.0).astype(jnp.int32)       # clip only guards the int cast
        iy0 = jnp.clip(iy0f, -2.0, float(h) + 1.0).astype(jnp.int32)
        xT = ximgT_ref[b * w:(b + 1) * w, :]                               # (w, h): xT[q, r] = x[b, 0, r, q]
        out_row = jnp.zeros((1, hw), f32)
        for cy in (0, 1):
            for cx in (0, 1):
                xi = ix0 + cx
                yi = iy0 + cy
                wgt = (wx1 if cx else 1.0 - wx1) * (wy1 if cy else 1.0 - wy1)
                valid = (xi >= 0) & (xi < w) & (yi >= 0) & (yi < h)
                wgt = jnp.where(valid, wgt, 0.0)                           # 'zeros' padding mode
                rowsel = (riota == yi).astype(f32)                         # (h, hw) one-hot over source row
                gath = jnp.dot(xT, rowsel, preferred_element_type=f32)     # (w, hw): x[b,0,yi(p),q]
                colw = jnp.where(qiota == xi, wgt, 0.0)                    # (w, hw) weighted one-hot over source col
                out_row = out_row + jnp.sum(gath * colw, axis=0, keepdims=True)
        o_ref[b:b + 1, :] = out_row                                        # lane-dense (1, 256) store


# -----------------------------------------------------------------------------
# Public wrappers.
# -----------------------------------------------------------------------------
def stn_forward(x_nchw, eff):
    """Full fused forward.  Returns (cropped sampled image, theta)."""
    n, c, h, w = x_nchw.shape
    assert c == C_IN and h == H_IN and w == W_IN
    x_flat = x_nchw.reshape(n, c * h * w)                                  # conv-matmul view (c == 1)
    x_imgT = jnp.transpose(x_nchw[:, 0], (0, 2, 1)).reshape(n * w, h)      # per-batch transposed image (layout plumbing)
    sampled2d, theta = pl.pallas_call(
        functools.partial(_fused_stn_kernel, n=n, h=h, w=w),
        out_shape=(jax.ShapeDtypeStruct((n, h * w), jnp.float32),
                   jax.ShapeDtypeStruct((n, 8), jnp.float32)),
        in_specs=[pl.BlockSpec(memory_space=pltpu.MemorySpace.VMEM)] * 10,
        out_specs=(pl.BlockSpec(memory_space=pltpu.MemorySpace.VMEM),
                   pl.BlockSpec(memory_space=pltpu.MemorySpace.VMEM)),
    )(x_flat, x_imgT, eff["w1e"], eff["b1e"], eff["w2e"], eff["b2e"],
      eff["w3"], eff["b3"], eff["w4"], eff["b4"])
    out = sampled2d.reshape(n, c, h, w)[:, :, 0:24, 0:24]                  # slice clamps, same as torch
    return out, theta[:, :6]


def net_spatial_transformer(x_nchw, eff):
    """Matches NetSpatialTransformer.forward (eval mode)."""
    return stn_forward(x_nchw, eff)[0]


# -----------------------------------------------------------------------------
# Plain-JAX references (validation only).
# -----------------------------------------------------------------------------
def _ref_localization(x_nchw, params):
    w1 = jnp.transpose(params["conv1_w"], (3, 2, 0, 1))                    # HWIO -> OIHW
    w2 = jnp.transpose(params["conv2_w"], (3, 2, 0, 1))
    y = lax.conv_general_dilated(x_nchw, w1, (2, 2), ((3, 3), (3, 3)),
                                 dimension_numbers=("NCHW", "OIHW", "NCHW"))
    y = jnp.maximum(y + params["conv1_b"].reshape(1, -1, 1, 1), 0.0)
    y = lax.conv_general_dilated(y, w2, (2, 2), ((3, 3), (3, 3)),
                                 dimension_numbers=("NCHW", "OIHW", "NCHW"))
    y = jnp.maximum(y + params["conv2_b"].reshape(1, -1, 1, 1), 0.0)
    feats = y.reshape(y.shape[0], -1)
    h1 = jnp.maximum(feats @ params["fc1_w"] + params["fc1_b"].reshape(1, -1), 0.0)
    return h1 @ params["fc2_w"] + params["fc2_b"].reshape(1, -1)


def _ref_affine_grid_sample(x_nchw, theta6):
    """affine_grid + grid_sample (bilinear, zeros, align_corners=False); theta6: (n, 6)."""
    n, c, h, w = x_nchw.shape
    ii, jj = jnp.meshgrid(jnp.arange(h, dtype=jnp.float32),
                          jnp.arange(w, dtype=jnp.float32), indexing="ij")
    xb = ((2.0 * jj + 1.0) / w - 1.0).reshape(1, h * w)
    yb = ((2.0 * ii + 1.0) / h - 1.0).reshape(1, h * w)
    gx = theta6[:, 0:1] * xb + theta6[:, 1:2] * yb + theta6[:, 2:3]
    gy = theta6[:, 3:4] * xb + theta6[:, 4:5] * yb + theta6[:, 5:6]
    ix = (gx + 1.0) * (0.5 * w) - 0.5
    iy = (gy + 1.0) * (0.5 * h) - 0.5
    ix0 = jnp.floor(ix)
    iy0 = jnp.floor(iy)
    xf = x_nchw.reshape(n, c, h * w)
    out = jnp.zeros((n, c, h * w), jnp.float32)
    for cy in (0, 1):
        for cx in (0, 1):
            xi = ix0 + cx
            yi = iy0 + cy
            wgt = ((ix - ix0) if cx else (1.0 - (ix - ix0))) * \
                  ((iy - iy0) if cy else (1.0 - (iy - iy0)))
            valid = (xi >= 0) & (xi <= w - 1) & (yi >= 0) & (yi <= h - 1)
            wgt = jnp.where(valid, wgt, 0.0)
            idx = (jnp.clip(yi, 0, h - 1) * w + jnp.clip(xi, 0, w - 1)).astype(jnp.int32)
            out = out + wgt[:, None, :] * jnp.take_along_axis(xf, idx[:, None, :], axis=2)
    return out.reshape(n, c, h, w)


if __name__ == "__main__":
    key = jax.random.PRNGKey(0)
    kx, k1, k2, k3, k4, k5, k6, k7 = jax.random.split(key, 8)
    n = 2
    x = jax.random.normal(kx, (n, C_IN, H_IN, W_IN), jnp.float32)
    feat_dim = 32 * (H_IN // 4) * (W_IN // 4)          # 512

    # Weight layouts: conv (k,k,cin,cout) (= torch OIHW transposed), linear (in,out) (= torch weight.T).
    params = {
        "conv1_w": 0.10 * jax.random.normal(k1, (7, 7, 1, 16), jnp.float32),
        "conv1_b": 0.10 * jax.random.normal(k2, (16,), jnp.float32),
        "conv2_w": 0.05 * jax.random.normal(k3, (7, 7, 16, 32), jnp.float32),
        "conv2_b": 0.10 * jax.random.normal(k4, (32,), jnp.float32),
        "fc1_w": 0.05 * jax.random.normal(k5, (feat_dim, 64), jnp.float32),
        "fc1_b": 0.10 * jax.random.normal(k6, (64,), jnp.float32),
        # Module __init__: last layer zero weights, identity-affine bias.
        "fc2_w": jnp.zeros((64, 6), jnp.float32),
        "fc2_b": jnp.array([1.0, 0.0, 0.0, 0.0, 1.0, 0.0], jnp.float32),
    }

    fwd = jax.jit(stn_forward)

    # Check 1: as-initialized module (zero fc2 weight -> identity theta) must
    # reproduce the input exactly through affine_grid + grid_sample.
    eff = prepare_params(params)
    out, theta = fwd(x, eff)
    jax.block_until_ready(out)
    expected = x[:, :, 0:24, 0:24]
    assert out.shape == expected.shape, (out.shape, expected.shape)
    assert bool(jnp.allclose(theta, jnp.array([[1, 0, 0, 0, 1, 0]], jnp.float32), atol=1e-6))
    assert bool(jnp.allclose(out, expected, atol=1e-4)), "identity grid_sample mismatch"

    # Check 2: non-trivial theta -- validate the folded-conv localization net and the
    # factored sampler against plain-JAX references (loose tol: bf16 conv/fc weights).
    params2 = dict(params)
    params2["fc2_w"] = 0.05 * jax.random.normal(k7, (64, 6), jnp.float32)
    params2["fc2_b"] = jnp.array([1.0, 0.05, -0.03, 0.02, 1.0, -0.04], jnp.float32)
    eff2 = prepare_params(params2)
    out2, theta2 = fwd(x, eff2)
    jax.block_until_ready(out2)
    theta_ref = _ref_localization(x, params2)
    assert bool(jnp.allclose(theta2, theta_ref, atol=0.1, rtol=0.1)), "theta mismatch"
    samp_ref = _ref_affine_grid_sample(x, theta2)[:, :, 0:24, 0:24]
    assert bool(jnp.allclose(out2, samp_ref, atol=2e-3)), "grid_sample mismatch"

    print("KERNEL_OK")
</pallas_src>

<mosaic_0001>
module attributes {stable_mosaic.version = 11 : i64} {
  func.func @_fused_stn_kernel(%arg0: memref<2x256xf32, #tpu.memory_space<vmem>>, %arg1: memref<32x16xf32, #tpu.memory_space<vmem>>, %arg2: memref<256x1024xbf16, #tpu.memory_space<vmem>>, %arg3: memref<1x1024xf32, #tpu.memory_space<vmem>>, %arg4: memref<1024x512xbf16, #tpu.memory_space<vmem>>, %arg5: memref<1x512xf32, #tpu.memory_space<vmem>>, %arg6: memref<512x64xbf16, #tpu.memory_space<vmem>>, %arg7: memref<1x64xf32, #tpu.memory_space<vmem>>, %arg8: memref<64x8xf32, #tpu.memory_space<vmem>>, %arg9: memref<1x8xf32, #tpu.memory_space<vmem>>, %arg10: memref<2x256xf32, #tpu.memory_space<vmem>>, %arg11: memref<2x8xf32, #tpu.memory_space<vmem>>) attributes {dimension_semantics = [], scalar_prefetch = 0 : i64, scratch_operands = 0 : i64, tpu.core_type = #tpu.core_type<tc>} {
    %c0 = arith.constant 0 : index
    %c0_0 = arith.constant 0 : index
    %0 = vector.load %arg0[%c0, %c0_0] : memref<2x256xf32, #tpu.memory_space<vmem>>, vector<2x256xf32>
    %1 = arith.truncf %0 : vector<2x256xf32> to vector<2x256xbf16>
    %c0_1 = arith.constant 0 : index
    %c0_2 = arith.constant 0 : index
    %2 = vector.load %arg2[%c0_1, %c0_2] : memref<256x1024xbf16, #tpu.memory_space<vmem>>, vector<256x1024xbf16>
    %cst = arith.constant dense<0.000000e+00> : vector<2x1024xf32>
    %3 = tpu.matmul %1, %2, %cst {dimension_numbers = #tpu.dot_dimension_numbers<[1], [0], [0], [1], [0, 0, 1, 1], [], []>} : vector<2x256xbf16>, vector<256x1024xbf16>, vector<2x1024xf32> -> vector<2x1024xf32>
    %c0_3 = arith.constant 0 : index
    %c0_4 = arith.constant 0 : index
    %4 = vector.load %arg3[%c0_3, %c0_4] : memref<1x1024xf32, #tpu.memory_space<vmem>>, vector<1x1024xf32>
    %5 = vector.broadcast %4 : vector<1x1024xf32> to vector<2x1024xf32>
    %6 = arith.addf %3, %5 : vector<2x1024xf32>
    %cst_5 = arith.constant 0.000000e+00 : f32
    %7 = vector.broadcast %cst_5 : f32 to vector<2x1024xf32>
    %8 = arith.maximumf %6, %7 : vector<2x1024xf32>
    %9 = arith.truncf %8 : vector<2x1024xf32> to vector<2x1024xbf16>
    %c0_6 = arith.constant 0 : index
    %c0_7 = arith.constant 0 : index
    %10 = vector.load %arg4[%c0_6, %c0_7] : memref<1024x512xbf16, #tpu.memory_space<vmem>>, vector<1024x512xbf16>
    %cst_8 = arith.constant dense<0.000000e+00> : vector<2x512xf32>
    %11 = tpu.matmul %9, %10, %cst_8 {dimension_numbers = #tpu.dot_dimension_numbers<[1], [0], [0], [1], [0, 0, 1, 1], [], []>} : vector<2x1024xbf16>, vector<1024x512xbf16>, vector<2x512xf32> -> vector<2x512xf32>
    %c0_9 = arith.constant 0 : index
    %c0_10 = arith.constant 0 : index
    %12 = vector.load %arg5[%c0_9, %c0_10] : memref<1x512xf32, #tpu.memory_space<vmem>>, vector<1x512xf32>
    %13 = vector.broadcast %12 : vector<1x512xf32> to vector<2x512xf32>
    %14 = arith.addf %11, %13 : vector<2x512xf32>
    %cst_11 = arith.constant 0.000000e+00 : f32
    %15 = vector.broadcast %cst_11 : f32 to vector<2x512xf32>
    %16 = arith.maximumf %14, %15 : vector<2x512xf32>
    %17 = arith.truncf %16 : vector<2x512xf32> to vector<2x512xbf16>
    %c0_12 = arith.constant 0 : index
    %c0_13 = arith.constant 0 : index
    %18 = vector.load %arg6[%c0_12, %c0_13] : memref<512x64xbf16, #tpu.memory_space<vmem>>, vector<512x64xbf16>
    %cst_14 = arith.constant dense<0.000000e+00> : vector<2x64xf32>
    %19 = tpu.matmul %17, %18, %cst_14 {dimension_numbers = #tpu.dot_dimension_numbers<[1], [0], [0], [1], [0, 0, 1, 1], [], []>} : vector<2x512xbf16>, vector<512x64xbf16>, vector<2x64xf32> -> vector<2x64xf32>
    %c0_15 = arith.constant 0 : index
    %c0_16 = arith.constant 0 : index
    %20 = vector.load %arg7[%c0_15, %c0_16] : memref<1x64xf32, #tpu.memory_space<vmem>>, vector<1x64xf32>
    %21 = vector.broadcast %20 : vector<1x64xf32> to vector<2x64xf32>
    %22 = arith.addf %19, %21 : vector<2x64xf32>
    %cst_17 = arith.constant 0.000000e+00 : f32
    %23 = vector.broadcast %cst_17 : f32 to vector<2x64xf32>
    %24 = arith.maximumf %22, %23 : vector<2x64xf32>
    %c0_18 = arith.constant 0 : index
    %c0_19 = arith.constant 0 : index
    %25 = vector.load %arg8[%c0_18, %c0_19] : memref<64x8xf32, #tpu.memory_space<vmem>>, vector<64x8xf32>
    %cst_20 = arith.constant dense<0.000000e+00> : vector<2x8xf32>
    %26 = tpu.matmul %24, %25, %cst_20 {dimension_numbers = #tpu.dot_dimension_numbers<[1], [0], [0], [1], [0, 0, 1, 1], [], []>} : vector<2x64xf32>, vector<64x8xf32>, vector<2x8xf32> -> vector<2x8xf32>
    %c0_21 = arith.constant 0 : index
    %c0_22 = arith.constant 0 : index
    %27 = vector.load %arg9[%c0_21, %c0_22] : memref<1x8xf32, #tpu.memory_space<vmem>>, vector<1x8xf32>
    %28 = vector.broadcast %27 : vector<1x8xf32> to vector<2x8xf32>
    %29 = arith.addf %26, %28 : vector<2x8xf32>
    %c0_23 = arith.constant 0 : index
    %c0_24 = arith.constant 0 : index
    %30 = vector.load %arg11[%c0_23, %c0_24] : memref<2x8xf32, #tpu.memory_space<vmem>>, vector<2x8xf32>
    tpu.vector_store %arg11[%c0_23, %c0_24], %29 {strides = array<i32>} : memref<2x8xf32, #tpu.memory_space<vmem>>, vector<2x8xf32>,
    %31 = tpu.iota {dimensions = array<i32: 1>} : vector<1x256xi32>
    %32 = arith.sitofp %31 : vector<1x256xi32> to vector<1x256xf32>
    %cst_25 = arith.constant 6.250000e-02 : f32
    %33 = vector.broadcast %cst_25 : f32 to vector<1x256xf32>
    %34 = arith.mulf %32, %33 : vector<1x256xf32>
    %35 = math.floor %34 : vector<1x256xf32>
    %cst_26 = arith.constant 1.600000e+01 : f32
    %36 = vector.broadcast %cst_26 : f32 to vector<1x256xf32>
    %37 = arith.mulf %35, %36 : vector<1x256xf32>
    %38 = arith.subf %32, %37 : vector<1x256xf32>
    %cst_27 = arith.constant 2.000000e+00 : f32
    %39 = vector.broadcast %cst_27 : f32 to vector<1x256xf32>
    %40 = arith.mulf %39, %38 : vector<1x256xf32>
    %cst_28 = arith.constant 1.000000e+00 : f32
    %41 = vector.broadcast %cst_28 : f32 to vector<1x256xf32>
    %42 = arith.addf %40, %41 : vector<1x256xf32>
    %cst_29 = arith.constant 6.250000e-02 : f32
    %43 = vector.broadcast %cst_29 : f32 to vector<1x256xf32>
    %44 = arith.mulf %42, %43 : vector<1x256xf32>
    %cst_30 = arith.constant 1.000000e+00 : f32
    %45 = vector.broadcast %cst_30 : f32 to vector<1x256xf32>
    %46 = arith.subf %44, %45 : vector<1x256xf32>
    %cst_31 = arith.constant 2.000000e+00 : f32
    %47 = vector.broadcast %cst_31 : f32 to vector<1x256xf32>
    %48 = arith.mulf %47, %35 : vector<1x256xf32>
    %cst_32 = arith.constant 1.000000e+00 : f32
    %49 = vector.broadcast %cst_32 : f32 to vector<1x256xf32>
    %50 = arith.addf %48, %49 : vector<1x256xf32>
    %cst_33 = arith.constant 6.250000e-02 : f32
    %51 = vector.broadcast %cst_33 : f32 to vector<1x256xf32>
    %52 = arith.mulf %50, %51 : vector<1x256xf32>
    %cst_34 = arith.constant 1.000000e+00 : f32
    %53 = vector.broadcast %cst_34 : f32 to vector<1x256xf32>
    %54 = arith.subf %52, %53 : vector<1x256xf32>
    %55 = tpu.iota {dimensions = array<i32: 0>} : vector<16x256xi32>
    %56 = tpu.iota {dimensions = array<i32: 0>} : vector<16x256xi32>
    %57 = vector.extract_strided_slice %29 {offsets = [0, 0], sizes = [1, 8], strides = [1, 1]} : vector<2x8xf32> to vector<1x8xf32>
    %58 = vector.extract_strided_slice %57 {offsets = [0, 0], sizes = [1, 1], strides = [1, 1]} : vector<1x8xf32> to vector<1x1xf32>
    %59 = vector.broadcast %58 : vector<1x1xf32> to vector<1x256xf32>
    %60 = arith.mulf %59, %46 : vector<1x256xf32>
    %61 = vector.extract_strided_slice %57 {offsets = [0, 1], sizes = [1, 1], strides = [1, 1]} : vector<1x8xf32> to vector<1x1xf32>
    %62 = vector.broadcast %61 : vector<1x1xf32> to vector<1x256xf32>
    %63 = arith.mulf %62, %54 : vector<1x256xf32>
    %64 = arith.addf %60, %63 : vector<1x256xf32>
    %65 = vector.extract_strided_slice %57 {offsets = [0, 2], sizes = [1, 1], strides = [1, 1]} : vector<1x8xf32> to vector<1x1xf32>
    %66 = vector.broadcast %65 : vector<1x1xf32> to vector<1x256xf32>
    %67 = arith.addf %64, %66 : vector<1x256xf32>
    %68 = vector.extract_strided_slice %57 {offsets = [0, 3], sizes = [1, 1], strides = [1, 1]} : vector<1x8xf32> to vector<1x1xf32>
    %69 = vector.broadcast %68 : vector<1x1xf32> to vector<1x256xf32>
    %70 = arith.mulf %69, %46 : vector<1x256xf32>
    %71 = vector.extract_strided_slice %57 {offsets = [0, 4], sizes = [1, 1], strides = [1, 1]} : vector<1x8xf32> to vector<1x1xf32>
    %72 = vector.broadcast %71 : vector<1x1xf32> to vector<1x256xf32>
    %73 = arith.mulf %72, %54 : vector<1x256xf32>
    %74 = arith.addf %70, %73 : vector<1x256xf32>
    %75 = vector.extract_strided_slice %57 {offsets = [0, 5], sizes = [1, 1], strides = [1, 1]} : vector<1x8xf32> to vector<1x1xf32>
    %76 = vector.broadcast %75 : vector<1x1xf32> to vector<1x256xf32>
    %77 = arith.addf %74, %76 : vector<1x256xf32>
    %cst_35 = arith.constant 1.000000e+00 : f32
    %78 = vector.broadcast %cst_35 : f32 to vector<1x256xf32>
    %79 = arith.addf %67, %78 : vector<1x256xf32>
    %cst_36 = arith.constant 8.000000e+00 : f32
    %80 = vector.broadcast %cst_36 : f32 to vector<1x256xf32>
    %81 = arith.mulf %79, %80 : vector<1x256xf32>
    %cst_37 = arith.constant 5.000000e-01 : f32
    %82 = vector.broadcast %cst_37 : f32 to vector<1x256xf32>
    %83 = arith.subf %81, %82 : vector<1x256xf32>
    %cst_38 = arith.constant 1.000000e+00 : f32
    %84 = vector.broadcast %cst_38 : f32 to vector<1x256xf32>
    %85 = arith.addf %77, %84 : vector<1x256xf32>
    %cst_39 = arith.constant 8.000000e+00 : f32
    %86 = vector.broadcast %cst_39 : f32 to vector<1x256xf32>
    %87 = arith.mulf %85, %86 : vector<1x256xf32>
    %cst_40 = arith.constant 5.000000e-01 : f32
    %88 = vector.broadcast %cst_40 : f32 to vector<1x256xf32>
    %89 = arith.subf %87, %88 : vector<1x256xf32>
    %90 = math.floor %83 : vector<1x256xf32>
    %91 = math.floor %89 : vector<1x256xf32>
    %92 = arith.subf %83, %90 : vector<1x256xf32>
    %93 = arith.subf %89, %91 : vector<1x256xf32>
    %cst_41 = arith.constant -2.000000e+00 : f32
    %cst_42 = arith.constant 1.700000e+01 : f32
    %94 = vector.broadcast %cst_41 : f32 to vector<1x256xf32>
    %95 = arith.maximumf %94, %90 : vector<1x256xf32>
    %96 = vector.broadcast %cst_42 : f32 to vector<1x256xf32>
    %97 = arith.minimumf %96, %95 : vector<1x256xf32>
    %98 = arith.fptosi %97 : vector<1x256xf32> to vector<1x256xi32>
    %cst_43 = arith.constant -2.000000e+00 : f32
    %cst_44 = arith.constant 1.700000e+01 : f32
    %99 = vector.broadcast %cst_43 : f32 to vector<1x256xf32>
    %100 = arith.maximumf %99, %91 : vector<1x256xf32>
    %101 = vector.broadcast %cst_44 : f32 to vector<1x256xf32>
    %102 = arith.minimumf %101, %100 : vector<1x256xf32>
    %103 = arith.fptosi %102 : vector<1x256xf32> to vector<1x256xi32>
    %c0_45 = arith.constant 0 : index
    %c0_46 = arith.constant 0 : index
    %104 = vector.load %arg1[%c0_45, %c0_46] : memref<32x16xf32, #tpu.memory_space<vmem>>, vector<16x16xf32>
    %cst_47 = arith.constant 0.000000e+00 : f32
    %105 = vector.broadcast %cst_47 : f32 to vector<1x256xf32>
    %c0_i32 = arith.constant 0 : i32
    %106 = vector.broadcast %c0_i32 : i32 to vector<1x256xi32>
    %107 = arith.addi %98, %106 : vector<1x256xi32>
    %c0_i32_48 = arith.constant 0 : i32
    %108 = vector.broadcast %c0_i32_48 : i32 to vector<1x256xi32>
    %109 = arith.addi %103, %108 : vector<1x256xi32>
    %cst_49 = arith.constant 1.000000e+00 : f32
    %110 = vector.broadcast %cst_49 : f32 to vector<1x256xf32>
    %111 = arith.subf %110, %92 : vector<1x256xf32>
    %cst_50 = arith.constant 1.000000e+00 : f32
    %112 = vector.broadcast %cst_50 : f32 to vector<1x256xf32>
    %113 = arith.subf %112, %93 : vector<1x256xf32>
    %114 = arith.mulf %111, %113 : vector<1x256xf32>
    %c0_i32_51 = arith.constant 0 : i32
    %115 = vector.broadcast %c0_i32_51 : i32 to vector<1x256xi32>
    %116 = arith.cmpi sge, %107, %115 : vector<1x256xi32>
    %c16_i32 = arith.constant 16 : i32
    %117 = vector.broadcast %c16_i32 : i32 to vector<1x256xi32>
    %118 = arith.cmpi slt, %107, %117 : vector<1x256xi32>
    %119 = arith.andi %116, %118 : vector<1x256xi1>
    %c0_i32_52 = arith.constant 0 : i32
    %120 = vector.broadcast %c0_i32_52 : i32 to vector<1x256xi32>
    %121 = arith.cmpi sge, %109, %120 : vector<1x256xi32>
    %122 = arith.andi %119, %121 : vector<1x256xi1>
    %c16_i32_53 = arith.constant 16 : i32
    %123 = vector.broadcast %c16_i32_53 : i32 to vector<1x256xi32>
    %124 = arith.cmpi slt, %109, %123 : vector<1x256xi32>
    %125 = arith.andi %122, %124 : vector<1x256xi1>
    %cst_54 = arith.constant 0.000000e+00 : f32
    %126 = vector.broadcast %cst_54 : f32 to vector<1x256xf32>
    %127 = arith.select %125, %114, %126 : vector<1x256xi1>, vector<1x256xf32>
    %128 = vector.broadcast %109 : vector<1x256xi32> to vector<16x256xi32>
    %129 = arith.cmpi eq, %55, %128 : vector<16x256xi32>
    %130 = arith.extui %129 : vector<16x256xi1> to vector<16x256xi32>
    %131 = arith.sitofp %130 : vector<16x256xi32> to vector<16x256xf32>
    %cst_55 = arith.constant dense<0.000000e+00> : vector<16x256xf32>
    %132 = tpu.matmul %104, %131, %cst_55 {dimension_numbers = #tpu.dot_dimension_numbers<[1], [0], [0], [1], [0, 0, 1, 1], [], []>} : vector<16x16xf32>, vector<16x256xf32>, vector<16x256xf32> -> vector<16x256xf32>
    %133 = vector.broadcast %107 : vector<1x256xi32> to vector<16x256xi32>
    %134 = arith.cmpi eq, %56, %133 : vector<16x256xi32>
    %cst_56 = arith.constant 0.000000e+00 : f32
    %135 = vector.shape_cast %127 : vector<1x256xf32> to vector<1x256xf32>
    %136 = vector.broadcast %135 : vector<1x256xf32> to vector<16x256xf32>
    %137 = vector.broadcast %cst_56 : f32 to vector<16x256xf32>
    %138 = arith.select %134, %136, %137 : vector<16x256xi1>, vector<16x256xf32>
    %139 = arith.mulf %132, %138 : vector<16x256xf32>
    %cst_57 = arith.constant dense<0.000000e+00> : vector<256xf32>
    %140 = vector.multi_reduction <add>, %139, %cst_57 [0] : vector<16x256xf32> to vector<256xf32>
    %141 = vector.shape_cast %140 : vector<256xf32> to vector<1x256xf32>
    %142 = arith.addf %105, %141 : vector<1x256xf32>
    %c1_i32 = arith.constant 1 : i32
    %143 = vector.broadcast %c1_i32 : i32 to vector<1x256xi32>
    %144 = arith.addi %98, %143 : vector<1x256xi32>
    %c0_i32_58 = arith.constant 0 : i32
    %145 = vector.broadcast %c0_i32_58 : i32 to vector<1x256xi32>
    %146 = arith.addi %103, %145 : vector<1x256xi32>
    %cst_59 = arith.constant 1.000000e+00 : f32
    %147 = vector.broadcast %cst_59 : f32 to vector<1x256xf32>
    %148 = arith.subf %147, %93 : vector<1x256xf32>
    %149 = arith.mulf %92, %148 : vector<1x256xf32>
    %c0_i32_60 = arith.constant 0 : i32
    %150 = vector.broadcast %c0_i32_60 : i32 to vector<1x256xi32>
    %151 = arith.cmpi sge, %144, %150 : vector<1x256xi32>
    %c16_i32_61 = arith.constant 16 : i32
    %152 = vector.broadcast %c16_i32_61 : i32 to vector<1x256xi32>
    %153 = arith.cmpi slt, %144, %152 : vector<1x256xi32>
    %154 = arith.andi %151, %153 : vector<1x256xi1>
    %c0_i32_62 = arith.constant 0 : i32
    %155 = vector.broadcast %c0_i32_62 : i32 to vector<1x256xi32>
    %156 = arith.cmpi sge, %146, %155 : vector<1x256xi32>
    %157 = arith.andi %154, %156 : vector<1x256xi1>
    %c16_i32_63 = arith.constant 16 : i32
    %158 = vector.broadcast %c16_i32_63 : i32 to vector<1x256xi32>
    %159 = arith.cmpi slt, %146, %158 : vector<1x256xi32>
    %160 = arith.andi %157, %159 : vector<1x256xi1>
    %cst_64 = arith.constant 0.000000e+00 : f32
    %161 = vector.broadcast %cst_64 : f32 to vector<1x256xf32>
    %162 = arith.select %160, %149, %161 : vector<1x256xi1>, vector<1x256xf32>
    %163 = vector.broadcast %146 : vector<1x256xi32> to vector<16x256xi32>
    %164 = arith.cmpi eq, %55, %163 : vector<16x256xi32>
    %165 = arith.extui %164 : vector<16x256xi1> to vector<16x256xi32>
    %166 = arith.sitofp %165 : vector<16x256xi32> to vector<16x256xf32>
    %cst_65 = arith.constant dense<0.000000e+00> : vector<16x256xf32>
    %167 = tpu.matmul %104, %166, %cst_65 {dimension_numbers = #tpu.dot_dimension_numbers<[1], [0], [0], [1], [0, 0, 1, 1], [], []>} : vector<16x16xf32>, vector<16x256xf32>, vector<16x256xf32> -> vector<16x256xf32>
    %168 = vector.broadcast %144 : vector<1x256xi32> to vector<16x256xi32>
    %169 = arith.cmpi eq, %56, %168 : vector<16x256xi32>
    %cst_66 = arith.constant 0.000000e+00 : f32
    %170 = vector.shape_cast %162 : vector<1x256xf32> to vector<1x256xf32>
    %171 = vector.broadcast %170 : vector<1x256xf32> to vector<16x256xf32>
    %172 = vector.broadcast %cst_66 : f32 to vector<16x256xf32>
    %173 = arith.select %169, %171, %172 : vector<16x256xi1>, vector<16x256xf32>
    %174 = arith.mulf %167, %173 : vector<16x256xf32>
    %cst_67 = arith.constant dense<0.000000e+00> : vector<256xf32>
    %175 = vector.multi_reduction <add>, %174, %cst_67 [0] : vector<16x256xf32> to vector<256xf32>
    %176 = vector.shape_cast %175 : vector<256xf32> to vector<1x256xf32>
    %177 = arith.addf %142, %176 : vector<1x256xf32>
    %c0_i32_68 = arith.constant 0 : i32
    %178 = vector.broadcast %c0_i32_68 : i32 to vector<1x256xi32>
    %179 = arith.addi %98, %178 : vector<1x256xi32>
    %c1_i32_69 = arith.constant 1 : i32
    %180 = vector.broadcast %c1_i32_69 : i32 to vector<1x256xi32>
    %181 = arith.addi %103, %180 : vector<1x256xi32>
    %cst_70 = arith.constant 1.000000e+00 : f32
    %182 = vector.broadcast %cst_70 : f32 to vector<1x256xf32>
    %183 = arith.subf %182, %92 : vector<1x256xf32>
    %184 = arith.mulf %183, %93 : vector<1x256xf32>
    %c0_i32_71 = arith.constant 0 : i32
    %185 = vector.broadcast %c0_i32_71 : i32 to vector<1x256xi32>
    %186 = arith.cmpi sge, %179, %185 : vector<1x256xi32>
    %c16_i32_72 = arith.constant 16 : i32
    %187 = vector.broadcast %c16_i32_72 : i32 to vector<1x256xi32>
    %188 = arith.cmpi slt, %179, %187 : vector<1x256xi32>
    %189 = arith.andi %186, %188 : vector<1x256xi1>
    %c0_i32_73 = arith.constant 0 : i32
    %190 = vector.broadcast %c0_i32_73 : i32 to vector<1x256xi32>
    %191 = arith.cmpi sge, %181, %190 : vector<1x256xi32>
    %192 = arith.andi %189, %191 : vector<1x256xi1>
    %c16_i32_74 = arith.constant 16 : i32
    %193 = vector.broadcast %c16_i32_74 : i32 to vector<1x256xi32>
    %194 = arith.cmpi slt, %181, %193 : vector<1x256xi32>
    %195 = arith.andi %192, %194 : vector<1x256xi1>
    %cst_75 = arith.constant 0.000000e+00 : f32
    %196 = vector.broadcast %cst_75 : f32 to vector<1x256xf32>
    %197 = arith.select %195, %184, %196 : vector<1x256xi1>, vector<1x256xf32>
    %198 = vector.broadcast %181 : vector<1x256xi32> to vector<16x256xi32>
    %199 = arith.cmpi eq, %55, %198 : vector<16x256xi32>
    %200 = arith.extui %199 : vector<16x256xi1> to vector<16x256xi32>
    %201 = arith.sitofp %200 : vector<16x256xi32> to vector<16x256xf32>
    %cst_76 = arith.constant dense<0.000000e+00> : vector<16x256xf32>
    %202 = tpu.matmul %104, %201, %cst_76 {dimension_numbers = #tpu.dot_dimension_numbers<[1], [0], [0], [1], [0, 0, 1, 1], [], []>} : vector<16x16xf32>, vector<16x256xf32>, vector<16x256xf32> -> vector<16x256xf32>
    %203 = vector.broadcast %179 : vector<1x256xi32> to vector<16x256xi32>
    %204 = arith.cmpi eq, %56, %203 : vector<16x256xi32>
    %cst_77 = arith.constant 0.000000e+00 : f32
    %205 = vector.shape_cast %197 : vector<1x256xf32> to vector<1x256xf32>
    %206 = vector.broadcast %205 : vector<1x256xf32> to vector<16x256xf32>
    %207 = vector.broadcast %cst_77 : f32 to vector<16x256xf32>
    %208 = arith.select %204, %206, %207 : vector<16x256xi1>, vector<16x256xf32>
    %209 = arith.mulf %202, %208 : vector<16x256xf32>
    %cst_78 = arith.constant dense<0.000000e+00> : vector<256xf32>
    %210 = vector.multi_reduction <add>, %209, %cst_78 [0] : vector<16x256xf32> to vector<256xf32>
    %211 = vector.shape_cast %210 : vector<256xf32> to vector<1x256xf32>
    %212 = arith.addf %177, %211 : vector<1x256xf32>
    %c1_i32_79 = arith.constant 1 : i32
    %213 = vector.broadcast %c1_i32_79 : i32 to vector<1x256xi32>
    %214 = arith.addi %98, %213 : vector<1x256xi32>
    %c1_i32_80 = arith.constant 1 : i32
    %215 = vector.broadcast %c1_i32_80 : i32 to vector<1x256xi32>
    %216 = arith.addi %103, %215 : vector<1x256xi32>
    %217 = arith.mulf %92, %93 : vector<1x256xf32>
    %c0_i32_81 = arith.constant 0 : i32
    %218 = vector.broadcast %c0_i32_81 : i32 to vector<1x256xi32>
    %219 = arith.cmpi sge, %214, %218 : vector<1x256xi32>
    %c16_i32_82 = arith.constant 16 : i32
    %220 = vector.broadcast %c16_i32_82 : i32 to vector<1x256xi32>
    %221 = arith.cmpi slt, %214, %220 : vector<1x256xi32>
    %222 = arith.andi %219, %221 : vector<1x256xi1>
    %c0_i32_83 = arith.constant 0 : i32
    %223 = vector.broadcast %c0_i32_83 : i32 to vector<1x256xi32>
    %224 = arith.cmpi sge, %216, %223 : vector<1x256xi32>
    %225 = arith.andi %222, %224 : vector<1x256xi1>
    %c16_i32_84 = arith.constant 16 : i32
    %226 = vector.broadcast %c16_i32_84 : i32 to vector<1x256xi32>
    %227 = arith.cmpi slt, %216, %226 : vector<1x256xi32>
    %228 = arith.andi %225, %227 : vector<1x256xi1>
    %cst_85 = arith.constant 0.000000e+00 : f32
    %229 = vector.broadcast %cst_85 : f32 to vector<1x256xf32>
    %230 = arith.select %228, %217, %229 : vector<1x256xi1>, vector<1x256xf32>
    %231 = vector.broadcast %216 : vector<1x256xi32> to vector<16x256xi32>
    %232 = arith.cmpi eq, %55, %231 : vector<16x256xi32>
    %233 = arith.extui %232 : vector<16x256xi1> to vector<16x256xi32>
    %234 = arith.sitofp %233 : vector<16x256xi32> to vector<16x256xf32>
    %cst_86 = arith.constant dense<0.000000e+00> : vector<16x256xf32>
    %235 = tpu.matmul %104, %234, %cst_86 {dimension_numbers = #tpu.dot_dimension_numbers<[1], [0], [0], [1], [0, 0, 1, 1], [], []>} : vector<16x16xf32>, vector<16x256xf32>, vector<16x256xf32> -> vector<16x256xf32>
    %236 = vector.broadcast %214 : vector<1x256xi32> to vector<16x256xi32>
    %237 = arith.cmpi eq, %56, %236 : vector<16x256xi32>
    %cst_87 = arith.constant 0.000000e+00 : f32
    %238 = vector.shape_cast %230 : vector<1x256xf32> to vector<1x256xf32>
    %239 = vector.broadcast %238 : vector<1x256xf32> to vector<16x256xf32>
    %240 = vector.broadcast %cst_87 : f32 to vector<16x256xf32>
    %241 = arith.select %237, %239, %240 : vector<16x256xi1>, vector<16x256xf32>
    %242 = arith.mulf %235, %241 : vector<16x256xf32>
    %cst_88 = arith.constant dense<0.000000e+00> : vector<256xf32>
    %243 = vector.multi_reduction <add>, %242, %cst_88 [0] : vector<16x256xf32> to vector<256xf32>
    %244 = vector.shape_cast %243 : vector<256xf32> to vector<1x256xf32>
    %245 = arith.addf %212, %244 : vector<1x256xf32>
    %c0_89 = arith.constant 0 : index
    %c0_90 = arith.constant 0 : index
    %246 = vector.load %arg10[%c0_89, %c0_90] : memref<2x256xf32, #tpu.memory_space<vmem>>, vector<1x256xf32>
    tpu.vector_store %arg10[%c0_89, %c0_90], %245 {strides = array<i32>} : memref<2x256xf32, #tpu.memory_space<vmem>>, vector<1x256xf32>,
    %247 = vector.extract_strided_slice %29 {offsets = [1, 0], sizes = [1, 8], strides = [1, 1]} : vector<2x8xf32> to vector<1x8xf32>
    %248 = vector.extract_strided_slice %247 {offsets = [0, 0], sizes = [1, 1], strides = [1, 1]} : vector<1x8xf32> to vector<1x1xf32>
    %249 = vector.broadcast %248 : vector<1x1xf32> to vector<1x256xf32>
    %250 = arith.mulf %249, %46 : vector<1x256xf32>
    %251 = vector.extract_strided_slice %247 {offsets = [0, 1], sizes = [1, 1], strides = [1, 1]} : vector<1x8xf32> to vector<1x1xf32>
    %252 = vector.broadcast %251 : vector<1x1xf32> to vector<1x256xf32>
    %253 = arith.mulf %252, %54 : vector<1x256xf32>
    %254 = arith.addf %250, %253 : vector<1x256xf32>
    %255 = vector.extract_strided_slice %247 {offsets = [0, 2], sizes = [1, 1], strides = [1, 1]} : vector<1x8xf32> to vector<1x1xf32>
    %256 = vector.broadcast %255 : vector<1x1xf32> to vector<1x256xf32>
    %257 = arith.addf %254, %256 : vector<1x256xf32>
    %258 = vector.extract_strided_slice %247 {offsets = [0, 3], sizes = [1, 1], strides = [1, 1]} : vector<1x8xf32> to vector<1x1xf32>
    %259 = vector.broadcast %258 : vector<1x1xf32> to vector<1x256xf32>
    %260 = arith.mulf %259, %46 : vector<1x256xf32>
    %261 = vector.extract_strided_slice %247 {offsets = [0, 4], sizes = [1, 1], strides = [1, 1]} : vector<1x8xf32> to vector<1x1xf32>
    %262 = vector.broadcast %261 : vector<1x1xf32> to vector<1x256xf32>
    %263 = arith.mulf %262, %54 : vector<1x256xf32>
    %264 = arith.addf %260, %263 : vector<1x256xf32>
    %265 = vector.extract_strided_slice %247 {offsets = [0, 5], sizes = [1, 1], strides = [1, 1]} : vector<1x8xf32> to vector<1x1xf32>
    %266 = vector.broadcast %265 : vector<1x1xf32> to vector<1x256xf32>
    %267 = arith.addf %264, %266 : vector<1x256xf32>
    %cst_91 = arith.constant 1.000000e+00 : f32
    %268 = vector.broadcast %cst_91 : f32 to vector<1x256xf32>
    %269 = arith.addf %257, %268 : vector<1x256xf32>
    %cst_92 = arith.constant 8.000000e+00 : f32
    %270 = vector.broadcast %cst_92 : f32 to vector<1x256xf32>
    %271 = arith.mulf %269, %270 : vector<1x256xf32>
    %cst_93 = arith.constant 5.000000e-01 : f32
    %272 = vector.broadcast %cst_93 : f32 to vector<1x256xf32>
    %273 = arith.subf %271, %272 : vector<1x256xf32>
    %cst_94 = arith.constant 1.000000e+00 : f32
    %274 = vector.broadcast %cst_94 : f32 to vector<1x256xf32>
    %275 = arith.addf %267, %274 : vector<1x256xf32>
    %cst_95 = arith.constant 8.000000e+00 : f32
    %276 = vector.broadcast %cst_95 : f32 to vector<1x256xf32>
    %277 = arith.mulf %275, %276 : vector<1x256xf32>
    %cst_96 = arith.constant 5.000000e-01 : f32
    %278 = vector.broadcast %cst_96 : f32 to vector<1x256xf32>
    %279 = arith.subf %277, %278 : vector<1x256xf32>
    %280 = math.floor %273 : vector<1x256xf32>
    %281 = math.floor %279 : vector<1x256xf32>
    %282 = arith.subf %273, %280 : vector<1x256xf32>
    %283 = arith.subf %279, %281 : vector<1x256xf32>
    %cst_97 = arith.constant -2.000000e+00 : f32
    %cst_98 = arith.constant 1.700000e+01 : f32
    %284 = vector.broadcast %cst_97 : f32 to vector<1x256xf32>
    %285 = arith.maximumf %284, %280 : vector<1x256xf32>
    %286 = vector.broadcast %cst_98 : f32 to vector<1x256xf32>
    %287 = arith.minimumf %286, %285 : vector<1x256xf32>
    %288 = arith.fptosi %287 : vector<1x256xf32> to vector<1x256xi32>
    %cst_99 = arith.constant -2.000000e+00 : f32
    %cst_100 = arith.constant 1.700000e+01 : f32
    %289 = vector.broadcast %cst_99 : f32 to vector<1x256xf32>
    %290 = arith.maximumf %289, %281 : vector<1x256xf32>
    %291 = vector.broadcast %cst_100 : f32 to vector<1x256xf32>
    %292 = arith.minimumf %291, %290 : vector<1x256xf32>
    %293 = arith.fptosi %292 : vector<1x256xf32> to vector<1x256xi32>
    %c16 = arith.constant 16 : index
    %c0_101 = arith.constant 0 : index
    %294 = vector.load %arg1[%c16, %c0_101] : memref<32x16xf32, #tpu.memory_space<vmem>>, vector<16x16xf32>
    %cst_102 = arith.constant 0.000000e+00 : f32
    %295 = vector.broadcast %cst_102 : f32 to vector<1x256xf32>
    %c0_i32_103 = arith.constant 0 : i32
    %296 = vector.broadcast %c0_i32_103 : i32 to vector<1x256xi32>
    %297 = arith.addi %288, %296 : vector<1x256xi32>
    %c0_i32_104 = arith.constant 0 : i32
    %298 = vector.broadcast %c0_i32_104 : i32 to vector<1x256xi32>
    %299 = arith.addi %293, %298 : vector<1x256xi32>
    %cst_105 = arith.constant 1.000000e+00 : f32
    %300 = vector.broadcast %cst_105 : f32 to vector<1x256xf32>
    %301 = arith.subf %300, %282 : vector<1x256xf32>
    %cst_106 = arith.constant 1.000000e+00 : f32
    %302 = vector.broadcast %cst_106 : f32 to vector<1x256xf32>
    %303 = arith.subf %302, %283 : vector<1x256xf32>
    %304 = arith.mulf %301, %303 : vector<1x256xf32>
    %c0_i32_107 = arith.constant 0 : i32
    %305 = vector.broadcast %c0_i32_107 : i32 to vector<1x256xi32>
    %306 = arith.cmpi sge, %297, %305 : vector<1x256xi32>
    %c16_i32_108 = arith.constant 16 : i32
    %307 = vector.broadcast %c16_i32_108 : i32 to vector<1x256xi32>
    %308 = arith.cmpi slt, %297, %307 : vector<1x256xi32>
    %309 = arith.andi %306, %308 : vector<1x256xi1>
    %c0_i32_109 = arith.constant 0 : i32
    %310 = vector.broadcast %c0_i32_109 : i32 to vector<1x256xi32>
    %311 = arith.cmpi sge, %299, %310 : vector<1x256xi32>
    %312 = arith.andi %309, %311 : vector<1x256xi1>
    %c16_i32_110 = arith.constant 16 : i32
    %313 = vector.broadcast %c16_i32_110 : i32 to vector<1x256xi32>
    %314 = arith.cmpi slt, %299, %313 : vector<1x256xi32>
    %315 = arith.andi %312, %314 : vector<1x256xi1>
    %cst_111 = arith.constant 0.000000e+00 : f32
    %316 = vector.broadcast %cst_111 : f32 to vector<1x256xf32>
    %317 = arith.select %315, %304, %316 : vector<1x256xi1>, vector<1x256xf32>
    %318 = vector.broadcast %299 : vector<1x256xi32> to vector<16x256xi32>
    %319 = arith.cmpi eq, %55, %318 : vector<16x256xi32>
    %320 = arith.extui %319 : vector<16x256xi1> to vector<16x256xi32>
    %321 = arith.sitofp %320 : vector<16x256xi32> to vector<16x256xf32>
    %cst_112 = arith.constant dense<0.000000e+00> : vector<16x256xf32>
    %322 = tpu.matmul %294, %321, %cst_112 {dimension_numbers = #tpu.dot_dimension_numbers<[1], [0], [0], [1], [0, 0, 1, 1], [], []>} : vector<16x16xf32>, vector<16x256xf32>, vector<16x256xf32> -> vector<16x256xf32>
    %323 = vector.broadcast %297 : vector<1x256xi32> to vector<16x256xi32>
    %324 = arith.cmpi eq, %56, %323 : vector<16x256xi32>
    %cst_113 = arith.constant 0.000000e+00 : f32
    %325 = vector.shape_cast %317 : vector<1x256xf32> to vector<1x256xf32>
    %326 = vector.broadcast %325 : vector<1x256xf32> to vector<16x256xf32>
    %327 = vector.broadcast %cst_113 : f32 to vector<16x256xf32>
    %328 = arith.select %324, %326, %327 : vector<16x256xi1>, vector<16x256xf32>
    %329 = arith.mulf %322, %328 : vector<16x256xf32>
    %cst_114 = arith.constant dense<0.000000e+00> : vector<256xf32>
    %330 = vector.multi_reduction <add>, %329, %cst_114 [0] : vector<16x256xf32> to vector<256xf32>
    %331 = vector.shape_cast %330 : vector<256xf32> to vector<1x256xf32>
    %332 = arith.addf %295, %331 : vector<1x256xf32>
    %c1_i32_115 = arith.constant 1 : i32
    %333 = vector.broadcast %c1_i32_115 : i32 to vector<1x256xi32>
    %334 = arith.addi %288, %333 : vector<1x256xi32>
    %c0_i32_116 = arith.constant 0 : i32
    %335 = vector.broadcast %c0_i32_116 : i32 to vector<1x256xi32>
    %336 = arith.addi %293, %335 : vector<1x256xi32>
    %cst_117 = arith.constant 1.000000e+00 : f32
    %337 = vector.broadcast %cst_117 : f32 to vector<1x256xf32>
    %338 = arith.subf %337, %283 : vector<1x256xf32>
    %339 = arith.mulf %282, %338 : vector<1x256xf32>
    %c0_i32_118 = arith.constant 0 : i32
    %340 = vector.broadcast %c0_i32_118 : i32 to vector<1x256xi32>
    %341 = arith.cmpi sge, %334, %340 : vector<1x256xi32>
    %c16_i32_119 = arith.constant 16 : i32
    %342 = vector.broadcast %c16_i32_119 : i32 to vector<1x256xi32>
    %343 = arith.cmpi slt, %334, %342 : vector<1x256xi32>
    %344 = arith.andi %341, %343 : vector<1x256xi1>
    %c0_i32_120 = arith.constant 0 : i32
    %345 = vector.broadcast %c0_i32_120 : i32 to vector<1x256xi32>
    %346 = arith.cmpi sge, %336, %345 : vector<1x256xi32>
    %347 = arith.andi %344, %346 : vector<1x256xi1>
    %c16_i32_121 = arith.constant 16 : i32
    %348 = vector.broadcast %c16_i32_121 : i32 to vector<1x256xi32>
    %349 = arith.cmpi slt, %336, %348 : vector<1x256xi32>
    %350 = arith.andi %347, %349 : vector<1x256xi1>
    %cst_122 = arith.constant 0.000000e+00 : f32
    %351 = vector.broadcast %cst_122 : f32 to vector<1x256xf32>
    %352 = arith.select %350, %339, %351 : vector<1x256xi1>, vector<1x256xf32>
    %353 = vector.broadcast %336 : vector<1x256xi32> to vector<16x256xi32>
    %354 = arith.cmpi eq, %55, %353 : vector<16x256xi32>
    %355 = arith.extui %354 : vector<16x256xi1> to vector<16x256xi32>
    %356 = arith.sitofp %355 : vector<16x256xi32> to vector<16x256xf32>
    %cst_123 = arith.constant dense<0.000000e+00> : vector<16x256xf32>
    %357 = tpu.matmul %294, %356, %cst_123 {dimension_numbers = #tpu.dot_dimension_numbers<[1], [0], [0], [1], [0, 0, 1, 1], [], []>} : vector<16x16xf32>, vector<16x256xf32>, vector<16x256xf32> -> vector<16x256xf32>
    %358 = vector.broadcast %334 : vector<1x256xi32> to vector<16x256xi32>
    %359 = arith.cmpi eq, %56, %358 : vector<16x256xi32>
    %cst_124 = arith.constant 0.000000e+00 : f32
    %360 = vector.shape_cast %352 : vector<1x256xf32> to vector<1x256xf32>
    %361 = vector.broadcast %360 : vector<1x256xf32> to vector<16x256xf32>
    %362 = vector.broadcast %cst_124 : f32 to vector<16x256xf32>
    %363 = arith.select %359, %361, %362 : vector<16x256xi1>, vector<16x256xf32>
    %364 = arith.mulf %357, %363 : vector<16x256xf32>
    %cst_125 = arith.constant dense<0.000000e+00> : vector<256xf32>
    %365 = vector.multi_reduction <add>, %364, %cst_125 [0] : vector<16x256xf32> to vector<256xf32>
    %366 = vector.shape_cast %365 : vector<256xf32> to vector<1x256xf32>
    %367 = arith.addf %332, %366 : vector<1x256xf32>
    %c0_i32_126 = arith.constant 0 : i32
    %368 = vector.broadcast %c0_i32_126 : i32 to vector<1x256xi32>
    %369 = arith.addi %288, %368 : vector<1x256xi32>
    %c1_i32_127 = arith.constant 1 : i32
    %370 = vector.broadcast %c1_i32_127 : i32 to vector<1x256xi32>
    %371 = arith.addi %293, %370 : vector<1x256xi32>
    %cst_128 = arith.constant 1.000000e+00 : f32
    %372 = vector.broadcast %cst_128 : f32 to vector<1x256xf32>
    %373 = arith.subf %372, %282 : vector<1x256xf32>
    %374 = arith.mulf %373, %283 : vector<1x256xf32>
    %c0_i32_129 = arith.constant 0 : i32
    %375 = vector.broadcast %c0_i32_129 : i32 to vector<1x256xi32>
    %376 = arith.cmpi sge, %369, %375 : vector<1x256xi32>
    %c16_i32_130 = arith.constant 16 : i32
    %377 = vector.broadcast %c16_i32_130 : i32 to vector<1x256xi32>
    %378 = arith.cmpi slt, %369, %377 : vector<1x256xi32>
    %379 = arith.andi %376, %378 : vector<1x256xi1>
    %c0_i32_131 = arith.constant 0 : i32
    %380 = vector.broadcast %c0_i32_131 : i32 to vector<1x256xi32>
    %381 = arith.cmpi sge, %371, %380 : vector<1x256xi32>
    %382 = arith.andi %379, %381 : vector<1x256xi1>
    %c16_i32_132 = arith.constant 16 : i32
    %383 = vector.broadcast %c16_i32_132 : i32 to vector<1x256xi32>
    %384 = arith.cmpi slt, %371, %383 : vector<1x256xi32>
    %385 = arith.andi %382, %384 : vector<1x256xi1>
    %cst_133 = arith.constant 0.000000e+00 : f32
    %386 = vector.broadcast %cst_133 : f32 to vector<1x256xf32>
    %387 = arith.select %385, %374, %386 : vector<1x256xi1>, vector<1x256xf32>
    %388 = vector.broadcast %371 : vector<1x256xi32> to vector<16x256xi32>
    %389 = arith.cmpi eq, %55, %388 : vector<16x256xi32>
    %390 = arith.extui %389 : vector<16x256xi1> to vector<16x256xi32>
    %391 = arith.sitofp %390 : vector<16x256xi32> to vector<16x256xf32>
    %cst_134 = arith.constant dense<0.000000e+00> : vector<16x256xf32>
    %392 = tpu.matmul %294, %391, %cst_134 {dimension_numbers = #tpu.dot_dimension_numbers<[1], [0], [0], [1], [0, 0, 1, 1], [], []>} : vector<16x16xf32>, vector<16x256xf32>, vector<16x256xf32> -> vector<16x256xf32>
    %393 = vector.broadcast %369 : vector<1x256xi32> to vector<16x256xi32>
    %394 = arith.cmpi eq, %56, %393 : vector<16x256xi32>
    %cst_135 = arith.constant 0.000000e+00 : f32
    %395 = vector.shape_cast %387 : vector<1x256xf32> to vector<1x256xf32>
    %396 = vector.broadcast %395 : vector<1x256xf32> to vector<16x256xf32>
    %397 = vector.broadcast %cst_135 : f32 to vector<16x256xf32>
    %398 = arith.select %394, %396, %397 : vector<16x256xi1>, vector<16x256xf32>
    %399 = arith.mulf %392, %398 : vector<16x256xf32>
    %cst_136 = arith.constant dense<0.000000e+00> : vector<256xf32>
    %400 = vector.multi_reduction <add>, %399, %cst_136 [0] : vector<16x256xf32> to vector<256xf32>
    %401 = vector.shape_cast %400 : vector<256xf32> to vector<1x256xf32>
    %402 = arith.addf %367, %401 : vector<1x256xf32>
    %c1_i32_137 = arith.constant 1 : i32
    %403 = vector.broadcast %c1_i32_137 : i32 to vector<1x256xi32>
    %404 = arith.addi %288, %403 : vector<1x256xi32>
    %c1_i32_138 = arith.constant 1 : i32
    %405 = vector.broadcast %c1_i32_138 : i32 to vector<1x256xi32>
    %406 = arith.addi %293, %405 : vector<1x256xi32>
    %407 = arith.mulf %282, %283 : vector<1x256xf32>
    %c0_i32_139 = arith.constant 0 : i32
    %408 = vector.broadcast %c0_i32_139 : i32 to vector<1x256xi32>
    %409 = arith.cmpi sge, %404, %408 : vector<1x256xi32>
    %c16_i32_140 = arith.constant 16 : i32
    %410 = vector.broadcast %c16_i32_140 : i32 to vector<1x256xi32>
    %411 = arith.cmpi slt, %404, %410 : vector<1x256xi32>
    %412 = arith.andi %409, %411 : vector<1x256xi1>
    %c0_i32_141 = arith.constant 0 : i32
    %413 = vector.broadcast %c0_i32_141 : i32 to vector<1x256xi32>
    %414 = arith.cmpi sge, %406, %413 : vector<1x256xi32>
    %415 = arith.andi %412, %414 : vector<1x256xi1>
    %c16_i32_142 = arith.constant 16 : i32
    %416 = vector.broadcast %c16_i32_142 : i32 to vector<1x256xi32>
    %417 = arith.cmpi slt, %406, %416 : vector<1x256xi32>
    %418 = arith.andi %415, %417 : vector<1x256xi1>
    %cst_143 = arith.constant 0.000000e+00 : f32
    %419 = vector.broadcast %cst_143 : f32 to vector<1x256xf32>
    %420 = arith.select %418, %407, %419 : vector<1x256xi1>, vector<1x256xf32>
    %421 = vector.broadcast %406 : vector<1x256xi32> to vector<16x256xi32>
    %422 = arith.cmpi eq, %55, %421 : vector<16x256xi32>
    %423 = arith.extui %422 : vector<16x256xi1> to vector<16x256xi32>
    %424 = arith.sitofp %423 : vector<16x256xi32> to vector<16x256xf32>
    %cst_144 = arith.constant dense<0.000000e+00> : vector<16x256xf32>
    %425 = tpu.matmul %294, %424, %cst_144 {dimension_numbers = #tpu.dot_dimension_numbers<[1], [0], [0], [1], [0, 0, 1, 1], [], []>} : vector<16x16xf32>, vector<16x256xf32>, vector<16x256xf32> -> vector<16x256xf32>
    %426 = vector.broadcast %404 : vector<1x256xi32> to vector<16x256xi32>
    %427 = arith.cmpi eq, %56, %426 : vector<16x256xi32>
    %cst_145 = arith.constant 0.000000e+00 : f32
    %428 = vector.shape_cast %420 : vector<1x256xf32> to vector<1x256xf32>
    %429 = vector.broadcast %428 : vector<1x256xf32> to vector<16x256xf32>
    %430 = vector.broadcast %cst_145 : f32 to vector<16x256xf32>
    %431 = arith.select %427, %429, %430 : vector<16x256xi1>, vector<16x256xf32>
    %432 = arith.mulf %425, %431 : vector<16x256xf32>
    %cst_146 = arith.constant dense<0.000000e+00> : vector<256xf32>
    %433 = vector.multi_reduction <add>, %432, %cst_146 [0] : vector<16x256xf32> to vector<256xf32>
    %434 = vector.shape_cast %433 : vector<256xf32> to vector<1x256xf32>
    %435 = arith.addf %402, %434 : vector<1x256xf32>
    %c1 = arith.constant 1 : index
    %c0_147 = arith.constant 0 : index
    %436 = vector.load %arg10[%c1, %c0_147] : memref<2x256xf32, #tpu.memory_space<vmem>>, vector<1x256xf32>
    tpu.vector_store %arg10[%c1, %c0_147], %435 {strides = array<i32>} : memref<2x256xf32, #tpu.memory_space<vmem>>, vector<1x256xf32>,
    return
  }
}

</mosaic_0001>

<llo_original>
// kernel: stn_forward.1
$region0: #{stn_forward.1}
  #allocation0 [shape = 'u32[]', space=smem, size = 0x4, offset = 0x4, fixed_abs, tag = 'smem constant byte address 0x4 - core index']
  #allocation1 [shape = 'u32[144,128]{1,0:T(1,128)}', space=vmem, size = 0x12000, scoped, tag = 'internal scratch']
  %s0 = inlined_call_operand.vmem [shape: f32[2,256], index: 0, kind: input, shape index: {}]
  %s1 = inlined_call_operand.vmem [shape: f32[32,16], index: 1, kind: input, shape index: {}]
  %s2 = inlined_call_operand.hbm [shape: bf16[256,1024], index: 2, kind: input, shape index: {}]
  %s3 = inlined_call_operand.vmem [shape: f32[1,1024], index: 3, kind: input, shape index: {}]
  %s4 = inlined_call_operand.hbm [shape: bf16[1024,512], index: 4, kind: input, shape index: {}]
  %s5 = inlined_call_operand.vmem [shape: f32[1,512], index: 5, kind: input, shape index: {}]
  %s6 = inlined_call_operand.vmem [shape: bf16[512,64], index: 6, kind: input, shape index: {}]
  %s7 = inlined_call_operand.vmem [shape: f32[1,64], index: 7, kind: input, shape index: {}]
  %s8 = inlined_call_operand.vmem [shape: f32[64,8], index: 8, kind: input, shape index: {}]
  %s9 = inlined_call_operand.vmem [shape: f32[1,8], index: 9, kind: input, shape index: {}]
  %s10 = inlined_call_operand.vmem [shape: f32[2,256], index: 10, kind: output, shape index: {0}]
  %s11 = inlined_call_operand.hbm [shape: f32[2,8], index: 11, kind: output, shape index: {1}]
  %12 = xla_tuple %s10, %s11
  %s13 = sld [smem:[#allocation0]]
  $region66: #{stn_forward.1} parent=0
    _
  %s15 = ssub.s32 1, %s13
  %s16 = scalar_select 0, %s15, %s13
  $region1: #{stn_forward.1} parent=0
    #allocation2 [shape = 'u8[524288]{0}', space=vmem, size = 0x80000, scoped, tag = 'input window, operand 2, single buffered']
    #allocation3 [shape = 's32[1]{0}', space=sflag, size = 0x4, scoped, tag = 'scoped memory for stn_forward.1']
    #allocation4 [shape = 's32[1]{0}', space=sflag, size = 0x4, scoped, tag = 'scoped memory for stn_forward.1']
    #allocation5 [shape = 'u8[1048576]{0}', space=vmem, size = 0x100000, scoped, tag = 'input window, operand 4, single buffered']
    #allocation6 [shape = 's32[1]{0}', space=sflag, size = 0x4, scoped, tag = 'scoped memory for stn_forward.1']
    #allocation7 [shape = 'u8[1024]{0}', space=vmem, size = 0x400, scoped, tag = 'output window, operand 1, single buffered']
    %17 = vsyncpa [#allocation3], 0
    %18 = vsyncpa [#allocation6], 0
    %19 = vsyncpa [#allocation4], 0
    // Predicated region
    $region2: #{stn_forward.1} parent=1 // pred_check
      _
    $region3: #{stn_forward.1} parent=1 // pred_check_branch
      %21 = sbr.rel (0) target = $region5
    $region4: #{stn_forward.1} parent=1 // pred_region
      _
    $region5: #{stn_forward.1} parent=1 // pred_fallthru
      _
    // Predicated region
    $region6: #{stn_forward.1} parent=1 // pred_check
      _
    $region7: #{stn_forward.1} parent=1 // pred_check_branch
      %23 = sbr.rel (0) target = $region9
    $region8: #{stn_forward.1} parent=1 // pred_region
      _
    $region9: #{stn_forward.1} parent=1 // pred_fallthru
      _
    // Predicated region
    $region10: #{stn_forward.1} parent=1 // pred_check
      _
    $region11: #{stn_forward.1} parent=1 // pred_check_branch
      %25 = sbr.rel (0) target = $region13
    $region12: #{stn_forward.1} parent=1 // pred_region
      %s27 = ssub.s32 16384, 16384
      %28 = vsyncadd [#allocation3], %s27
      %s29 = sshll.u32 [#allocation2], 4
      %s30 = int_to_ptr.vmem [resolvable:$true] %s29
      %35 = dma.hbm_to_vmem [thread:$0]  %s2, 16384, %s30, [#allocation3], 512, 512, 32
    $region13: #{stn_forward.1} parent=1 // pred_fallthru
      _
    // Predicated region
    $region14: #{stn_forward.1} parent=1 // pred_check
      _
    $region15: #{stn_forward.1} parent=1 // pred_check_branch
      %37 = sbr.rel (0) target = $region17
    $region16: #{stn_forward.1} parent=1 // pred_region
      _
    $region17: #{stn_forward.1} parent=1 // pred_fallthru
      _
    // Predicated region
    $region18: #{stn_forward.1} parent=1 // pred_check
      _
    $region19: #{stn_forward.1} parent=1 // pred_check_branch
      %39 = sbr.rel (0) target = $region21
    $region20: #{stn_forward.1} parent=1 // pred_region
      %s41 = ssub.s32 32768, 32768
      %42 = vsyncadd [#allocation6], %s41
      %s43 = sshll.u32 [#allocation5], 4
      %s44 = int_to_ptr.vmem [resolvable:$true] %s43
      %49 = dma.hbm_to_vmem [thread:$0]  %s4, 32768, %s44, [#allocation6], 256, 256, 16
    $region21: #{stn_forward.1} parent=1 // pred_fallthru
      _
    // Predicated region
    $region22: #{stn_forward.1} parent=1 // pred_check
      _
    $region23: #{stn_forward.1} parent=1 // pred_check_branch
      %51 = sbr.rel (0) target = $region25
    $region24: #{stn_forward.1} parent=1 // pred_region
      _
    $region25: #{stn_forward.1} parent=1 // pred_fallthru
      _
    // Predicated region
    $region26: #{stn_forward.1} parent=1 // pred_check
      _
    $region27: #{stn_forward.1} parent=1 // pred_check_branch
      %53 = sbr.rel (0) target = $region29
    $region28: #{stn_forward.1} parent=1 // pred_region
      _
    $region29: #{stn_forward.1} parent=1 // pred_fallthru
      _
    // Predicated region
    $region30: #{stn_forward.1} parent=1 // pred_check
      _
    $region31: #{stn_forward.1} parent=1 // pred_check_branch
      %55 = sbr.rel (0) target = $region33
    $region32: #{stn_forward.1} parent=1 // pred_region
      _
    $region33: #{stn_forward.1} parent=1 // pred_fallthru
      _
    // Predicated region
    $region34: #{stn_forward.1} parent=1 // pred_check
      _
    $region35: #{stn_forward.1} parent=1 // pred_check_branch
      %57 = sbr.rel (0) target = $region37
    $region36: #{stn_forward.1} parent=1 // pred_region
      _
    $region37: #{stn_forward.1} parent=1 // pred_fallthru
      _
    // Predicated region
    $region38: #{stn_forward.1} parent=1 // pred_check
      _
    $region39: #{stn_forward.1} parent=1 // pred_check_branch
      %59 = sbr.rel (0) target = $region41
    $region40: #{stn_forward.1} parent=1 // pred_region
      _
    $region41: #{stn_forward.1} parent=1 // pred_fallthru
      _
    // Predicated region
    $region42: #{stn_forward.1} parent=1 // pred_check
      _
    $region43: #{stn_forward.1} parent=1 // pred_check_branch
      %61 = sbr.rel (0) target = $region45
    $region44: #{stn_forward.1} parent=1 // pred_region
      %62 = dma.done [#allocation3], 16384
    $region45: #{stn_forward.1} parent=1 // pred_fallthru
      _
    // Predicated region
    $region46: #{stn_forward.1} parent=1 // pred_check
      _
    $region47: #{stn_forward.1} parent=1 // pred_check_branch
      %64 = sbr.rel (0) target = $region49
    $region48: #{stn_forward.1} parent=1 // pred_region
      %65 = dma.done [#allocation6], 32768
    $region49: #{stn_forward.1} parent=1 // pred_fallthru
      _
    %v67 = vld [vmem:[%s0] sm:$0xf]
    %v70 = vunpack.c.l.s4 1983009808
    %v71 = vunpack.c.0.s8 %v70
    %v72 = vlaneseq
    %v73 = vshrl.u32 %v72, 7
    %v74 = vsub.s32 %v71, %v73
    %v75 = vrot.slane %v67, %v74
    %v76 = vcombine.high %v75, %v75
    %v79 = vpack.c.bf16 %v75, %v75
    %v80 = vpack.c.bf16 %v76, %v76
    %v81 = vld [vmem:[#allocation2] sm:$0xff]
    %v82 = vld [vmem:[#allocation2 + $0x8] sm:$0xff]
    %v83 = vld [vmem:[#allocation2 + $0x10] sm:$0xff]
    %v84 = vld [vmem:[#allocation2 + $0x18] sm:$0xff]
    %v85 = vld [vmem:[#allocation2 + $0x20] sm:$0xff]
    %v86 = vld [vmem:[#allocation2 + $0x28] sm:$0xff]
    %v87 = vld [vmem:[#allocation2 + $0x30] sm:$0xff]
    %v88 = vld [vmem:[#allocation2 + $0x38] sm:$0xff]
    %v89 = vld [vmem:[#allocation2 + $0x40] sm:$0xff]
    %v90 = vld [vmem:[#allocation2 + $0x48] sm:$0xff]
    %v91 = vld [vmem:[#allocation2 + $0x50] sm:$0xff]
    %v92 = vld [vmem:[#allocation2 + $0x58] sm:$0xff]
    %v93 = vld [vmem:[#allocation2 + $0x60] sm:$0xff]
    %v94 = vld [vmem:[#allocation2 + $0x68] sm:$0xff]
    %v95 = vld [vmem:[#allocation2 + $0x70] sm:$0xff]
    %v96 = vld [vmem:[#allocation2 + $0x78] sm:$0xff]
    %v97 = vld [vmem:[#allocation2 + $0x80] sm:$0xff]
    %v98 = vld [vmem:[#allocation2 + $0x88] sm:$0xff]
    %v99 = vld [vmem:[#allocation2 + $0x90] sm:$0xff]
    %v100 = vld [vmem:[#allocation2 + $0x98] sm:$0xff]
    %v101 = vld [vmem:[#allocation2 + $0xa0] sm:$0xff]
    %v102 = vld [vmem:[#allocation2 + $0xa8] sm:$0xff]
    %v103 = vld [vmem:[#allocation2 + $0xb0] sm:$0xff]
    %v104 = vld [vmem:[#allocation2 + $0xb8] sm:$0xff]
    %v105 = vld [vmem:[#allocation2 + $0xc0] sm:$0xff]
    %v106 = vld [vmem:[#allocation2 + $0xc8] sm:$0xff]
    %v107 = vld [vmem:[#allocation2 + $0xd0] sm:$0xff]
    %v108 = vld [vmem:[#allocation2 + $0xd8] sm:$0xff]
    %v109 = vld [vmem:[#allocation2 + $0xe0] sm:$0xff]
    %v110 = vld [vmem:[#allocation2 + $0xe8] sm:$0xff]
    %v111 = vld [vmem:[#allocation2 + $0xf0] sm:$0xff]
    %v112 = vld [vmem:[#allocation2 + $0xf8] sm:$0xff]
    %v113 = vld [vmem:[#allocation2 + $0x100] sm:$0xff]
    %v114 = vld [vmem:[#allocation2 + $0x108] sm:$0xff]
    %v115 = vld [vmem:[#allocation2 + $0x110] sm:$0xff]
    %v116 = vld [vmem:[#allocation2 + $0x118] sm:$0xff]
    %v117 = vld [vmem:[#allocation2 + $0x120] sm:$0xff]
    %v118 = vld [vmem:[#allocation2 + $0x128] sm:$0xff]
    %v119 = vld [vmem:[#allocation2 + $0x130] sm:$0xff]
    %v120 = vld [vmem:[#allocation2 + $0x138] sm:$0xff]
    %v121 = vld [vmem:[#allocation2 + $0x140] sm:$0xff]
    %v122 = vld [vmem:[#allocation2 + $0x148] sm:$0xff]
    %v123 = vld [vmem:[#allocation2 + $0x150] sm:$0xff]
    %v124 = vld [vmem:[#allocation2 + $0x158] sm:$0xff]
    %v125 = vld [vmem:[#allocation2 + $0x160] sm:$0xff]
    %v126 = vld [vmem:[#allocation2 + $0x168] sm:$0xff]
    %v127 = vld [vmem:[#allocation2 + $0x170] sm:$0xff]
    %v128 = vld [vmem:[#allocation2 + $0x178] sm:$0xff]
    %v129 = vld [vmem:[#allocation2 + $0x180] sm:$0xff]
    %v130 = vld [vmem:[#allocation2 + $0x188] sm:$0xff]
    %v131 = vld [vmem:[#allocation2 + $0x190] sm:$0xff]
    %v132 = vld [vmem:[#allocation2 + $0x198] sm:$0xff]
    %v133 = vld [vmem:[#allocation2 + $0x1a0] sm:$0xff]
    %v134 = vld [vmem:[#allocation2 + $0x1a8] sm:$0xff]
    %v135 = vld [vmem:[#allocation2 + $0x1b0] sm:$0xff]
    %v136 = vld [vmem:[#allocation2 + $0x1b8] sm:$0xff]
    %v137 = vld [vmem:[#allocation2 + $0x1c0] sm:$0xff]
    %v138 = vld [vmem:[#allocation2 + $0x1c8] sm:$0xff]
    %v139 = vld [vmem:[#allocation2 + $0x1d0] sm:$0xff]
    %v140 = vld [vmem:[#allocation2 + $0x1d8] sm:$0xff]
    %v141 = vld [vmem:[#allocation2 + $0x1e0] sm:$0xff]
    %v142 = vld [vmem:[#allocation2 + $0x1e8] sm:$0xff]
    %v143 = vld [vmem:[#allocation2 + $0x1f0] sm:$0xff]
    %v144 = vld [vmem:[#allocation2 + $0x1f8] sm:$0xff]
    %v145 = vld [vmem:[#allocation2 + $0x200] sm:$0xff]
    %v146 = vld [vmem:[#allocation2 + $0x208] sm:$0xff]
    %v147 = vld [vmem:[#allocation2 + $0x210] sm:$0xff]
    %v148 = vld [vmem:[#allocation2 + $0x218] sm:$0xff]
    %v149 = vld [vmem:[#allocation2 + $0x220] sm:$0xff]
    %v150 = vld [vmem:[#allocation2 + $0x228] sm:$0xff]
    %v151 = vld [vmem:[#allocation2 + $0x230] sm:$0xff]
    %v152 = vld [vmem:[#allocation2 + $0x238] sm:$0xff]
    %v153 = vld [vmem:[#allocation2 + $0x240] sm:$0xff]
    %v154 = vld [vmem:[#allocation2 + $0x248] sm:$0xff]
    %v155 = vld [vmem:[#allocation2 + $0x250] sm:$0xff]
    %v156 = vld [vmem:[#allocation2 + $0x258] sm:$0xff]
    %v157 = vld [vmem:[#allocation2 + $0x260] sm:$0xff]
    %v158 = vld [vmem:[#allocation2 + $0x268] sm:$0xff]
    %v159 = vld [vmem:[#allocation2 + $0x270] sm:$0xff]
    %v160 = vld [vmem:[#allocation2 + $0x278] sm:$0xff]
    %v161 = vld [vmem:[#allocation2 + $0x280] sm:$0xff]
    %v162 = vld [vmem:[#allocation2 + $0x288] sm:$0xff]
    %v163 = vld [vmem:[#allocation2 + $0x290] sm:$0xff]
    %v164 = vld [vmem:[#allocation2 + $0x298] sm:$0xff]
    %v165 = vld [vmem:[#allocation2 + $0x2a0] sm:$0xff]
    %v166 = vld [vmem:[#allocation2 + $0x2a8] sm:$0xff]
    %v167 = vld [vmem:[#allocation2 + $0x2b0] sm:$0xff]
    %v168 = vld [vmem:[#allocation2 + $0x2b8] sm:$0xff]
    %v169 = vld [vmem:[#allocation2 + $0x2c0] sm:$0xff]
    %v170 = vld [vmem:[#allocation2 + $0x2c8] sm:$0xff]
    %v171 = vld [vmem:[#allocation2 + $0x2d0] sm:$0xff]
    %v172 = vld [vmem:[#allocation2 + $0x2d8] sm:$0xff]
    %v173 = vld [vmem:[#allocation2 + $0x2e0] sm:$0xff]
    %v174 = vld [vmem:[#allocation2 + $0x2e8] sm:$0xff]
    %v175 = vld [vmem:[#allocation2 + $0x2f0] sm:$0xff]
    %v176 = vld [vmem:[#allocation2 + $0x2f8] sm:$0xff]
    %v177 = vld [vmem:[#allocation2 + $0x300] sm:$0xff]
    %v178 = vld [vmem:[#allocation2 + $0x308] sm:$0xff]
    %v179 = vld [vmem:[#allocation2 + $0x310] sm:$0xff]
    %v180 = vld [vmem:[#allocation2 + $0x318] sm:$0xff]
    %v181 = vld [vmem:[#allocation2 + $0x320] sm:$0xff]
    %v182 = vld [vmem:[#allocation2 + $0x328] sm:$0xff]
    %v183 = vld [vmem:[#allocation2 + $0x330] sm:$0xff]
    %v184 = vld [vmem:[#allocation2 + $0x338] sm:$0xff]
    %v185 = vld [vmem:[#allocation2 + $0x340] sm:$0xff]
    %v186 = vld [vmem:[#allocation2 + $0x348] sm:$0xff]
    %v187 = vld [vmem:[#allocation2 + $0x350] sm:$0xff]
    %v188 = vld [vmem:[#allocation2 + $0x358] sm:$0xff]
    %v189 = vld [vmem:[#allocation2 + $0x360] sm:$0xff]
    %v190 = vld [vmem:[#allocation2 + $0x368] sm:$0xff]
    %v191 = vld [vmem:[#allocation2 + $0x370] sm:$0xff]
    %v192 = vld [vmem:[#allocation2 + $0x378] sm:$0xff]
    %v193 = vld [vmem:[#allocation2 + $0x380] sm:$0xff]
    %v194 = vld [vmem:[#allocation2 + $0x388] sm:$0xff]
    %v195 = vld [vmem:[#allocation2 + $0x390] sm:$0xff]
    %v196 = vld [vmem:[#allocation2 + $0x398] sm:$0xff]
    %v197 = vld [vmem:[#allocation2 + $0x3a0] sm:$0xff]
    %v198 = vld [vmem:[#allocation2 + $0x3a8] sm:$0xff]
    %v199 = vld [vmem:[#allocation2 + $0x3b0] sm:$0xff]
    %v200 = vld [vmem:[#allocation2 + $0x3b8] sm:$0xff]
    %v201 = vld [vmem:[#allocation2 + $0x3c0] sm:$0xff]
    %v202 = vld [vmem:[#allocation2 + $0x3c8] sm:$0xff]
    %v203 = vld [vmem:[#allocation2 + $0x3d0] sm:$0xff]
    %v204 = vld [vmem:[#allocation2 + $0x3d8] sm:$0xff]
    %v205 = vld [vmem:[#allocation2 + $0x3e0] sm:$0xff]
    %v206 = vld [vmem:[#allocation2 + $0x3e8] sm:$0xff]
    %v207 = vld [vmem:[#allocation2 + $0x3f0] sm:$0xff]
    %v208 = vld [vmem:[#allocation2 + $0x3f8] sm:$0xff]
    %v209 = vld [vmem:[%s3] sm:$0xff]
    %v211 = vlaneseq
    %v212 = vshrl.u32 %v211, 7
    %v213 = vsub.s32 0, %v212
    %v214 = vrot.slane %v209, %v213
    %v215 = vlaneseq
    %v216 = vshrl.u32 %v215, 7
    %v217 = vsub.s32 1, %v216
    %v218 = vrot.slane %v209, %v217
    %v219 = vlaneseq
    %v220 = vshrl.u32 %v219, 7
    %v221 = vsub.s32 2, %v220
    %v222 = vrot.slane %v209, %v221
    %v223 = vlaneseq
    %v224 = vshrl.u32 %v223, 7
    %v225 = vsub.s32 3, %v224
    %v226 = vrot.slane %v209, %v225
    %v227 = vlaneseq
    %v228 = vshrl.u32 %v227, 7
    %v229 = vsub.s32 4, %v228
    %v230 = vrot.slane %v209, %v229
    %v231 = vlaneseq
    %v232 = vshrl.u32 %v231, 7
    %v233 = vsub.s32 5, %v232
    %v234 = vrot.slane %v209, %v233
    %v235 = vlaneseq
    %v236 = vshrl.u32 %v235, 7
    %v237 = vsub.s32 6, %v236
    %v238 = vrot.slane %v209, %v237
    %v239 = vlaneseq
    %v240 = vshrl.u32 %v239, 7
    %v241 = vsub.s32 7, %v240
    %v242 = vrot.slane %v209, %v241
    %v379 = vunpack.c.l.b16 %v81
    %v380 = vunpack.c.h.b16 %v81
    %v381 = vunpack.c.l.b16 %v82
    %v382 = vunpack.c.h.b16 %v82
    %v383 = vunpack.c.l.b16 %v83
    %v384 = vunpack.c.h.b16 %v83
    %v385 = vunpack.c.l.b16 %v84
    %v386 = vunpack.c.h.b16 %v84
    %v387 = vunpack.c.l.b16 %v85
    %v388 = vunpack.c.h.b16 %v85
    %v389 = vunpack.c.l.b16 %v86
    %v390 = vunpack.c.h.b16 %v86
    %v391 = vunpack.c.l.b16 %v87
    %v392 = vunpack.c.h.b16 %v87
    %v393 = vunpack.c.l.b16 %v88
    %v394 = vunpack.c.h.b16 %v88
    %v395 = vunpack.c.l.b16 %v89
    %v396 = vunpack.c.h.b16 %v89
    %v397 = vunpack.c.l.b16 %v90
    %v398 = vunpack.c.h.b16 %v90
    %v399 = vunpack.c.l.b16 %v91
    %v400 = vunpack.c.h.b16 %v91
    %v401 = vunpack.c.l.b16 %v92
    %v402 = vunpack.c.h.b16 %v92
    %v403 = vunpack.c.l.b16 %v93
    %v404 = vunpack.c.h.b16 %v93
    %v405 = vunpack.c.l.b16 %v94
    %v406 = vunpack.c.h.b16 %v94
    %v407 = vunpack.c.l.b16 %v95
    %v408 = vunpack.c.h.b16 %v95
    %v409 = vunpack.c.l.b16 %v96
    %v410 = vunpack.c.h.b16 %v96
    %v411 = vunpack.c.l.b16 %v97
    %v412 = vunpack.c.h.b16 %v97
    %v413 = vunpack.c.l.b16 %v98
    %v414 = vunpack.c.h.b16 %v98
    %v415 = vunpack.c.l.b16 %v99
    %v416 = vunpack.c.h.b16 %v99
    %v417 = vunpack.c.l.b16 %v100
    %v418 = vunpack.c.h.b16 %v100
    %v419 = vunpack.c.l.b16 %v101
    %v420 = vunpack.c.h.b16 %v101
    %v421 = vunpack.c.l.b16 %v102
    %v422 = vunpack.c.h.b16 %v102
    %v423 = vunpack.c.l.b16 %v103
    %v424 = vunpack.c.h.b16 %v103
    %v425 = vunpack.c.l.b16 %v104
    %v426 = vunpack.c.h.b16 %v104
    %v427 = vunpack.c.l.b16 %v105
    %v428 = vunpack.c.h.b16 %v105
    %v429 = vunpack.c.l.b16 %v106
    %v430 = vunpack.c.h.b16 %v106
    %v431 = vunpack.c.l.b16 %v107
    %v432 = vunpack.c.h.b16 %v107
    %v433 = vunpack.c.l.b16 %v108
    %v434 = vunpack.c.h.b16 %v108
    %v435 = vunpack.c.l.b16 %v109
    %v436 = vunpack.c.h.b16 %v109
    %v437 = vunpack.c.l.b16 %v110
    %v438 = vunpack.c.h.b16 %v110
    %v439 = vunpack.c.l.b16 %v111
    %v440 = vunpack.c.h.b16 %v111
    %v441 = vunpack.c.l.b16 %v112
    %v442 = vunpack.c.h.b16 %v112
    %v443 = vunpack.c.l.b16 %v113
    %v444 = vunpack.c.h.b16 %v113
    %v445 = vunpack.c.l.b16 %v114
    %v446 = vunpack.c.h.b16 %v114
    %v447 = vunpack.c.l.b16 %v115
    %v448 = vunpack.c.h.b16 %v115
    %v449 = vunpack.c.l.b16 %v116
    %v450 = vunpack.c.h.b16 %v116
    %v451 = vunpack.c.l.b16 %v117
    %v452 = vunpack.c.h.b16 %v117
    %v453 = vunpack.c.l.b16 %v118
    %v454 = vunpack.c.h.b16 %v118
    %v455 = vunpack.c.l.b16 %v119
    %v456 = vunpack.c.h.b16 %v119
    %v457 = vunpack.c.l.b16 %v120
    %v458 = vunpack.c.h.b16 %v120
    %v459 = vunpack.c.l.b16 %v121
    %v460 = vunpack.c.h.b16 %v121
    %v461 = vunpack.c.l.b16 %v122
    %v462 = vunpack.c.h.b16 %v122
    %v463 = vunpack.c.l.b16 %v123
    %v464 = vunpack.c.h.b16 %v123
    %v465 = vunpack.c.l.b16 %v124
    %v466 = vunpack.c.h.b16 %v124
    %v467 = vunpack.c.l.b16 %v125
    %v468 = vunpack.c.h.b16 %v125
    %v469 = vunpack.c.l.b16 %v126
    %v470 = vunpack.c.h.b16 %v126
    %v471 = vunpack.c.l.b16 %v127
    %v472 = vunpack.c.h.b16 %v127
    %v473 = vunpack.c.l.b16 %v128
    %v474 = vunpack.c.h.b16 %v128
    %v475 = vunpack.c.l.b16 %v129
    %v476 = vunpack.c.h.b16 %v129
    %v477 = vunpack.c.l.b16 %v130
    %v478 = vunpack.c.h.b16 %v130
    %v479 = vunpack.c.l.b16 %v131
    %v480 = vunpack.c.h.b16 %v131
    %v481 = vunpack.c.l.b16 %v132
    %v482 = vunpack.c.h.b16 %v132
    %v483 = vunpack.c.l.b16 %v133
    %v484 = vunpack.c.h.b16 %v133
    %v485 = vunpack.c.l.b16 %v134
    %v486 = vunpack.c.h.b16 %v134
    %v487 = vunpack.c.l.b16 %v135
    %v488 = vunpack.c.h.b16 %v135
    %v489 = vunpack.c.l.b16 %v136
    %v490 = vunpack.c.h.b16 %v136
    %v491 = vunpack.c.l.b16 %v137
    %v492 = vunpack.c.h.b16 %v137
    %v493 = vunpack.c.l.b16 %v138
    %v494 = vunpack.c.h.b16 %v138
    %v495 = vunpack.c.l.b16 %v139
    %v496 = vunpack.c.h.b16 %v139
    %v497 = vunpack.c.l.b16 %v140
    %v498 = vunpack.c.h.b16 %v140
    %v499 = vunpack.c.l.b16 %v141
    %v500 = vunpack.c.h.b16 %v141
    %v501 = vunpack.c.l.b16 %v142
    %v502 = vunpack.c.h.b16 %v142
    %v503 = vunpack.c.l.b16 %v143
    %v504 = vunpack.c.h.b16 %v143
    %v505 = vunpack.c.l.b16 %v144
    %v506 = vunpack.c.h.b16 %v144
    %v507 = vunpack.c.l.b16 %v145
    %v508 = vunpack.c.h.b16 %v145
    %v509 = vunpack.c.l.b16 %v146
    %v510 = vunpack.c.h.b16 %v146
    %v511 = vunpack.c.l.b16 %v147
    %v512 = vunpack.c.h.b16 %v147
    %v513 = vunpack.c.l.b16 %v148
    %v514 = vunpack.c.h.b16 %v148
    %v515 = vunpack.c.l.b16 %v149
    %v516 = vunpack.c.h.b16 %v149
    %v517 = vunpack.c.l.b16 %v150
    %v518 = vunpack.c.h.b16 %v150
    %v519 = vunpack.c.l.b16 %v151
    %v520 = vunpack.c.h.b16 %v151
    %v521 = vunpack.c.l.b16 %v152
    %v522 = vunpack.c.h.b16 %v152
    %v523 = vunpack.c.l.b16 %v153
    %v524 = vunpack.c.h.b16 %v153
    %v525 = vunpack.c.l.b16 %v154
    %v526 = vunpack.c.h.b16 %v154
    %v527 = vunpack.c.l.b16 %v155
    %v528 = vunpack.c.h.b16 %v155
    %v529 = vunpack.c.l.b16 %v156
    %v530 = vunpack.c.h.b16 %v156
    %v531 = vunpack.c.l.b16 %v157
    %v532 = vunpack.c.h.b16 %v157
    %v533 = vunpack.c.l.b16 %v158
    %v534 = vunpack.c.h.b16 %v158
    %v535 = vunpack.c.l.b16 %v159
    %v536 = vunpack.c.h.b16 %v159
    %v537 = vunpack.c.l.b16 %v160
    %v538 = vunpack.c.h.b16 %v160
    %v539 = vunpack.c.l.b16 %v161
    %v540 = vunpack.c.h.b16 %v161
    %v541 = vunpack.c.l.b16 %v162
    %v542 = vunpack.c.h.b16 %v162
    %v543 = vunpack.c.l.b16 %v163
    %v544 = vunpack.c.h.b16 %v163
    %v545 = vunpack.c.l.b16 %v164
    %v546 = vunpack.c.h.b16 %v164
    %v547 = vunpack.c.l.b16 %v165
    %v548 = vunpack.c.h.b16 %v165
    %v549 = vunpack.c.l.b16 %v166
    %v550 = vunpack.c.h.b16 %v166
    %v551 = vunpack.c.l.b16 %v167
    %v552 = vunpack.c.h.b16 %v167
    %v553 = vunpack.c.l.b16 %v168
    %v554 = vunpack.c.h.b16 %v168
    %v555 = vunpack.c.l.b16 %v169
    %v556 = vunpack.c.h.b16 %v169
    %v557 = vunpack.c.l.b16 %v170
    %v558 = vunpack.c.h.b16 %v170
    %v559 = vunpack.c.l.b16 %v171
    %v560 = vunpack.c.h.b16 %v171
    %v561 = vunpack.c.l.b16 %v172
    %v562 = vunpack.c.h.b16 %v172
    %v563 = vunpack.c.l.b16 %v173
    %v564 = vunpack.c.h.b16 %v173
    %v565 = vunpack.c.l.b16 %v174
    %v566 = vunpack.c.h.b16 %v174
    %v567 = vunpack.c.l.b16 %v175
    %v568 = vunpack.c.h.b16 %v175
    %v569 = vunpack.c.l.b16 %v176
    %v570 = vunpack.c.h.b16 %v176
    %v571 = vunpack.c.l.b16 %v177
    %v572 = vunpack.c.h.b16 %v177
    %v573 = vunpack.c.l.b16 %v178
    %v574 = vunpack.c.h.b16 %v178
    %v575 = vunpack.c.l.b16 %v179
    %v576 = vunpack.c.h.b16 %v179
    %v577 = vunpack.c.l.b16 %v180
    %v578 = vunpack.c.h.b16 %v180
    %v579 = vunpack.c.l.b16 %v181
    %v580 = vunpack.c.h.b16 %v181
    %v581 = vunpack.c.l.b16 %v182
    %v582 = vunpack.c.h.b16 %v182
    %v583 = vunpack.c.l.b16 %v183
    %v584 = vunpack.c.h.b16 %v183
    %v585 = vunpack.c.l.b16 %v184
    %v586 = vunpack.c.h.b16 %v184
    %v587 = vunpack.c.l.b16 %v185
    %v588 = vunpack.c.h.b16 %v185
    %v589 = vunpack.c.l.b16 %v186
    %v590 = vunpack.c.h.b16 %v186
    %v591 = vunpack.c.l.b16 %v187
    %v592 = vunpack.c.h.b16 %v187
    %v593 = vunpack.c.l.b16 %v188
    %v594 = vunpack.c.h.b16 %v188
    %v595 = vunpack.c.l.b16 %v189
    %v596 = vunpack.c.h.b16 %v189
    %v597 = vunpack.c.l.b16 %v190
    %v598 = vunpack.c.h.b16 %v190
    %v599 = vunpack.c.l.b16 %v191
    %v600 = vunpack.c.h.b16 %v191
    %v601 = vunpack.c.l.b16 %v192
    %v602 = vunpack.c.h.b16 %v192
    %v603 = vunpack.c.l.b16 %v193
    %v604 = vunpack.c.h.b16 %v193
    %v605 = vunpack.c.l.b16 %v194
    %v606 = vunpack.c.h.b16 %v194
    %v607 = vunpack.c.l.b16 %v195
    %v608 = vunpack.c.h.b16 %v195
    %v609 = vunpack.c.l.b16 %v196
    %v610 = vunpack.c.h.b16 %v196
    %v611 = vunpack.c.l.b16 %v197
    %v612 = vunpack.c.h.b16 %v197
    %v613 = vunpack.c.l.b16 %v198
    %v614 = vunpack.c.h.b16 %v198
    %v615 = vunpack.c.l.b16 %v199
    %v616 = vunpack.c.h.b16 %v199
    %v617 = vunpack.c.l.b16 %v200
    %v618 = vunpack.c.h.b16 %v200
    %v619 = vunpack.c.l.b16 %v201
    %v620 = vunpack.c.h.b16 %v201
    %v621 = vunpack.c.l.b16 %v202
    %v622 = vunpack.c.h.b16 %v202
    %v623 = vunpack.c.l.b16 %v203
    %v624 = vunpack.c.h.b16 %v203
    %v625 = vunpack.c.l.b16 %v204
    %v626 = vunpack.c.h.b16 %v204
    %v627 = vunpack.c.l.b16 %v205
    %v628 = vunpack.c.h.b16 %v205
    %v629 = vunpack.c.l.b16 %v206
    %v630 = vunpack.c.h.b16 %v206
    %v631 = vunpack.c.l.b16 %v207
    %v632 = vunpack.c.h.b16 %v207
    %v633 = vunpack.c.l.b16 %v208
    %v634 = vunpack.c.h.b16 %v208
    %v635 = vpack.c.b16 %v387, %v379
    %v636 = vpack.c.b16 %v388, %v380
    %v637 = vpack.c.b16 %v389, %v381
    %v638 = vpack.c.b16 %v390, %v382
    %v639 = vpack.c.b16 %v391, %v383
    %v640 = vpack.c.b16 %v392, %v384
    %v641 = vpack.c.b16 %v393, %v385
    %v642 = vpack.c.b16 %v394, %v386
    %v643 = vpack.c.b16 %v403, %v395
    %v644 = vpack.c.b16 %v404, %v396
    %v645 = vpack.c.b16 %v405, %v397
    %v646 = vpack.c.b16 %v406, %v398
    %v647 = vpack.c.b16 %v407, %v399
    %v648 = vpack.c.b16 %v408, %v400
    %v649 = vpack.c.b16 %v409, %v401
    %v650 = vpack.c.b16 %v410, %v402
    %v651 = vpack.c.b16 %v419, %v411
    %v652 = vpack.c.b16 %v420, %v412
    %v653 = vpack.c.b16 %v421, %v413
    %v654 = vpack.c.b16 %v422, %v414
    %v655 = vpack.c.b16 %v423, %v415
    %v656 = vpack.c.b16 %v424, %v416
    %v657 = vpack.c.b16 %v425, %v417
    %v658 = vpack.c.b16 %v426, %v418
    %v659 = vpack.c.b16 %v435, %v427
    %v660 = vpack.c.b16 %v436, %v428
    %v661 = vpack.c.b16 %v437, %v429
    %v662 = vpack.c.b16 %v438, %v430
    %v663 = vpack.c.b16 %v439, %v431
    %v664 = vpack.c.b16 %v440, %v432
    %v665 = vpack.c.b16 %v441, %v433
    %v666 = vpack.c.b16 %v442, %v434
    %v667 = vpack.c.b16 %v451, %v443
    %v668 = vpack.c.b16 %v452, %v444
    %v669 = vpack.c.b16 %v453, %v445
    %v670 = vpack.c.b16 %v454, %v446
    %v671 = vpack.c.b16 %v455, %v447
    %v672 = vpack.c.b16 %v456, %v448
    %v673 = vpack.c.b16 %v457, %v449
    %v674 = vpack.c.b16 %v458, %v450
    %v675 = vpack.c.b16 %v467, %v459
    %v676 = vpack.c.b16 %v468, %v460
    %v677 = vpack.c.b16 %v469, %v461
    %v678 = vpack.c.b16 %v470, %v462
    %v679 = vpack.c.b16 %v471, %v463
    %v680 = vpack.c.b16 %v472, %v464
    %v681 = vpack.c.b16 %v473, %v465
    %v682 = vpack.c.b16 %v474, %v466
    %v683 = vpack.c.b16 %v483, %v475
    %v684 = vpack.c.b16 %v484, %v476
    %v685 = vpack.c.b16 %v485, %v477
    %v686 = vpack.c.b16 %v486, %v478
    %v687 = vpack.c.b16 %v487, %v479
    %v688 = vpack.c.b16 %v488, %v480
    %v689 = vpack.c.b16 %v489, %v481
    %v690 = vpack.c.b16 %v490, %v482
    %v691 = vpack.c.b16 %v499, %v491
    %v692 = vpack.c.b16 %v500, %v492
    %v693 = vpack.c.b16 %v501, %v493
    %v694 = vpack.c.b16 %v502, %v494
    %v695 = vpack.c.b16 %v503, %v495
    %v696 = vpack.c.b16 %v504, %v496
    %v697 = vpack.c.b16 %v505, %v497
    %v698 = vpack.c.b16 %v506, %v498
    %v699 = vpack.c.b16 %v515, %v507
    %v700 = vpack.c.b16 %v516, %v508
    %v701 = vpack.c.b16 %v517, %v509
    %v702 = vpack.c.b16 %v518, %v510
    %v703 = vpack.c.b16 %v519, %v511
    %v704 = vpack.c.b16 %v520, %v512
    %v705 = vpack.c.b16 %v521, %v513
    %v706 = vpack.c.b16 %v522, %v514
    %v707 = vpack.c.b16 %v531, %v523
    %v708 = vpack.c.b16 %v532, %v524
    %v709 = vpack.c.b16 %v533, %v525
    %v710 = vpack.c.b16 %v534, %v526
    %v711 = vpack.c.b16 %v535, %v527
    %v712 = vpack.c.b16 %v536, %v528
    %v713 = vpack.c.b16 %v537, %v529
    %v714 = vpack.c.b16 %v538, %v530
    %v715 = vpack.c.b16 %v547, %v539
    %v716 = vpack.c.b16 %v548, %v540
    %v717 = vpack.c.b16 %v549, %v541
    %v718 = vpack.c.b16 %v550, %v542
    %v719 = vpack.c.b16 %v551, %v543
    %v720 = vpack.c.b16 %v552, %v544
    %v721 = vpack.c.b16 %v553, %v545
    %v722 = vpack.c.b16 %v554, %v546
    %v723 = vpack.c.b16 %v563, %v555
    %v724 = vpack.c.b16 %v564, %v556
    %v725 = vpack.c.b16 %v565, %v557
    %v726 = vpack.c.b16 %v566, %v558
    %v727 = vpack.c.b16 %v567, %v559
    %v728 = vpack.c.b16 %v568, %v560
    %v729 = vpack.c.b16 %v569, %v561
    %v730 = vpack.c.b16 %v570, %v562
    %v731 = vpack.c.b16 %v579, %v571
    %v732 = vpack.c.b16 %v580, %v572
    %v733 = vpack.c.b16 %v581, %v573
    %v734 = vpack.c.b16 %v582, %v574
    %v735 = vpack.c.b16 %v583, %v575
    %v736 = vpack.c.b16 %v584, %v576
    %v737 = vpack.c.b16 %v585, %v577
    %v738 = vpack.c.b16 %v586, %v578
    %v739 = vpack.c.b16 %v595, %v587
    %v740 = vpack.c.b16 %v596, %v588
    %v741 = vpack.c.b16 %v597, %v589
    %v742 = vpack.c.b16 %v598, %v590
    %v743 = vpack.c.b16 %v599, %v591
    %v744 = vpack.c.b16 %v600, %v592
    %v745 = vpack.c.b16 %v601, %v593
    %v746 = vpack.c.b16 %v602, %v594
    %v747 = vpack.c.b16 %v611, %v603
    %v748 = vpack.c.b16 %v612, %v604
    %v749 = vpack.c.b16 %v613, %v605
    %v750 = vpack.c.b16 %v614, %v606
    %v751 = vpack.c.b16 %v615, %v607
    %v752 = vpack.c.b16 %v616, %v608
    %v753 = vpack.c.b16 %v617, %v609
    %v754 = vpack.c.b16 %v618, %v610
    %v755 = vpack.c.b16 %v627, %v619
    %v756 = vpack.c.b16 %v628, %v620
    %v757 = vpack.c.b16 %v629, %v621
    %v758 = vpack.c.b16 %v630, %v622
    %v759 = vpack.c.b16 %v631, %v623
    %v760 = vpack.c.b16 %v632, %v624
    %v761 = vpack.c.b16 %v633, %v625
    %v762 = vpack.c.b16 %v634, %v626
    %891 = vmatprep.subr.bf16.mxu0 %v636
    %892 = vmatpush1.bf16.msra.mxu0 %v635
    %893 = vmatprep.subr.bf16.mxu0 %v644
    %894 = vmatpush1.bf16.msra.mxu0 %v643
    %895 = vmatprep.subr.bf16.mxu0 %v652
    %896 = vmatpush1.bf16.msra.mxu0 %v651
    %897 = vmatprep.subr.bf16.mxu0 %v660
    %898 = vmatpush1.bf16.msra.mxu0 %v659
    %899 = vmatprep.subr.bf16.mxu0 %v668
    %900 = vmatpush1.bf16.msra.mxu0 %v667
    %901 = vmatprep.subr.bf16.mxu0 %v676
    %902 = vmatpush1.bf16.msra.mxu0 %v675
    %903 = vmatprep.subr.bf16.mxu0 %v684
    %904 = vmatpush1.bf16.msra.mxu0 %v683
    %905 = vmatprep.subr.bf16.mxu0 %v692
    %906 = vmatpush1.bf16.msra.mxu0 %v691
    %907 = vmatprep.subr.bf16.mxu0 %v700
    %908 = vmatpush1.bf16.msra.mxu0 %v699
    %909 = vmatprep.subr.bf16.mxu0 %v708
    %910 = vmatpush1.bf16.msra.mxu0 %v707
    %911 = vmatprep.subr.bf16.mxu0 %v716
    %912 = vmatpush1.bf16.msra.mxu0 %v715
    %913 = vmatprep.subr.bf16.mxu0 %v724
    %914 = vmatpush1.bf16.msra.mxu0 %v723
    %915 = vmatprep.subr.bf16.mxu0 %v732
    %916 = vmatpush1.bf16.msra.mxu0 %v731
    %917 = vmatprep.subr.bf16.mxu0 %v740
    %918 = vmatpush1.bf16.msra.mxu0 %v739
    %919 = vmatprep.subr.bf16.mxu0 %v748
    %920 = vmatpush1.bf16.msra.mxu0 %v747
    %921 = vmatprep.subr.bf16.mxu0 %v756
    %922 = vmatpush1.bf16.msra.mxu0 %v755
    %923 = vmatprep.mubr.bf16.mxu0 %v80
    %924 = vmatmul.mubr.bf16.gmra.mrb[0].mxu0 %v79
    %v925 = vpop.f32.mrb[0].mxu0
    %v926 = vadd.f32 %v214, %v925
    %v927 = vpop.f32.mrb[0].mxu0
    %v928 = vadd.f32 %v218, %v927
    %v929 = vpop.f32.mrb[0].mxu0
    %v930 = vpop.f32.mrb[0].mxu0
    %931 = vdwg.mxu0
    %932 = vmatprep.subr.bf16.mxu0 %v638
    %933 = vmatpush1.bf16.msra.mxu0 %v637
    %934 = vmatprep.subr.bf16.mxu0 %v646
    %935 = vmatpush1.bf16.msra.mxu0 %v645
    %936 = vmatprep.subr.bf16.mxu0 %v654
    %937 = vmatpush1.bf16.msra.mxu0 %v653
    %938 = vmatprep.subr.bf16.mxu0 %v662
    %939 = vmatpush1.bf16.msra.mxu0 %v661
    %940 = vmatprep.subr.bf16.mxu0 %v670
    %941 = vmatpush1.bf16.msra.mxu0 %v669
    %942 = vmatprep.subr.bf16.mxu0 %v678
    %943 = vmatpush1.bf16.msra.mxu0 %v677
    %944 = vmatprep.subr.bf16.mxu0 %v686
    %945 = vmatpush1.bf16.msra.mxu0 %v685
    %946 = vmatprep.subr.bf16.mxu0 %v694
    %947 = vmatpush1.bf16.msra.mxu0 %v693
    %948 = vmatprep.subr.bf16.mxu0 %v702
    %949 = vmatpush1.bf16.msra.mxu0 %v701
    %950 = vmatprep.subr.bf16.mxu0 %v710
    %951 = vmatpush1.bf16.msra.mxu0 %v709
    %952 = vmatprep.subr.bf16.mxu0 %v718
    %953 = vmatpush1.bf16.msra.mxu0 %v717
    %954 = vmatprep.subr.bf16.mxu0 %v726
    %955 = vmatpush1.bf16.msra.mxu0 %v725
    %956 = vmatprep.subr.bf16.mxu0 %v734
    %957 = vmatpush1.bf16.msra.mxu0 %v733
    %958 = vmatprep.subr.bf16.mxu0 %v742
    %959 = vmatpush1.bf16.msra.mxu0 %v741
    %960 = vmatprep.subr.bf16.mxu0 %v750
    %961 = vmatpush1.bf16.msra.mxu0 %v749
    %962 = vmatprep.subr.bf16.mxu0 %v758
    %963 = vmatpush1.bf16.msra.mxu0 %v757
    %964 = vmatprep.mubr.bf16.mxu0 %v80
    %965 = vmatmul.mubr.bf16.gmra.mrb[0].mxu0 %v79
    %v966 = vpop.f32.mrb[0].mxu0
    %v967 = vadd.f32 %v222, %v966
    %v968 = vpop.f32.mrb[0].mxu0
    %v969 = vadd.f32 %v226, %v968
    %v970 = vpop.f32.mrb[0].mxu0
    %v971 = vpop.f32.mrb[0].mxu0
    %972 = vdwg.mxu0
    %973 = vmatprep.subr.bf16.mxu0 %v640
    %974 = vmatpush1.bf16.msra.mxu0 %v639
    %975 = vmatprep.subr.bf16.mxu0 %v648
    %976 = vmatpush1.bf16.msra.mxu0 %v647
    %977 = vmatprep.subr.bf16.mxu0 %v656
    %978 = vmatpush1.bf16.msra.mxu0 %v655
    %979 = vmatprep.subr.bf16.mxu0 %v664
    %980 = vmatpush1.bf16.msra.mxu0 %v663
    %981 = vmatprep.subr.bf16.mxu0 %v672
    %982 = vmatpush1.bf16.msra.mxu0 %v671
    %983 = vmatprep.subr.bf16.mxu0 %v680
    %984 = vmatpush1.bf16.msra.mxu0 %v679
    %985 = vmatprep.subr.bf16.mxu0 %v688
    %986 = vmatpush1.bf16.msra.mxu0 %v687
    %987 = vmatprep.subr.bf16.mxu0 %v696
    %988 = vmatpush1.bf16.msra.mxu0 %v695
    %989 = vmatprep.subr.bf16.mxu0 %v704
    %990 = vmatpush1.bf16.msra.mxu0 %v703
    %991 = vmatprep.subr.bf16.mxu0 %v712
    %992 = vmatpush1.bf16.msra.mxu0 %v711
    %993 = vmatprep.subr.bf16.mxu0 %v720
    %994 = vmatpush1.bf16.msra.mxu0 %v719
    %995 = vmatprep.subr.bf16.mxu0 %v728
    %996 = vmatpush1.bf16.msra.mxu0 %v727
    %997 = vmatprep.subr.bf16.mxu0 %v736
    %998 = vmatpush1.bf16.msra.mxu0 %v735
    %999 = vmatprep.subr.bf16.mxu0 %v744
    %1000 = vmatpush1.bf16.msra.mxu0 %v743
    %1001 = vmatprep.subr.bf16.mxu0 %v752
    %1002 = vmatpush1.bf16.msra.mxu0 %v751
    %1003 = vmatprep.subr.bf16.mxu0 %v760
    %1004 = vmatpush1.bf16.msra.mxu0 %v759
    %1005 = vmatprep.mubr.bf16.mxu0 %v80
    %1006 = vmatmul.mubr.bf16.gmra.mrb[0].mxu0 %v79
    %v1007 = vpop.f32.mrb[0].mxu0
    %v1008 = vadd.f32 %v230, %v1007
    %v1009 = vpop.f32.mrb[0].mxu0
    %v1010 = vadd.f32 %v234, %v1009
    %v1011 = vpop.f32.mrb[0].mxu0
    %v1012 = vpop.f32.mrb[0].mxu0
    %1013 = vdwg.mxu0
    %1014 = vmatprep.subr.bf16.mxu0 %v642
    %1015 = vmatpush1.bf16.msra.mxu0 %v641
    %1016 = vmatprep.subr.bf16.mxu0 %v650
    %1017 = vmatpush1.bf16.msra.mxu0 %v649
    %1018 = vmatprep.subr.bf16.mxu0 %v658
    %1019 = vmatpush1.bf16.msra.mxu0 %v657
    %1020 = vmatprep.subr.bf16.mxu0 %v666
    %1021 = vmatpush1.bf16.msra.mxu0 %v665
    %1022 = vmatprep.subr.bf16.mxu0 %v674
    %1023 = vmatpush1.bf16.msra.mxu0 %v673
    %1024 = vmatprep.subr.bf16.mxu0 %v682
    %1025 = vmatpush1.bf16.msra.mxu0 %v681
    %1026 = vmatprep.subr.bf16.mxu0 %v690
    %1027 = vmatpush1.bf16.msra.mxu0 %v689
    %1028 = vmatprep.subr.bf16.mxu0 %v698
    %1029 = vmatpush1.bf16.msra.mxu0 %v697
    %1030 = vmatprep.subr.bf16.mxu0 %v706
    %1031 = vmatpush1.bf16.msra.mxu0 %v705
    %1032 = vmatprep.subr.bf16.mxu0 %v714
    %1033 = vmatpush1.bf16.msra.mxu0 %v713
    %1034 = vmatprep.subr.bf16.mxu0 %v722
    %1035 = vmatpush1.bf16.msra.mxu0 %v721
    %1036 = vmatprep.subr.bf16.mxu0 %v730
    %1037 = vmatpush1.bf16.msra.mxu0 %v729
    %1038 = vmatprep.subr.bf16.mxu0 %v738
    %1039 = vmatpush1.bf16.msra.mxu0 %v737
    %1040 = vmatprep.subr.bf16.mxu0 %v746
    %1041 = vmatpush1.bf16.msra.mxu0 %v745
    %1042 = vmatprep.subr.bf16.mxu0 %v754
    %1043 = vmatpush1.bf16.msra.mxu0 %v753
    %1044 = vmatprep.subr.bf16.mxu0 %v762
    %1045 = vmatpush1.bf16.msra.mxu0 %v761
    %1046 = vmatprep.mubr.bf16.mxu0 %v80
    %1047 = vmatmul.mubr.bf16.gmra.mrb[0].mxu0 %v79
    %v1048 = vpop.f32.mrb[0].mxu0
    %v1049 = vadd.f32 %v238, %v1048
    %v1050 = vpop.f32.mrb[0].mxu0
    %v1051 = vadd.f32 %v242, %v1050
    %v1052 = vpop.f32.mrb[0].mxu0
    %v1053 = vpop.f32.mrb[0].mxu0
    %1054 = vdwg.mxu0
    %v1055 = vmax.f32 %v926, 0.0
    %v1056 = vmax.f32 %v928, 0.0
    %v1057 = vmax.f32 %v967, 0.0
    %v1058 = vmax.f32 %v969, 0.0
    %v1059 = vmax.f32 %v1008, 0.0
    %v1060 = vmax.f32 %v1010, 0.0
    %v1061 = vmax.f32 %v1049, 0.0
    %v1062 = vmax.f32 %v1051, 0.0
    %v1063 = vpack.c.bf16 %v1055, %v1055
    %v1064 = vpack.c.bf16 %v1056, %v1056
    %v1065 = vpack.c.bf16 %v1057, %v1057
    %v1066 = vpack.c.bf16 %v1058, %v1058
    %v1067 = vpack.c.bf16 %v1059, %v1059
    %v1068 = vpack.c.bf16 %v1060, %v1060
    %v1069 = vpack.c.bf16 %v1061, %v1061
    %v1070 = vpack.c.bf16 %v1062, %v1062
    %v1071 = vld [vmem:[#allocation5] sm:$0xff]
    %v1072 = vld [vmem:[#allocation5 + $0x8] sm:$0xff]
    %v1073 = vld [vmem:[#allocation5 + $0x10] sm:$0xff]
    %v1074 = vld [vmem:[#allocation5 + $0x18] sm:$0xff]
    %v1075 = vld [vmem:[#allocation5 + $0x20] sm:$0xff]
    %v1076 = vld [vmem:[#allocation5 + $0x28] sm:$0xff]
    %v1077 = vld [vmem:[#allocation5 + $0x30] sm:$0xff]
    %v1078 = vld [vmem:[#allocation5 + $0x38] sm:$0xff]
    %v1079 = vld [vmem:[#allocation5 + $0x40] sm:$0xff]
    %v1080 = vld [vmem:[#allocation5 + $0x48] sm:$0xff]
    %v1081 = vld [vmem:[#allocation5 + $0x50] sm:$0xff]
    %v1082 = vld [vmem:[#allocation5 + $0x58] sm:$0xff]
    %v1083 = vld [vmem:[#allocation5 + $0x60] sm:$0xff]
    %v1084 = vld [vmem:[#allocation5 + $0x68] sm:$0xff]
    %v1085 = vld [vmem:[#allocation5 + $0x70] sm:$0xff]
    %v1086 = vld [vmem:[#allocation5 + $0x78] sm:$0xff]
    %v1087 = vld [vmem:[#allocation5 + $0x80] sm:$0xff]
    %v1088 = vld [vmem:[#allocation5 + $0x88] sm:$0xff]
    %v1089 = vld [vmem:[#allocation5 + $0x90] sm:$0xff]
    %v1090 = vld [vmem:[#allocation5 + $0x98] sm:$0xff]
    %v1091 = vld [vmem:[#allocation5 + $0xa0] sm:$0xff]
    %v1092 = vld [vmem:[#allocation5 + $0xa8] sm:$0xff]
    %v1093 = vld [vmem:[#allocation5 + $0xb0] sm:$0xff]
    %v1094 = vld [vmem:[#allocation5 + $0xb8] sm:$0xff]
    %v1095 = vld [vmem:[#allocation5 + $0xc0] sm:$0xff]
    %v1096 = vld [vmem:[#allocation5 + $0xc8] sm:$0xff]
    %v1097 = vld [vmem:[#allocation5 + $0xd0] sm:$0xff]
    %v1098 = vld [vmem:[#allocation5 + $0xd8] sm:$0xff]
    %v1099 = vld [vmem:[#allocation5 + $0xe0] sm:$0xff]
    %v1100 = vld [vmem:[#allocation5 + $0xe8] sm:$0xff]
    %v1101 = vld [vmem:[#allocation5 + $0xf0] sm:$0xff]
    %v1102 = vld [vmem:[#allocation5 + $0xf8] sm:$0xff]
    %v1103 = vld [vmem:[#allocation5 + $0x100] sm:$0xff]
    %v1104 = vld [vmem:[#allocation5 + $0x108] sm:$0xff]
    %v1105 = vld [vmem:[#allocation5 + $0x110] sm:$0xff]
    %v1106 = vld [vmem:[#allocation5 + $0x118] sm:$0xff]
    %v1107 = vld [vmem:[#allocation5 + $0x120] sm:$0xff]
    %v1108 = vld [vmem:[#allocation5 + $0x128] sm:$0xff]
    %v1109 = vld [vmem:[#allocation5 + $0x130] sm:$0xff]
    %v1110 = vld [vmem:[#allocation5 + $0x138] sm:$0xff]
    %v1111 = vld [vmem:[#allocation5 + $0x140] sm:$0xff]
    %v1112 = vld [vmem:[#allocation5 + $0x148] sm:$0xff]
    %v1113 = vld [vmem:[#allocation5 + $0x150] sm:$0xff]
    %v1114 = vld [vmem:[#allocation5 + $0x158] sm:$0xff]
    %v1115 = vld [vmem:[#allocation5 + $0x160] sm:$0xff]
    %v1116 = vld [vmem:[#allocation5 + $0x168] sm:$0xff]
    %v1117 = vld [vmem:[#allocation5 + $0x170] sm:$0xff]
    %v1118 = vld [vmem:[#allocation5 + $0x178] sm:$0xff]
    %v1119 = vld [vmem:[#allocation5 + $0x180] sm:$0xff]
    %v1120 = vld [vmem:[#allocation5 + $0x188] sm:$0xff]
    %v1121 = vld [vmem:[#allocation5 + $0x190] sm:$0xff]
    %v1122 = vld [vmem:[#allocation5 + $0x198] sm:$0xff]
    %v1123 = vld [vmem:[#allocation5 + $0x1a0] sm:$0xff]
    %v1124 = vld [vmem:[#allocation5 + $0x1a8] sm:$0xff]
    %v1125 = vld [vmem:[#allocation5 + $0x1b0] sm:$0xff]
    %v1126 = vld [vmem:[#allocation5 + $0x1b8] sm:$0xff]
    %v1127 = vld [vmem:[#allocation5 + $0x1c0] sm:$0xff]
    %v1128 = vld [vmem:[#allocation5 + $0x1c8] sm:$0xff]
    %v1129 = vld [vmem:[#allocation5 + $0x1d0] sm:$0xff]
    %v1130 = vld [vmem:[#allocation5 + $0x1d8] sm:$0xff]
    %v1131 = vld [vmem:[#allocation5 + $0x1e0] sm:$0xff]
    %v1132 = vld [vmem:[#allocation5 + $0x1e8] sm:$0xff]
    %v1133 = vld [vmem:[#allocation5 + $0x1f0] sm:$0xff]
    %v1134 = vld [vmem:[#allocation5 + $0x1f8] sm:$0xff]
    %v1135 = vld [vmem:[#allocation5 + $0x200] sm:$0xff]
    %v1136 = vld [vmem:[#allocation5 + $0x208] sm:$0xff]
    %v1137 = vld [vmem:[#allocation5 + $0x210] sm:$0xff]
    %v1138 = vld [vmem:[#allocation5 + $0x218] sm:$0xff]
    %v1139 = vld [vmem:[#allocation5 + $0x220] sm:$0xff]
    %v1140 = vld [vmem:[#allocation5 + $0x228] sm:$0xff]
    %v1141 = vld [vmem:[#allocation5 + $0x230] sm:$0xff]
    %v1142 = vld [vmem:[#allocation5 + $0x238] sm:$0xff]
    %v1143 = vld [vmem:[#allocation5 + $0x240] sm:$0xff]
    %v1144 = vld [vmem:[#allocation5 + $0x248] sm:$0xff]
    %v1145 = vld [vmem:[#allocation5 + $0x250] sm:$0xff]
    %v1146 = vld [vmem:[#allocation5 + $0x258] sm:$0xff]
    %v1147 = vld [vmem:[#allocation5 + $0x260] sm:$0xff]
    %v1148 = vld [vmem:[#allocation5 + $0x268] sm:$0xff]
    %v1149 = vld [vmem:[#allocation5 + $0x270] sm:$0xff]
    %v1150 = vld [vmem:[#allocation5 + $0x278] sm:$0xff]
    %v1151 = vld [vmem:[#allocation5 + $0x280] sm:$0xff]
    %v1152 = vld [vmem:[#allocation5 + $0x288] sm:$0xff]
    %v1153 = vld [vmem:[#allocation5 + $0x290] sm:$0xff]
    %v1154 = vld [vmem:[#allocation5 + $0x298] sm:$0xff]
    %v1155 = vld [vmem:[#allocation5 + $0x2a0] sm:$0xff]
    %v1156 = vld [vmem:[#allocation5 + $0x2a8] sm:$0xff]
    %v1157 = vld [vmem:[#allocation5 + $0x2b0] sm:$0xff]
    %v1158 = vld [vmem:[#allocation5 + $0x2b8] sm:$0xff]
    %v1159 = vld [vmem:[#allocation5 + $0x2c0] sm:$0xff]
    %v1160 = vld [vmem:[#allocation5 + $0x2c8] sm:$0xff]
    %v1161 = vld [vmem:[#allocation5 + $0x2d0] sm:$0xff]
    %v1162 = vld [vmem:[#allocation5 + $0x2d8] sm:$0xff]
    %v1163 = vld [vmem:[#allocation5 + $0x2e0] sm:$0xff]
    %v1164 = vld [vmem:[#allocation5 + $0x2e8] sm:$0xff]
    %v1165 = vld [vmem:[#allocation5 + $0x2f0] sm:$0xff]
    %v1166 = vld [vmem:[#allocation5 + $0x2f8] sm:$0xff]
    %v1167 = vld [vmem:[#allocation5 + $0x300] sm:$0xff]
    %v1168 = vld [vmem:[#allocation5 + $0x308] sm:$0xff]
    %v1169 = vld [vmem:[#allocation5 + $0x310] sm:$0xff]
    %v1170 = vld [vmem:[#allocation5 + $0x318] sm:$0xff]
    %v1171 = vld [vmem:[#allocation5 + $0x320] sm:$0xff]
    %v1172 = vld [vmem:[#allocation5 + $0x328] sm:$0xff]
    %v1173 = vld [vmem:[#allocation5 + $0x330] sm:$0xff]
    %v1174 = vld [vmem:[#allocation5 + $0x338] sm:$0xff]
    %v1175 = vld [vmem:[#allocation5 + $0x340] sm:$0xff]
    %v1176 = vld [vmem:[#allocation5 + $0x348] sm:$0xff]
    %v1177 = vld [vmem:[#allocation5 + $0x350] sm:$0xff]
    %v1178 = vld [vmem:[#allocation5 + $0x358] sm:$0xff]
    %v1179 = vld [vmem:[#allocation5 + $0x360] sm:$0xff]
    %v1180 = vld [vmem:[#allocation5 + $0x368] sm:$0xff]
    %v1181 = vld [vmem:[#allocation5 + $0x370] sm:$0xff]
    %v1182 = vld [vmem:[#allocation5 + $0x378] sm:$0xff]
    %v1183 = vld [vmem:[#allocation5 + $0x380] sm:$0xff]
    %v1184 = vld [vmem:[#allocation5 + $0x388] sm:$0xff]
    %v1185 = vld [vmem:[#allocation5 + $0x390] sm:$0xff]
    %v1186 = vld [vmem:[#allocation5 + $0x398] sm:$0xff]
    %v1187 = vld [vmem:[#allocation5 + $0x3a0] sm:$0xff]
    %v1188 = vld [vmem:[#allocation5 + $0x3a8] sm:$0xff]
    %v1189 = vld [vmem:[#allocation5 + $0x3b0] sm:$0xff]
    %v1190 = vld [vmem:[#allocation5 + $0x3b8] sm:$0xff]
    %v1191 = vld [vmem:[#allocation5 + $0x3c0] sm:$0xff]
    %v1192 = vld [vmem:[#allocation5 + $0x3c8] sm:$0xff]
    %v1193 = vld [vmem:[#allocation5 + $0x3d0] sm:$0xff]
    %v1194 = vld [vmem:[#allocation5 + $0x3d8] sm:$0xff]
    %v1195 = vld [vmem:[#allocation5 + $0x3e0] sm:$0xff]
    %v1196 = vld [vmem:[#allocation5 + $0x3e8] sm:$0xff]
    %v1197 = vld [vmem:[#allocation5 + $0x3f0] sm:$0xff]
    %v1198 = vld [vmem:[#allocation5 + $0x3f8] sm:$0xff]
    %v1199 = vld [vmem:[#allocation5 + $0x400] sm:$0xff]
    %v1200 = vld [vmem:[#allocation5 + $0x408] sm:$0xff]
    %v1201 = vld [vmem:[#allocation5 + $0x410] sm:$0xff]
    %v1202 = vld [vmem:[#allocation5 + $0x418] sm:$0xff]
    %v1203 = vld [vmem:[#allocation5 + $0x420] sm:$0xff]
    %v1204 = vld [vmem:[#allocation5 + $0x428] sm:$0xff]
    %v1205 = vld [vmem:[#allocation5 + $0x430] sm:$0xff]
    %v1206 = vld [vmem:[#allocation5 + $0x438] sm:$0xff]
    %v1207 = vld [vmem:[#allocation5 + $0x440] sm:$0xff]
    %v1208 = vld [vmem:[#allocation5 + $0x448] sm:$0xff]
    %v1209 = vld [vmem:[#allocation5 + $0x450] sm:$0xff]
    %v1210 = vld [vmem:[#allocation5 + $0x458] sm:$0xff]
    %v1211 = vld [vmem:[#allocation5 + $0x460] sm:$0xff]
    %v1212 = vld [vmem:[#allocation5 + $0x468] sm:$0xff]
    %v1213 = vld [vmem:[#allocation5 + $0x470] sm:$0xff]
    %v1214 = vld [vmem:[#allocation5 + $0x478] sm:$0xff]
    %v1215 = vld [vmem:[#allocation5 + $0x480] sm:$0xff]
    %v1216 = vld [vmem:[#allocation5 + $0x488] sm:$0xff]
    %v1217 = vld [vmem:[#allocation5 + $0x490] sm:$0xff]
    %v1218 = vld [vmem:[#allocation5 + $0x498] sm:$0xff]
    %v1219 = vld [vmem:[#allocation5 + $0x4a0] sm:$0xff]
    %v1220 = vld [vmem:[#allocation5 + $0x4a8] sm:$0xff]
    %v1221 = vld [vmem:[#allocation5 + $0x4b0] sm:$0xff]
    %v1222 = vld [vmem:[#allocation5 + $0x4b8] sm:$0xff]
    %v1223 = vld [vmem:[#allocation5 + $0x4c0] sm:$0xff]
    %v1224 = vld [vmem:[#allocation5 + $0x4c8] sm:$0xff]
    %v1225 = vld [vmem:[#allocation5 + $0x4d0] sm:$0xff]
    %v1226 = vld [vmem:[#allocation5 + $0x4d8] sm:$0xff]
    %v1227 = vld [vmem:[#allocation5 + $0x4e0] sm:$0xff]
    %v1228 = vld [vmem:[#allocation5 + $0x4e8] sm:$0xff]
    %v1229 = vld [vmem:[#allocation5 + $0x4f0] sm:$0xff]
    %v1230 = vld [vmem:[#allocation5 + $0x4f8] sm:$0xff]
    %v1231 = vld [vmem:[#allocation5 + $0x500] sm:$0xff]
    %v1232 = vld [vmem:[#allocation5 + $0x508] sm:$0xff]
    %v1233 = vld [vmem:[#allocation5 + $0x510] sm:$0xff]
    %v1234 = vld [vmem:[#allocation5 + $0x518] sm:$0xff]
    %v1235 = vld [vmem:[#allocation5 + $0x520] sm:$0xff]
    %v1236 = vld [vmem:[#allocation5 + $0x528] sm:$0xff]
    %v1237 = vld [vmem:[#allocation5 + $0x530] sm:$0xff]
    %v1238 = vld [vmem:[#allocation5 + $0x538] sm:$0xff]
    %v1239 = vld [vmem:[#allocation5 + $0x540] sm:$0xff]
    %v1240 = vld [vmem:[#allocation5 + $0x548] sm:$0xff]
    %v1241 = vld [vmem:[#allocation5 + $0x550] sm:$0xff]
    %v1242 = vld [vmem:[#allocation5 + $0x558] sm:$0xff]
    %v1243 = vld [vmem:[#allocation5 + $0x560] sm:$0xff]
    %v1244 = vld [vmem:[#allocation5 + $0x568] sm:$0xff]
    %v1245 = vld [vmem:[#allocation5 + $0x570] sm:$0xff]
    %v1246 = vld [vmem:[#allocation5 + $0x578] sm:$0xff]
    %v1247 = vld [vmem:[#allocation5 + $0x580] sm:$0xff]
    %v1248 = vld [vmem:[#allocation5 + $0x588] sm:$0xff]
    %v1249 = vld [vmem:[#allocation5 + $0x590] sm:$0xff]
    %v1250 = vld [vmem:[#allocation5 + $0x598] sm:$0xff]
    %v1251 = vld [vmem:[#allocation5 + $0x5a0] sm:$0xff]
    %v1252 = vld [vmem:[#allocation5 + $0x5a8] sm:$0xff]
    %v1253 = vld [vmem:[#allocation5 + $0x5b0] sm:$0xff]
    %v1254 = vld [vmem:[#allocation5 + $0x5b8] sm:$0xff]
    %v1255 = vld [vmem:[#allocation5 + $0x5c0] sm:$0xff]
    %v1256 = vld [vmem:[#allocation5 + $0x5c8] sm:$0xff]
    %v1257 = vld [vmem:[#allocation5 + $0x5d0] sm:$0xff]
    %v1258 = vld [vmem:[#allocation5 + $0x5d8] sm:$0xff]
    %v1259 = vld [vmem:[#allocation5 + $0x5e0] sm:$0xff]
    %v1260 = vld [vmem:[#allocation5 + $0x5e8] sm:$0xff]
    %v1261 = vld [vmem:[#allocation5 + $0x5f0] sm:$0xff]
    %v1262 = vld [vmem:[#allocation5 + $0x5f8] sm:$0xff]
    %v1263 = vld [vmem:[#allocation5 + $0x600] sm:$0xff]
    %v1264 = vld [vmem:[#allocation5 + $0x608] sm:$0xff]
    %v1265 = vld [vmem:[#allocation5 + $0x610] sm:$0xff]
    %v1266 = vld [vmem:[#allocation5 + $0x618] sm:$0xff]
    %v1267 = vld [vmem:[#allocation5 + $0x620] sm:$0xff]
    %v1268 = vld [vmem:[#allocation5 + $0x628] sm:$0xff]
    %v1269 = vld [vmem:[#allocation5 + $0x630] sm:$0xff]
    %v1270 = vld [vmem:[#allocation5 + $0x638] sm:$0xff]
    %v1271 = vld [vmem:[#allocation5 + $0x640] sm:$0xff]
    %v1272 = vld [vmem:[#allocation5 + $0x648] sm:$0xff]
    %v1273 = vld [vmem:[#allocation5 + $0x650] sm:$0xff]
    %v1274 = vld [vmem:[#allocation5 + $0x658] sm:$0xff]
    %v1275 = vld [vmem:[#allocation5 + $0x660] sm:$0xff]
    %v1276 = vld [vmem:[#allocation5 + $0x668] sm:$0xff]
    %v1277 = vld [vmem:[#allocation5 + $0x670] sm:$0xff]
    %v1278 = vld [vmem:[#allocation5 + $0x678] sm:$0xff]
    %v1279 = vld [vmem:[#allocation5 + $0x680] sm:$0xff]
    %v1280 = vld [vmem:[#allocation5 + $0x688] sm:$0xff]
    %v1281 = vld [vmem:[#allocation5 + $0x690] sm:$0xff]
    %v1282 = vld [vmem:[#allocation5 + $0x698] sm:$0xff]
    %v1283 = vld [vmem:[#allocation5 + $0x6a0] sm:$0xff]
    %v1284 = vld [vmem:[#allocation5 + $0x6a8] sm:$0xff]
    %v1285 = vld [vmem:[#allocation5 + $0x6b0] sm:$0xff]
    %v1286 = vld [vmem:[#allocation5 + $0x6b8] sm:$0xff]
    %v1287 = vld [vmem:[#allocation5 + $0x6c0] sm:$0xff]
    %v1288 = vld [vmem:[#allocation5 + $0x6c8] sm:$0xff]
    %v1289 = vld [vmem:[#allocation5 + $0x6d0] sm:$0xff]
    %v1290 = vld [vmem:[#allocation5 + $0x6d8] sm:$0xff]
    %v1291 = vld [vmem:[#allocation5 + $0x6e0] sm:$0xff]
    %v1292 = vld [vmem:[#allocation5 + $0x6e8] sm:$0xff]
    %v1293 = vld [vmem:[#allocation5 + $0x6f0] sm:$0xff]
    %v1294 = vld [vmem:[#allocation5 + $0x6f8] sm:$0xff]
    %v1295 = vld [vmem:[#allocation5 + $0x700] sm:$0xff]
    %v1296 = vld [vmem:[#allocation5 + $0x708] sm:$0xff]
    %v1297 = vld [vmem:[#allocation5 + $0x710] sm:$0xff]
    %v1298 = vld [vmem:[#allocation5 + $0x718] sm:$0xff]
    %v1299 = vld [vmem:[#allocation5 + $0x720] sm:$0xff]
    %v1300 = vld [vmem:[#allocation5 + $0x728] sm:$0xff]
    %v1301 = vld [vmem:[#allocation5 + $0x730] sm:$0xff]
    %v1302 = vld [vmem:[#allocation5 + $0x738] sm:$0xff]
    %v1303 = vld [vmem:[#allocation5 + $0x740] sm:$0xff]
    %v1304 = vld [vmem:[#allocation5 + $0x748] sm:$0xff]
    %v1305 = vld [vmem:[#allocation5 + $0x750] sm:$0xff]
    %v1306 = vld [vmem:[#allocation5 + $0x758] sm:$0xff]
    %v1307 = vld [vmem:[#allocation5 + $0x760] sm:$0xff]
    %v1308 = vld [vmem:[#allocation5 + $0x768] sm:$0xff]
    %v1309 = vld [vmem:[#allocation5 + $0x770] sm:$0xff]
    %v1310 = vld [vmem:[#allocation5 + $0x778] sm:$0xff]
    %v1311 = vld [vmem:[#allocation5 + $0x780] sm:$0xff]
    %v1312 = vld [vmem:[#allocation5 + $0x788] sm:$0xff]
    %v1313 = vld [vmem:[#allocation5 + $0x790] sm:$0xff]
    %v1314 = vld [vmem:[#allocation5 + $0x798] sm:$0xff]
    %v1315 = vld [vmem:[#allocation5 + $0x7a0] sm:$0xff]
    %v1316 = vld [vmem:[#allocation5 + $0x7a8] sm:$0xff]
    %v1317 = vld [vmem:[#allocation5 + $0x7b0] sm:$0xff]
    %v1318 = vld [vmem:[#allocation5 + $0x7b8] sm:$0xff]
    %v1319 = vld [vmem:[#allocation5 + $0x7c0] sm:$0xff]
    %v1320 = vld [vmem:[#allocation5 + $0x7c8] sm:$0xff]
    %v1321 = vld [vmem:[#allocation5 + $0x7d0] sm:$0xff]
    %v1322 = vld [vmem:[#allocation5 + $0x7d8] sm:$0xff]
    %v1323 = vld [vmem:[#allocation5 + $0x7e0] sm:$0xff]
    %v1324 = vld [vmem:[#allocation5 + $0x7e8] sm:$0xff]
    %v1325 = vld [vmem:[#allocation5 + $0x7f0] sm:$0xff]
    %v1326 = vld [vmem:[#allocation5 + $0x7f8] sm:$0xff]
    %v1327 = vld [vmem:[%s5] sm:$0xf]
    %v1329 = vlaneseq
    %v1330 = vshrl.u32 %v1329, 7
    %v1331 = vsub.s32 0, %v1330
    %v1332 = vrot.slane %v1327, %v1331
    %v1333 = vlaneseq
    %v1334 = vshrl.u32 %v1333, 7
    %v1335 = vsub.s32 1, %v1334
    %v1336 = vrot.slane %v1327, %v1335
    %v1337 = vlaneseq
    %v1338 = vshrl.u32 %v1337, 7
    %v1339 = vsub.s32 2, %v1338
    %v1340 = vrot.slane %v1327, %v1339
    %v1341 = vlaneseq
    %v1342 = vshrl.u32 %v1341, 7
    %v1343 = vsub.s32 3, %v1342
    %v1344 = vrot.slane %v1327, %v1343
    %v1605 = vunpack.c.l.b16 %v1071
    %v1606 = vunpack.c.h.b16 %v1071
    %v1607 = vunpack.c.l.b16 %v1072
    %v1608 = vunpack.c.h.b16 %v1072
    %v1609 = vunpack.c.l.b16 %v1073
    %v1610 = vunpack.c.h.b16 %v1073
    %v1611 = vunpack.c.l.b16 %v1074
    %v1612 = vunpack.c.h.b16 %v1074
    %v1613 = vunpack.c.l.b16 %v1075
    %v1614 = vunpack.c.h.b16 %v1075
    %v1615 = vunpack.c.l.b16 %v1076
    %v1616 = vunpack.c.h.b16 %v1076
    %v1617 = vunpack.c.l.b16 %v1077
    %v1618 = vunpack.c.h.b16 %v1077
    %v1619 = vunpack.c.l.b16 %v1078
    %v1620 = vunpack.c.h.b16 %v1078
    %v1621 = vunpack.c.l.b16 %v1079
    %v1622 = vunpack.c.h.b16 %v1079
    %v1623 = vunpack.c.l.b16 %v1080
    %v1624 = vunpack.c.h.b16 %v1080
    %v1625 = vunpack.c.l.b16 %v1081
    %v1626 = vunpack.c.h.b16 %v1081
    %v1627 = vunpack.c.l.b16 %v1082
    %v1628 = vunpack.c.h.b16 %v1082
    %v1629 = vunpack.c.l.b16 %v1083
    %v1630 = vunpack.c.h.b16 %v1083
    %v1631 = vunpack.c.l.b16 %v1084
    %v1632 = vunpack.c.h.b16 %v1084
    %v1633 = vunpack.c.l.b16 %v1085
    %v1634 = vunpack.c.h.b16 %v1085
    %v1635 = vunpack.c.l.b16 %v1086
    %v1636 = vunpack.c.h.b16 %v1086
    %v1637 = vunpack.c.l.b16 %v1087
    %v1638 = vunpack.c.h.b16 %v1087
    %v1639 = vunpack.c.l.b16 %v1088
    %v1640 = vunpack.c.h.b16 %v1088
    %v1641 = vunpack.c.l.b16 %v1089
    %v1642 = vunpack.c.h.b16 %v1089
    %v1643 = vunpack.c.l.b16 %v1090
    %v1644 = vunpack.c.h.b16 %v1090
    %v1645 = vunpack.c.l.b16 %v1091
    %v1646 = vunpack.c.h.b16 %v1091
    %v1647 = vunpack.c.l.b16 %v1092
    %v1648 = vunpack.c.h.b16 %v1092
    %v1649 = vunpack.c.l.b16 %v1093
    %v1650 = vunpack.c.h.b16 %v1093
    %v1651 = vunpack.c.l.b16 %v1094
    %v1652 = vunpack.c.h.b16 %v1094
    %v1653 = vunpack.c.l.b16 %v1095
    %v1654 = vunpack.c.h.b16 %v1095
    %v1655 = vunpack.c.l.b16 %v1096
    %v1656 = vunpack.c.h.b16 %v1096
    %v1657 = vunpack.c.l.b16 %v1097
    %v1658 = vunpack.c.h.b16 %v1097
    %v1659 = vunpack.c.l.b16 %v1098
    %v1660 = vunpack.c.h.b16 %v1098
    %v1661 = vunpack.c.l.b16 %v1099
    %v1662 = vunpack.c.h.b16 %v1099
    %v1663 = vunpack.c.l.b16 %v1100
    %v1664 = vunpack.c.h.b16 %v1100
    %v1665 = vunpack.c.l.b16 %v1101
    %v1666 = vunpack.c.h.b16 %v1101
    %v1667 = vunpack.c.l.b16 %v1102
    %v1668 = vunpack.c.h.b16 %v1102
    %v1669 = vunpack.c.l.b16 %v1103
    %v1670 = vunpack.c.h.b16 %v1103
    %v1671 = vunpack.c.l.b16 %v1104
    %v1672 = vunpack.c.h.b16 %v1104
    %v1673 = vunpack.c.l.b16 %v1105
    %v1674 = vunpack.c.h.b16 %v1105
    %v1675 = vunpack.c.l.b16 %v1106
    %v1676 = vunpack.c.h.b16 %v1106
    %v1677 = vunpack.c.l.b16 %v1107
    %v1678 = vunpack.c.h.b16 %v1107
    %v1679 = vunpack.c.l.b16 %v1108
    %v1680 = vunpack.c.h.b16 %v1108
    %v1681 = vunpack.c.l.b16 %v1109
    %v1682 = vunpack.c.h.b16 %v1109
    %v1683 = vunpack.c.l.b16 %v1110
    %v1684 = vunpack.c.h.b16 %v1110
    %v1685 = vunpack.c.l.b16 %v1111
    %v1686 = vunpack.c.h.b16 %v1111
    %v1687 = vunpack.c.l.b16 %v1112
    %v1688 = vunpack.c.h.b16 %v1112
    %v1689 = vunpack.c.l.b16 %v1113
    %v1690 = vunpack.c.h.b16 %v1113
    %v1691 = vunpack.c.l.b16 %v1114
    %v1692 = vunpack.c.h.b16 %v1114
    %v1693 = vunpack.c.l.b16 %v1115
    %v1694 = vunpack.c.h.b16 %v1115
    %v1695 = vunpack.c.l.b16 %v1116
    %v1696 = vunpack.c.h.b16 %v1116
    %v1697 = vunpack.c.l.b16 %v1117
    %v1698 = vunpack.c.h.b16 %v1117
    %v1699 = vunpack.c.l.b16 %v1118
    %v1700 = vunpack.c.h.b16 %v1118
    %v1701 = vunpack.c.l.b16 %v1119
    %v1702 = vunpack.c.h.b16 %v1119
    %v1703 = vunpack.c.l.b16 %v1120
    %v1704 = vunpack.c.h.b16 %v1120
    %v1705 = vunpack.c.l.b16 %v1121
    %v1706 = vunpack.c.h.b16 %v1121
    %v1707 = vunpack.c.l.b16 %v1122
    %v1708 = vunpack.c.h.b16 %v1122
    %v1709 = vunpack.c.l.b16 %v1123
    %v1710 = vunpack.c.h.b16 %v1123
    %v1711 = vunpack.c.l.b16 %v1124
    %v1712 = vunpack.c.h.b16 %v1124
    %v1713 = vunpack.c.l.b16 %v1125
    %v1714 = vunpack.c.h.b16 %v1125
    %v1715 = vunpack.c.l.b16 %v1126
    %v1716 = vunpack.c.h.b16 %v1126
    %v1717 = vunpack.c.l.b16 %v1127
    %v1718 = vunpack.c.h.b16 %v1127
    %v1719 = vunpack.c.l.b16 %v1128
    %v1720 = vunpack.c.h.b16 %v1128
    %v1721 = vunpack.c.l.b16 %v1129
    %v1722 = vunpack.c.h.b16 %v1129
    %v1723 = vunpack.c.l.b16 %v1130
    %v1724 = vunpack.c.h.b16 %v1130
    %v1725 = vunpack.c.l.b16 %v1131
    %v1726 = vunpack.c.h.b16 %v1131
    %v1727 = vunpack.c.l.b16 %v1132
    %v1728 = vunpack.c.h.b16 %v1132
    %v1729 = vunpack.c.l.b16 %v1133
    %v1730 = vunpack.c.h.b16 %v1133
    %v1731 = vunpack.c.l.b16 %v1134
    %v1732 = vunpack.c.h.b16 %v1134
    %v1733 = vunpack.c.l.b16 %v1135
    %v1734 = vunpack.c.h.b16 %v1135
    %v1735 = vunpack.c.l.b16 %v1136
    %v1736 = vunpack.c.h.b16 %v1136
    %v1737 = vunpack.c.l.b16 %v1137
    %v1738 = vunpack.c.h.b16 %v1137
    %v1739 = vunpack.c.l.b16 %v1138
    %v1740 = vunpack.c.h.b16 %v1138
    %v1741 = vunpack.c.l.b16 %v1139
    %v1742 = vunpack.c.h.b16 %v1139
    %v1743 = vunpack.c.l.b16 %v1140
    %v1744 = vunpack.c.h.b16 %v1140
    %v1745 = vunpack.c.l.b16 %v1141
    %v1746 = vunpack.c.h.b16 %v1141
    %v1747 = vunpack.c.l.b16 %v1142
    %v1748 = vunpack.c.h.b16 %v1142
    %v1749 = vunpack.c.l.b16 %v1143
    %v1750 = vunpack.c.h.b16 %v1143
    %v1751 = vunpack.c.l.b16 %v1144
    %v1752 = vunpack.c.h.b16 %v1144
    %v1753 = vunpack.c.l.b16 %v1145
    %v1754 = vunpack.c.h.b16 %v1145
    %v1755 = vunpack.c.l.b16 %v1146
    %v1756 = vunpack.c.h.b16 %v1146
    %v1757 = vunpack.c.l.b16 %v1147
    %v1758 = vunpack.c.h.b16 %v1147
    %v1759 = vunpack.c.l.b16 %v1148
    %v1760 = vunpack.c.h.b16 %v1148
    %v1761 = vunpack.c.l.b16 %v1149
    %v1762 = vunpack.c.h.b16 %v1149
    %v1763 = vunpack.c.l.b16 %v1150
    %v1764 = vunpack.c.h.b16 %v1150
    %v1765 = vunpack.c.l.b16 %v1151
    %v1766 = vunpack.c.h.b16 %v1151
    %v1767 = vunpack.c.l.b16 %v1152
    %v1768 = vunpack.c.h.b16 %v1152
    %v1769 = vunpack.c.l.b16 %v1153
    %v1770 = vunpack.c.h.b16 %v1153
    %v1771 = vunpack.c.l.b16 %v1154
    %v1772 = vunpack.c.h.b16 %v1154
    %v1773 = vunpack.c.l.b16 %v1155
    %v1774 = vunpack.c.h.b16 %v1155
    %v1775 = vunpack.c.l.b16 %v1156
    %v1776 = vunpack.c.h.b16 %v1156
    %v1777 = vunpack.c.l.b16 %v1157
    %v1778 = vunpack.c.h.b16 %v1157
    %v1779 = vunpack.c.l.b16 %v1158
    %v1780 = vunpack.c.h.b16 %v1158
    %v1781 = vunpack.c.l.b16 %v1159
    %v1782 = vunpack.c.h.b16 %v1159
    %v1783 = vunpack.c.l.b16 %v1160
    %v1784 = vunpack.c.h.b16 %v1160
    %v1785 = vunpack.c.l.b16 %v1161
    %v1786 = vunpack.c.h.b16 %v1161
    %v1787 = vunpack.c.l.b16 %v1162
    %v1788 = vunpack.c.h.b16 %v1162
    %v1789 = vunpack.c.l.b16 %v1163
    %v1790 = vunpack.c.h.b16 %v1163
    %v1791 = vunpack.c.l.b16 %v1164
    %v1792 = vunpack.c.h.b16 %v1164
    %v1793 = vunpack.c.l.b16 %v1165
    %v1794 = vunpack.c.h.b16 %v1165
    %v1795 = vunpack.c.l.b16 %v1166
    %v1796 = vunpack.c.h.b16 %v1166
    %v1797 = vunpack.c.l.b16 %v1167
    %v1798 = vunpack.c.h.b16 %v1167
    %v1799 = vunpack.c.l.b16 %v1168
    %v1800 = vunpack.c.h.b16 %v1168
    %v1801 = vunpack.c.l.b16 %v1169
    %v1802 = vunpack.c.h.b16 %v1169
    %v1803 = vunpack.c.l.b16 %v1170
    %v1804 = vunpack.c.h.b16 %v1170
    %v1805 = vunpack.c.l.b16 %v1171
    %v1806 = vunpack.c.h.b16 %v1171
    %v1807 = vunpack.c.l.b16 %v1172
    %v1808 = vunpack.c.h.b16 %v1172
    %v1809 = vunpack.c.l.b16 %v1173
    %v1810 = vunpack.c.h.b16 %v1173
    %v1811 = vunpack.c.l.b16 %v1174
    %v1812 = vunpack.c.h.b16 %v1174
    %v1813 = vunpack.c.l.b16 %v1175
    %v1814 = vunpack.c.h.b16 %v1175
    %v1815 = vunpack.c.l.b16 %v1176
    %v1816 = vunpack.c.h.b16 %v1176
    %v1817 = vunpack.c.l.b16 %v1177
    %v1818 = vunpack.c.h.b16 %v1177
    %v1819 = vunpack.c.l.b16 %v1178
    %v1820 = vunpack.c.h.b16 %v1178
    %v1821 = vunpack.c.l.b16 %v1179
    %v1822 = vunpack.c.h.b16 %v1179
    %v1823 = vunpack.c.l.b16 %v1180
    %v1824 = vunpack.c.h.b16 %v1180
    %v1825 = vunpack.c.l.b16 %v1181
    %v1826 = vunpack.c.h.b16 %v1181
    %v1827 = vunpack.c.l.b16 %v1182
    %v1828 = vunpack.c.h.b16 %v1182
    %v1829 = vunpack.c.l.b16 %v1183
    %v1830 = vunpack.c.h.b16 %v1183
    %v1831 = vunpack.c.l.b16 %v1184
    %v1832 = vunpack.c.h.b16 %v1184
    %v1833 = vunpack.c.l.b16 %v1185
    %v1834 = vunpack.c.h.b16 %v1185
    %v1835 = vunpack.c.l.b16 %v1186
    %v1836 = vunpack.c.h.b16 %v1186
    %v1837 = vunpack.c.l.b16 %v1187
    %v1838 = vunpack.c.h.b16 %v1187
    %v1839 = vunpack.c.l.b16 %v1188
    %v1840 = vunpack.c.h.b16 %v1188
    %v1841 = vunpack.c.l.b16 %v1189
    %v1842 = vunpack.c.h.b16 %v1189
    %v1843 = vunpack.c.l.b16 %v1190
    %v1844 = vunpack.c.h.b16 %v1190
    %v1845 = vunpack.c.l.b16 %v1191
    %v1846 = vunpack.c.h.b16 %v1191
    %v1847 = vunpack.c.l.b16 %v1192
    %v1848 = vunpack.c.h.b16 %v1192
    %v1849 = vunpack.c.l.b16 %v1193
    %v1850 = vunpack.c.h.b16 %v1193
    %v1851 = vunpack.c.l.b16 %v1194
    %v1852 = vunpack.c.h.b16 %v1194
    %v1853 = vunpack.c.l.b16 %v1195
    %v1854 = vunpack.c.h.b16 %v1195
    %v1855 = vunpack.c.l.b16 %v1196
    %v1856 = vunpack.c.h.b16 %v1196
    %v1857 = vunpack.c.l.b16 %v1197
    %v1858 = vunpack.c.h.b16 %v1197
    %v1859 = vunpack.c.l.b16 %v1198
    %v1860 = vunpack.c.h.b16 %v1198
    %v1861 = vunpack.c.l.b16 %v1199
    %v1862 = vunpack.c.h.b16 %v1199
    %v1863 = vunpack.c.l.b16 %v1200
    %v1864 = vunpack.c.h.b16 %v1200
    %v1865 = vunpack.c.l.b16 %v1201
    %v1866 = vunpack.c.h.b16 %v1201
    %v1867 = vunpack.c.l.b16 %v1202
    %v1868 = vunpack.c.h.b16 %v1202
    %v1869 = vunpack.c.l.b16 %v1203
    %v1870 = vunpack.c.h.b16 %v1203
    %v1871 = vunpack.c.l.b16 %v1204
    %v1872 = vunpack.c.h.b16 %v1204
    %v1873 = vunpack.c.l.b16 %v1205
    %v1874 = vunpack.c.h.b16 %v1205
    %v1875 = vunpack.c.l.b16 %v1206
    %v1876 = vunpack.c.h.b16 %v1206
    %v1877 = vunpack.c.l.b16 %v1207
    %v1878 = vunpack.c.h.b16 %v1207
    %v1879 = vunpack.c.l.b16 %v1208
    %v1880 = vunpack.c.h.b16 %v1208
    %v1881 = vunpack.c.l.b16 %v1209
    %v1882 = vunpack.c.h.b16 %v1209
    %v1883 = vunpack.c.l.b16 %v1210
    %v1884 = vunpack.c.h.b16 %v1210
    %v1885 = vunpack.c.l.b16 %v1211
    %v1886 = vunpack.c.h.b16 %v1211
    %v1887 = vunpack.c.l.b16 %v1212
    %v1888 = vunpack.c.h.b16 %v1212
    %v1889 = vunpack.c.l.b16 %v1213
    %v1890 = vunpack.c.h.b16 %v1213
    %v1891 = vunpack.c.l.b16 %v1214
    %v1892 = vunpack.c.h.b16 %v1214
    %v1893 = vunpack.c.l.b16 %v1215
    %v1894 = vunpack.c.h.b16 %v1215
    %v1895 = vunpack.c.l.b16 %v1216
    %v1896 = vunpack.c.h.b16 %v1216
    %v1897 = vunpack.c.l.b16 %v1217
    %v1898 = vunpack.c.h.b16 %v1217
    %v1899 = vunpack.c.l.b16 %v1218
    %v1900 = vunpack.c.h.b16 %v1218
    %v1901 = vunpack.c.l.b16 %v1219
    %v1902 = vunpack.c.h.b16 %v1219
    %v1903 = vunpack.c.l.b16 %v1220
    %v1904 = vunpack.c.h.b16 %v1220
    %v1905 = vunpack.c.l.b16 %v1221
    %v1906 = vunpack.c.h.b16 %v1221
    %v1907 = vunpack.c.l.b16 %v1222
    %v1908 = vunpack.c.h.b16 %v1222
    %v1909 = vunpack.c.l.b16 %v1223
    %v1910 = vunpack.c.h.b16 %v1223
    %v1911 = vunpack.c.l.b16 %v1224
    %v1912 = vunpack.c.h.b16 %v1224
    %v1913 = vunpack.c.l.b16 %v1225
    %v1914 = vunpack.c.h.b16 %v1225
    %v1915 = vunpack.c.l.b16 %v1226
    %v1916 = vunpack.c.h.b16 %v1226
    %v1917 = vunpack.c.l.b16 %v1227
    %v1918 = vunpack.c.h.b16 %v1227
    %v1919 = vunpack.c.l.b16 %v1228
    %v1920 = vunpack.c.h.b16 %v1228
    %v1921 = vunpack.c.l.b16 %v1229
    %v1922 = vunpack.c.h.b16 %v1229
    %v1923 = vunpack.c.l.b16 %v1230
    %v1924 = vunpack.c.h.b16 %v1230
    %v1925 = vunpack.c.l.b16 %v1231
    %v1926 = vunpack.c.h.b16 %v1231
    %v1927 = vunpack.c.l.b16 %v1232
    %v1928 = vunpack.c.h.b16 %v1232
    %v1929 = vunpack.c.l.b16 %v1233
    %v1930 = vunpack.c.h.b16 %v1233
    %v1931 = vunpack.c.l.b16 %v1234
    %v1932 = vunpack.c.h.b16 %v1234
    %v1933 = vunpack.c.l.b16 %v1235
    %v1934 = vunpack.c.h.b16 %v1235
    %v1935 = vunpack.c.l.b16 %v1236
    %v1936 = vunpack.c.h.b16 %v1236
    %v1937 = vunpack.c.l.b16 %v1237
    %v1938 = vunpack.c.h.b16 %v1237
    %v1939 = vunpack.c.l.b16 %v1238
    %v1940 = vunpack.c.h.b16 %v1238
    %v1941 = vunpack.c.l.b16 %v1239
    %v1942 = vunpack.c.h.b16 %v1239
    %v1943 = vunpack.c.l.b16 %v1240
    %v1944 = vunpack.c.h.b16 %v1240
    %v1945 = vunpack.c.l.b16 %v1241
    %v1946 = vunpack.c.h.b16 %v1241
    %v1947 = vunpack.c.l.b16 %v1242
    %v1948 = vunpack.c.h.b16 %v1242
    %v1949 = vunpack.c.l.b16 %v1243
    %v1950 = vunpack.c.h.b16 %v1243
    %v1951 = vunpack.c.l.b16 %v1244
    %v1952 = vunpack.c.h.b16 %v1244
    %v1953 = vunpack.c.l.b16 %v1245
    %v1954 = vunpack.c.h.b16 %v1245
    %v1955 = vunpack.c.l.b16 %v1246
    %v1956 = vunpack.c.h.b16 %v1246
    %v1957 = vunpack.c.l.b16 %v1247
    %v1958 = vunpack.c.h.b16 %v1247
    %v1959 = vunpack.c.l.b16 %v1248
    %v1960 = vunpack.c.h.b16 %v1248
    %v1961 = vunpack.c.l.b16 %v1249
    %v1962 = vunpack.c.h.b16 %v1249
    %v1963 = vunpack.c.l.b16 %v1250
    %v1964 = vunpack.c.h.b16 %v1250
    %v1965 = vunpack.c.l.b16 %v1251
    %v1966 = vunpack.c.h.b16 %v1251
    %v1967 = vunpack.c.l.b16 %v1252
    %v1968 = vunpack.c.h.b16 %v1252
    %v1969 = vunpack.c.l.b16 %v1253
    %v1970 = vunpack.c.h.b16 %v1253
    %v1971 = vunpack.c.l.b16 %v1254
    %v1972 = vunpack.c.h.b16 %v1254
    %v1973 = vunpack.c.l.b16 %v1255
    %v1974 = vunpack.c.h.b16 %v1255
    %v1975 = vunpack.c.l.b16 %v1256
    %v1976 = vunpack.c.h.b16 %v1256
    %v1977 = vunpack.c.l.b16 %v1257
    %v1978 = vunpack.c.h.b16 %v1257
    %v1979 = vunpack.c.l.b16 %v1258
    %v1980 = vunpack.c.h.b16 %v1258
    %v1981 = vunpack.c.l.b16 %v1259
    %v1982 = vunpack.c.h.b16 %v1259
    %v1983 = vunpack.c.l.b16 %v1260
    %v1984 = vunpack.c.h.b16 %v1260
    %v1985 = vunpack.c.l.b16 %v1261
    %v1986 = vunpack.c.h.b16 %v1261
    %v1987 = vunpack.c.l.b16 %v1262
    %v1988 = vunpack.c.h.b16 %v1262
    %v1989 = vunpack.c.l.b16 %v1263
    %v1990 = vunpack.c.h.b16 %v1263
    %v1991 = vunpack.c.l.b16 %v1264
    %v1992 = vunpack.c.h.b16 %v1264
    %v1993 = vunpack.c.l.b16 %v1265
    %v1994 = vunpack.c.h.b16 %v1265
    %v1995 = vunpack.c.l.b16 %v1266
    %v1996 = vunpack.c.h.b16 %v1266
    %v1997 = vunpack.c.l.b16 %v1267
    %v1998 = vunpack.c.h.b16 %v1267
    %v1999 = vunpack.c.l.b16 %v1268
    %v2000 = vunpack.c.h.b16 %v1268
    %v2001 = vunpack.c.l.b16 %v1269
    %v2002 = vunpack.c.h.b16 %v1269
    %v2003 = vunpack.c.l.b16 %v1270
    %v2004 = vunpack.c.h.b16 %v1270
    %v2005 = vunpack.c.l.b16 %v1271
    %v2006 = vunpack.c.h.b16 %v1271
    %v2007 = vunpack.c.l.b16 %v1272
    %v2008 = vunpack.c.h.b16 %v1272
    %v2009 = vunpack.c.l.b16 %v1273
    %v2010 = vunpack.c.h.b16 %v1273
    %v2011 = vunpack.c.l.b16 %v1274
    %v2012 = vunpack.c.h.b16 %v1274
    %v2013 = vunpack.c.l.b16 %v1275
    %v2014 = vunpack.c.h.b16 %v1275
    %v2015 = vunpack.c.l.b16 %v1276
    %v2016 = vunpack.c.h.b16 %v1276
    %v2017 = vunpack.c.l.b16 %v1277
    %v2018 = vunpack.c.h.b16 %v1277
    %v2019 = vunpack.c.l.b16 %v1278
    %v2020 = vunpack.c.h.b16 %v1278
    %v2021 = vunpack.c.l.b16 %v1279
    %v2022 = vunpack.c.h.b16 %v1279
    %v2023 = vunpack.c.l.b16 %v1280
    %v2024 = vunpack.c.h.b16 %v1280
    %v2025 = vunpack.c.l.b16 %v1281
    %v2026 = vunpack.c.h.b16 %v1281
    %v2027 = vunpack.c.l.b16 %v1282
    %v2028 = vunpack.c.h.b16 %v1282
    %v2029 = vunpack.c.l.b16 %v1283
    %v2030 = vunpack.c.h.b16 %v1283
    %v2031 = vunpack.c.l.b16 %v1284
    %v2032 = vunpack.c.h.b16 %v1284
    %v2033 = vunpack.c.l.b16 %v1285
    %v2034 = vunpack.c.h.b16 %v1285
    %v2035 = vunpack.c.l.b16 %v1286
    %v2036 = vunpack.c.h.b16 %v1286
    %v2037 = vunpack.c.l.b16 %v1287
    %v2038 = vunpack.c.h.b16 %v1287
    %v2039 = vunpack.c.l.b16 %v1288
    %v2040 = vunpack.c.h.b16 %v1288
    %v2041 = vunpack.c.l.b16 %v1289
    %v2042 = vunpack.c.h.b16 %v1289
    %v2043 = vunpack.c.l.b16 %v1290
    %v2044 = vunpack.c.h.b16 %v1290
    %v2045 = vunpack.c.l.b16 %v1291
    %v2046 = vunpack.c.h.b16 %v1291
    %v2047 = vunpack.c.l.b16 %v1292
    %v2048 = vunpack.c.h.b16 %v1292
    %v2049 = vunpack.c.l.b16 %v1293
    %v2050 = vunpack.c.h.b16 %v1293
    %v2051 = vunpack.c.l.b16 %v1294
    %v2052 = vunpack.c.h.b16 %v1294
    %v2053 = vunpack.c.l.b16 %v1295
    %v2054 = vunpack.c.h.b16 %v1295
    %v2055 = vunpack.c.l.b16 %v1296
    %v2056 = vunpack.c.h.b16 %v1296
    %v2057 = vunpack.c.l.b16 %v1297
    %v2058 = vunpack.c.h.b16 %v1297
    %v2059 = vunpack.c.l.b16 %v1298
    %v2060 = vunpack.c.h.b16 %v1298
    %v2061 = vunpack.c.l.b16 %v1299
    %v2062 = vunpack.c.h.b16 %v1299
    %v2063 = vunpack.c.l.b16 %v1300
    %v2064 = vunpack.c.h.b16 %v1300
    %v2065 = vunpack.c.l.b16 %v1301
    %v2066 = vunpack.c.h.b16 %v1301
    %v2067 = vunpack.c.l.b16 %v1302
    %v2068 = vunpack.c.h.b16 %v1302
    %v2069 = vunpack.c.l.b16 %v1303
    %v2070 = vunpack.c.h.b16 %v1303
    %v2071 = vunpack.c.l.b16 %v1304
    %v2072 = vunpack.c.h.b16 %v1304
    %v2073 = vunpack.c.l.b16 %v1305
    %v2074 = vunpack.c.h.b16 %v1305
    %v2075 = vunpack.c.l.b16 %v1306
    %v2076 = vunpack.c.h.b16 %v1306
    %v2077 = vunpack.c.l.b16 %v1307
    %v2078 = vunpack.c.h.b16 %v1307
    %v2079 = vunpack.c.l.b16 %v1308
    %v2080 = vunpack.c.h.b16 %v1308
    %v2081 = vunpack.c.l.b16 %v1309
    %v2082 = vunpack.c.h.b16 %v1309
    %v2083 = vunpack.c.l.b16 %v1310
    %v2084 = vunpack.c.h.b16 %v1310
    %v2085 = vunpack.c.l.b16 %v1311
    %v2086 = vunpack.c.h.b16 %v1311
    %v2087 = vunpack.c.l.b16 %v1312
    %v2088 = vunpack.c.h.b16 %v1312
    %v2089 = vunpack.c.l.b16 %v1313
    %v2090 = vunpack.c.h.b16 %v1313
    %v2091 = vunpack.c.l.b16 %v1314
    %v2092 = vunpack.c.h.b16 %v1314
    %v2093 = vunpack.c.l.b16 %v1315
    %v2094 = vunpack.c.h.b16 %v1315
    %v2095 = vunpack.c.l.b16 %v1316
    %v2096 = vunpack.c.h.b16 %v1316
    %v2097 = vunpack.c.l.b16 %v1317
    %v2098 = vunpack.c.h.b16 %v1317
    %v2099 = vunpack.c.l.b16 %v1318
    %v2100 = vunpack.c.h.b16 %v1318
    %v2101 = vunpack.c.l.b16 %v1319
    %v2102 = vunpack.c.h.b16 %v1319
    %v2103 = vunpack.c.l.b16 %v1320
    %v2104 = vunpack.c.h.b16 %v1320
    %v2105 = vunpack.c.l.b16 %v1321
    %v2106 = vunpack.c.h.b16 %v1321
    %v2107 = vunpack.c.l.b16 %v1322
    %v2108 = vunpack.c.h.b16 %v1322
    %v2109 = vunpack.c.l.b16 %v1323
    %v2110 = vunpack.c.h.b16 %v1323
    %v2111 = vunpack.c.l.b16 %v1324
    %v2112 = vunpack.c.h.b16 %v1324
    %v2113 = vunpack.c.l.b16 %v1325
    %v2114 = vunpack.c.h.b16 %v1325
    %v2115 = vunpack.c.l.b16 %v1326
    %v2116 = vunpack.c.h.b16 %v1326
    %v2117 = vpack.c.b16 %v1609, %v1605
    %v2118 = vpack.c.b16 %v1610, %v1606
    %v2119 = vpack.c.b16 %v1611, %v1607
    %v2120 = vpack.c.b16 %v1612, %v1608
    %v2121 = vpack.c.b16 %v1617, %v1613
    %v2122 = vpack.c.b16 %v1618, %v1614
    %v2123 = vpack.c.b16 %v1619, %v1615
    %v2124 = vpack.c.b16 %v1620, %v1616
    %v2125 = vpack.c.b16 %v1625, %v1621
    %v2126 = vpack.c.b16 %v1626, %v1622
    %v2127 = vpack.c.b16 %v1627, %v1623
    %v2128 = vpack.c.b16 %v1628, %v1624
    %v2129 = vpack.c.b16 %v1633, %v1629
    %v2130 = vpack.c.b16 %v1634, %v1630
    %v2131 = vpack.c.b16 %v1635, %v1631
    %v2132 = vpack.c.b16 %v1636, %v1632
    %v2133 = vpack.c.b16 %v1641, %v1637
    %v2134 = vpack.c.b16 %v1642, %v1638
    %v2135 = vpack.c.b16 %v1643, %v1639
    %v2136 = vpack.c.b16 %v1644, %v1640
    %v2137 = vpack.c.b16 %v1649, %v1645
    %v2138 = vpack.c.b16 %v1650, %v1646
    %v2139 = vpack.c.b16 %v1651, %v1647
    %v2140 = vpack.c.b16 %v1652, %v1648
    %v2141 = vpack.c.b16 %v1657, %v1653
    %v2142 = vpack.c.b16 %v1658, %v1654
    %v2143 = vpack.c.b16 %v1659, %v1655
    %v2144 = vpack.c.b16 %v1660, %v1656
    %v2145 = vpack.c.b16 %v1665, %v1661
    %v2146 = vpack.c.b16 %v1666, %v1662
    %v2147 = vpack.c.b16 %v1667, %v1663
    %v2148 = vpack.c.b16 %v1668, %v1664
    %v2149 = vpack.c.b16 %v1673, %v1669
    %v2150 = vpack.c.b16 %v1674, %v1670
    %v2151 = vpack.c.b16 %v1675, %v1671
    %v2152 = vpack.c.b16 %v1676, %v1672
    %v2153 = vpack.c.b16 %v1681, %v1677
    %v2154 = vpack.c.b16 %v1682, %v1678
    %v2155 = vpack.c.b16 %v1683, %v1679
    %v2156 = vpack.c.b16 %v1684, %v1680
    %v2157 = vpack.c.b16 %v1689, %v1685
    %v2158 = vpack.c.b16 %v1690, %v1686
    %v2159 = vpack.c.b16 %v1691, %v1687
    %v2160 = vpack.c.b16 %v1692, %v1688
    %v2161 = vpack.c.b16 %v1697, %v1693
    %v2162 = vpack.c.b16 %v1698, %v1694
    %v2163 = vpack.c.b16 %v1699, %v1695
    %v2164 = vpack.c.b16 %v1700, %v1696
    %v2165 = vpack.c.b16 %v1705, %v1701
    %v2166 = vpack.c.b16 %v1706, %v1702
    %v2167 = vpack.c.b16 %v1707, %v1703
    %v2168 = vpack.c.b16 %v1708, %v1704
    %v2169 = vpack.c.b16 %v1713, %v1709
    %v2170 = vpack.c.b16 %v1714, %v1710
    %v2171 = vpack.c.b16 %v1715, %v1711
    %v2172 = vpack.c.b16 %v1716, %v1712
    %v2173 = vpack.c.b16 %v1721, %v1717
    %v2174 = vpack.c.b16 %v1722, %v1718
    %v2175 = vpack.c.b16 %v1723, %v1719
    %v2176 = vpack.c.b16 %v1724, %v1720
    %v2177 = vpack.c.b16 %v1729, %v1725
    %v2178 = vpack.c.b16 %v1730, %v1726
    %v2179 = vpack.c.b16 %v1731, %v1727
    %v2180 = vpack.c.b16 %v1732, %v1728
    %v2181 = vpack.c.b16 %v1737, %v1733
    %v2182 = vpack.c.b16 %v1738, %v1734
    %v2183 = vpack.c.b16 %v1739, %v1735
    %v2184 = vpack.c.b16 %v1740, %v1736
    %v2185 = vpack.c.b16 %v1745, %v1741
    %v2186 = vpack.c.b16 %v1746, %v1742
    %v2187 = vpack.c.b16 %v1747, %v1743
    %v2188 = vpack.c.b16 %v1748, %v1744
    %v2189 = vpack.c.b16 %v1753, %v1749
    %v2190 = vpack.c.b16 %v1754, %v1750
    %v2191 = vpack.c.b16 %v1755, %v1751
    %v2192 = vpack.c.b16 %v1756, %v1752
    %v2193 = vpack.c.b16 %v1761, %v1757
    %v2194 = vpack.c.b16 %v1762, %v1758
    %v2195 = vpack.c.b16 %v1763, %v1759
    %v2196 = vpack.c.b16 %v1764, %v1760
    %v2197 = vpack.c.b16 %v1769, %v1765
    %v2198 = vpack.c.b16 %v1770, %v1766
    %v2199 = vpack.c.b16 %v1771, %v1767
    %v2200 = vpack.c.b16 %v1772, %v1768
    %v2201 = vpack.c.b16 %v1777, %v1773
    %v2202 = vpack.c.b16 %v1778, %v1774
    %v2203 = vpack.c.b16 %v1779, %v1775
    %v2204 = vpack.c.b16 %v1780, %v1776
    %v2205 = vpack.c.b16 %v1785, %v1781
    %v2206 = vpack.c.b16 %v1786, %v1782
    %v2207 = vpack.c.b16 %v1787, %v1783
    %v2208 = vpack.c.b16 %v1788, %v1784
    %v2209 = vpack.c.b16 %v1793, %v1789
    %v2210 = vpack.c.b16 %v1794, %v1790
    %v2211 = vpack.c.b16 %v1795, %v1791
    %v2212 = vpack.c.b16 %v1796, %v1792
    %v2213 = vpack.c.b16 %v1801, %v1797
    %v2214 = vpack.c.b16 %v1802, %v1798
    %v2215 = vpack.c.b16 %v1803, %v1799
    %v2216 = vpack.c.b16 %v1804, %v1800
    %v2217 = vpack.c.b16 %v1809, %v1805
    %v2218 = vpack.c.b16 %v1810, %v1806
    %v2219 = vpack.c.b16 %v1811, %v1807
    %v2220 = vpack.c.b16 %v1812, %v1808
    %v2221 = vpack.c.b16 %v1817, %v1813
    %v2222 = vpack.c.b16 %v1818, %v1814
    %v2223 = vpack.c.b16 %v1819, %v1815
    %v2224 = vpack.c.b16 %v1820, %v1816
    %v2225 = vpack.c.b16 %v1825, %v1821
    %v2226 = vpack.c.b16 %v1826, %v1822
    %v2227 = vpack.c.b16 %v1827, %v1823
    %v2228 = vpack.c.b16 %v1828, %v1824
    %v2229 = vpack.c.b16 %v1833, %v1829
    %v2230 = vpack.c.b16 %v1834, %v1830
    %v2231 = vpack.c.b16 %v1835, %v1831
    %v2232 = vpack.c.b16 %v1836, %v1832
    %v2233 = vpack.c.b16 %v1841, %v1837
    %v2234 = vpack.c.b16 %v1842, %v1838
    %v2235 = vpack.c.b16 %v1843, %v1839
    %v2236 = vpack.c.b16 %v1844, %v1840
    %v2237 = vpack.c.b16 %v1849, %v1845
    %v2238 = vpack.c.b16 %v1850, %v1846
    %v2239 = vpack.c.b16 %v1851, %v1847
    %v2240 = vpack.c.b16 %v1852, %v1848
    %v2241 = vpack.c.b16 %v1857, %v1853
    %v2242 = vpack.c.b16 %v1858, %v1854
    %v2243 = vpack.c.b16 %v1859, %v1855
    %v2244 = vpack.c.b16 %v1860, %v1856
    %v2245 = vpack.c.b16 %v1865, %v1861
    %v2246 = vpack.c.b16 %v1866, %v1862
    %v2247 = vpack.c.b16 %v1867, %v1863
    %v2248 = vpack.c.b16 %v1868, %v1864
    %v2249 = vpack.c.b16 %v1873, %v1869
    %v2250 = vpack.c.b16 %v1874, %v1870
    %v2251 = vpack.c.b16 %v1875, %v1871
    %v2252 = vpack.c.b16 %v1876, %v1872
    %v2253 = vpack.c.b16 %v1881, %v1877
    %v2254 = vpack.c.b16 %v1882, %v1878
    %v2255 = vpack.c.b16 %v1883, %v1879
    %v2256 = vpack.c.b16 %v1884, %v1880
    %v2257 = vpack.c.b16 %v1889, %v1885
    %v2258 = vpack.c.b16 %v1890, %v1886
    %v2259 = vpack.c.b16 %v1891, %v1887
    %v2260 = vpack.c.b16 %v1892, %v1888
    %v2261 = vpack.c.b16 %v1897, %v1893
    %v2262 = vpack.c.b16 %v1898, %v1894
    %v2263 = vpack.c.b16 %v1899, %v1895
    %v2264 = vpack.c.b16 %v1900, %v1896
    %v2265 = vpack.c.b16 %v1905, %v1901
    %v2266 = vpack.c.b16 %v1906, %v1902
    %v2267 = vpack.c.b16 %v1907, %v1903
    %v2268 = vpack.c.b16 %v1908, %v1904
    %v2269 = vpack.c.b16 %v1913, %v1909
    %v2270 = vpack.c.b16 %v1914, %v1910
    %v2271 = vpack.c.b16 %v1915, %v1911
    %v2272 = vpack.c.b16 %v1916, %v1912
    %v2273 = vpack.c.b16 %v1921, %v1917
    %v2274 = vpack.c.b16 %v1922, %v1918
    %v2275 = vpack.c.b16 %v1923, %v1919
    %v2276 = vpack.c.b16 %v1924, %v1920
    %v2277 = vpack.c.b16 %v1929, %v1925
    %v2278 = vpack.c.b16 %v1930, %v1926
    %v2279 = vpack.c.b16 %v1931, %v1927
    %v2280 = vpack.c.b16 %v1932, %v1928
    %v2281 = vpack.c.b16 %v1937, %v1933
    %v2282 = vpack.c.b16 %v1938, %v1934
    %v2283 = vpack.c.b16 %v1939, %v1935
    %v2284 = vpack.c.b16 %v1940, %v1936
    %v2285 = vpack.c.b16 %v1945, %v1941
    %v2286 = vpack.c.b16 %v1946, %v1942
    %v2287 = vpack.c.b16 %v1947, %v1943
    %v2288 = vpack.c.b16 %v1948, %v1944
    %v2289 = vpack.c.b16 %v1953, %v1949
    %v2290 = vpack.c.b16 %v1954, %v1950
    %v2291 = vpack.c.b16 %v1955, %v1951
    %v2292 = vpack.c.b16 %v1956, %v1952
    %v2293 = vpack.c.b16 %v1961, %v1957
    %v2294 = vpack.c.b16 %v1962, %v1958
    %v2295 = vpack.c.b16 %v1963, %v1959
    %v2296 = vpack.c.b16 %v1964, %v1960
    %v2297 = vpack.c.b16 %v1969, %v1965
    %v2298 = vpack.c.b16 %v1970, %v1966
    %v2299 = vpack.c.b16 %v1971, %v1967
    %v2300 = vpack.c.b16 %v1972, %v1968
    %v2301 = vpack.c.b16 %v1977, %v1973
    %v2302 = vpack.c.b16 %v1978, %v1974
    %v2303 = vpack.c.b16 %v1979, %v1975
    %v2304 = vpack.c.b16 %v1980, %v1976
    %v2305 = vpack.c.b16 %v1985, %v1981
    %v2306 = vpack.c.b16 %v1986, %v1982
    %v2307 = vpack.c.b16 %v1987, %v1983
    %v2308 = vpack.c.b16 %v1988, %v1984
    %v2309 = vpack.c.b16 %v1993, %v1989
    %v2310 = vpack.c.b16 %v1994, %v1990
    %v2311 = vpack.c.b16 %v1995, %v1991
    %v2312 = vpack.c.b16 %v1996, %v1992
    %v2313 = vpack.c.b16 %v2001, %v1997
    %v2314 = vpack.c.b16 %v2002, %v1998
    %v2315 = vpack.c.b16 %v2003, %v1999
    %v2316 = vpack.c.b16 %v2004, %v2000
    %v2317 = vpack.c.b16 %v2009, %v2005
    %v2318 = vpack.c.b16 %v2010, %v2006
    %v2319 = vpack.c.b16 %v2011, %v2007
    %v2320 = vpack.c.b16 %v2012, %v2008
    %v2321 = vpack.c.b16 %v2017, %v2013
    %v2322 = vpack.c.b16 %v2018, %v2014
    %v2323 = vpack.c.b16 %v2019, %v2015
    %v2324 = vpack.c.b16 %v2020, %v2016
    %v2325 = vpack.c.b16 %v2025, %v2021
    %v2326 = vpack.c.b16 %v2026, %v2022
    %v2327 = vpack.c.b16 %v2027, %v2023
    %v2328 = vpack.c.b16 %v2028, %v2024
    %v2329 = vpack.c.b16 %v2033, %v2029
    %v2330 = vpack.c.b16 %v2034, %v2030
    %v2331 = vpack.c.b16 %v2035, %v2031
    %v2332 = vpack.c.b16 %v2036, %v2032
    %v2333 = vpack.c.b16 %v2041, %v2037
    %v2334 = vpack.c.b16 %v2042, %v2038
    %v2335 = vpack.c.b16 %v2043, %v2039
    %v2336 = vpack.c.b16 %v2044, %v2040
    %v2337 = vpack.c.b16 %v2049, %v2045
    %v2338 = vpack.c.b16 %v2050, %v2046
    %v2339 = vpack.c.b16 %v2051, %v2047
    %v2340 = vpack.c.b16 %v2052, %v2048
    %v2341 = vpack.c.b16 %v2057, %v2053
    %v2342 = vpack.c.b16 %v2058, %v2054
    %v2343 = vpack.c.b16 %v2059, %v2055
    %v2344 = vpack.c.b16 %v2060, %v2056
    %v2345 = vpack.c.b16 %v2065, %v2061
    %v2346 = vpack.c.b16 %v2066, %v2062
    %v2347 = vpack.c.b16 %v2067, %v2063
    %v2348 = vpack.c.b16 %v2068, %v2064
    %v2349 = vpack.c.b16 %v2073, %v2069
    %v2350 = vpack.c.b16 %v2074, %v2070
    %v2351 = vpack.c.b16 %v2075, %v2071
    %v2352 = vpack.c.b16 %v2076, %v2072
    %v2353 = vpack.c.b16 %v2081, %v2077
    %v2354 = vpack.c.b16 %v2082, %v2078
    %v2355 = vpack.c.b16 %v2083, %v2079
    %v2356 = vpack.c.b16 %v2084, %v2080
    %v2357 = vpack.c.b16 %v2089, %v2085
    %v2358 = vpack.c.b16 %v2090, %v2086
    %v2359 = vpack.c.b16 %v2091, %v2087
    %v2360 = vpack.c.b16 %v2092, %v2088
    %v2361 = vpack.c.b16 %v2097, %v2093
    %v2362 = vpack.c.b16 %v2098, %v2094
    %v2363 = vpack.c.b16 %v2099, %v2095
    %v2364 = vpack.c.b16 %v2100, %v2096
    %v2365 = vpack.c.b16 %v2105, %v2101
    %v2366 = vpack.c.b16 %v2106, %v2102
    %v2367 = vpack.c.b16 %v2107, %v2103
    %v2368 = vpack.c.b16 %v2108, %v2104
    %v2369 = vpack.c.b16 %v2113, %v2109
    %v2370 = vpack.c.b16 %v2114, %v2110
    %v2371 = vpack.c.b16 %v2115, %v2111
    %v2372 = vpack.c.b16 %v2116, %v2112
    %2629 = vmatprep.subr.bf16.mxu0 %v2118
    %2630 = vmatpush1.bf16.msra.mxu0 %v2117
    %2631 = vmatprep.subr.bf16.mxu0 %v2122
    %2632 = vmatpush1.bf16.msra.mxu0 %v2121
    %2633 = vmatprep.subr.bf16.mxu0 %v2126
    %2634 = vmatpush1.bf16.msra.mxu0 %v2125
    %2635 = vmatprep.subr.bf16.mxu0 %v2130
    %2636 = vmatpush1.bf16.msra.mxu0 %v2129
    %2637 = vmatprep.subr.bf16.mxu0 %v2134
    %2638 = vmatpush1.bf16.msra.mxu0 %v2133
    %2639 = vmatprep.subr.bf16.mxu0 %v2138
    %2640 = vmatpush1.bf16.msra.mxu0 %v2137
    %2641 = vmatprep.subr.bf16.mxu0 %v2142
    %2642 = vmatpush1.bf16.msra.mxu0 %v2141
    %2643 = vmatprep.subr.bf16.mxu0 %v2146
    %2644 = vmatpush1.bf16.msra.mxu0 %v2145
    %2645 = vmatprep.subr.bf16.mxu0 %v2150
    %2646 = vmatpush1.bf16.msra.mxu0 %v2149
    %2647 = vmatprep.subr.bf16.mxu0 %v2154
    %2648 = vmatpush1.bf16.msra.mxu0 %v2153
    %2649 = vmatprep.subr.bf16.mxu0 %v2158
    %2650 = vmatpush1.bf16.msra.mxu0 %v2157
    %2651 = vmatprep.subr.bf16.mxu0 %v2162
    %2652 = vmatpush1.bf16.msra.mxu0 %v2161
    %2653 = vmatprep.subr.bf16.mxu0 %v2166
    %2654 = vmatpush1.bf16.msra.mxu0 %v2165
    %2655 = vmatprep.subr.bf16.mxu0 %v2170
    %2656 = vmatpush1.bf16.msra.mxu0 %v2169
    %2657 = vmatprep.subr.bf16.mxu0 %v2174
    %2658 = vmatpush1.bf16.msra.mxu0 %v2173
    %2659 = vmatprep.subr.bf16.mxu0 %v2178
    %2660 = vmatpush1.bf16.msra.mxu0 %v2177
    %2661 = vmatprep.mubr.bf16.mxu0 %v1064
    %2662 = vmatmul.mubr.bf16.gmra.mrb[0].mxu0 %v1063
    %v2663 = vpop.f32.mrb[0].mxu0
    %v2664 = vadd.f32 %v1332, %v2663
    %v2665 = vpop.f32.mrb[0].mxu0
    %v2666 = vadd.f32 %v1336, %v2665
    %v2667 = vpop.f32.mrb[0].mxu0
    %v2668 = vpop.f32.mrb[0].mxu0
    %2669 = vdwg.mxu0
    %2670 = vmatprep.subr.bf16.mxu0 %v2182
    %2671 = vmatpush1.bf16.msra.mxu0 %v2181
    %2672 = vmatprep.subr.bf16.mxu0 %v2186
    %2673 = vmatpush1.bf16.msra.mxu0 %v2185
    %2674 = vmatprep.subr.bf16.mxu0 %v2190
    %2675 = vmatpush1.bf16.msra.mxu0 %v2189
    %2676 = vmatprep.subr.bf16.mxu0 %v2194
    %2677 = vmatpush1.bf16.msra.mxu0 %v2193
    %2678 = vmatprep.subr.bf16.mxu0 %v2198
    %2679 = vmatpush1.bf16.msra.mxu0 %v2197
    %2680 = vmatprep.subr.bf16.mxu0 %v2202
    %2681 = vmatpush1.bf16.msra.mxu0 %v2201
    %2682 = vmatprep.subr.bf16.mxu0 %v2206
    %2683 = vmatpush1.bf16.msra.mxu0 %v2205
    %2684 = vmatprep.subr.bf16.mxu0 %v2210
    %2685 = vmatpush1.bf16.msra.mxu0 %v2209
    %2686 = vmatprep.subr.bf16.mxu0 %v2214
    %2687 = vmatpush1.bf16.msra.mxu0 %v2213
    %2688 = vmatprep.subr.bf16.mxu0 %v2218
    %2689 = vmatpush1.bf16.msra.mxu0 %v2217
    %2690 = vmatprep.subr.bf16.mxu0 %v2222
    %2691 = vmatpush1.bf16.msra.mxu0 %v2221
    %2692 = vmatprep.subr.bf16.mxu0 %v2226
    %2693 = vmatpush1.bf16.msra.mxu0 %v2225
    %2694 = vmatprep.subr.bf16.mxu0 %v2230
    %2695 = vmatpush1.bf16.msra.mxu0 %v2229
    %2696 = vmatprep.subr.bf16.mxu0 %v2234
    %2697 = vmatpush1.bf16.msra.mxu0 %v2233
    %2698 = vmatprep.subr.bf16.mxu0 %v2238
    %2699 = vmatpush1.bf16.msra.mxu0 %v2237
    %2700 = vmatprep.subr.bf16.mxu0 %v2242
    %2701 = vmatpush1.bf16.msra.mxu0 %v2241
    %2702 = vmatprep.mubr.bf16.mxu0 %v1066
    %2703 = vmatmul.mubr.bf16.gmra.mrb[0].mxu0 %v1065
    %v2704 = vpop.f32.mrb[0].mxu0
    %v2705 = vadd.f32 %v2664, %v2704
    %v2706 = vpop.f32.mrb[0].mxu0
    %v2707 = vadd.f32 %v2666, %v2706
    %v2708 = vpop.f32.mrb[0].mxu0
    %v2709 = vpop.f32.mrb[0].mxu0
    %2710 = vdwg.mxu0
    %2711 = vmatprep.subr.bf16.mxu0 %v2246
    %2712 = vmatpush1.bf16.msra.mxu0 %v2245
    %2713 = vmatprep.subr.bf16.mxu0 %v2250
    %2714 = vmatpush1.bf16.msra.mxu0 %v2249
    %2715 = vmatprep.subr.bf16.mxu0 %v2254
    %2716 = vmatpush1.bf16.msra.mxu0 %v2253
    %2717 = vmatprep.subr.bf16.mxu0 %v2258
    %2718 = vmatpush1.bf16.msra.mxu0 %v2257
    %2719 = vmatprep.subr.bf16.mxu0 %v2262
    %2720 = vmatpush1.bf16.msra.mxu0 %v2261
    %2721 = vmatprep.subr.bf16.mxu0 %v2266
    %2722 = vmatpush1.bf16.msra.mxu0 %v2265
    %2723 = vmatprep.subr.bf16.mxu0 %v2270
    %2724 = vmatpush1.bf16.msra.mxu0 %v2269
    %2725 = vmatprep.subr.bf16.mxu0 %v2274
    %2726 = vmatpush1.bf16.msra.mxu0 %v2273
    %2727 = vmatprep.subr.bf16.mxu0 %v2278
    %2728 = vmatpush1.bf16.msra.mxu0 %v2277
    %2729 = vmatprep.subr.bf16.mxu0 %v2282
    %2730 = vmatpush1.bf16.msra.mxu0 %v2281
    %2731 = vmatprep.subr.bf16.mxu0 %v2286
    %2732 = vmatpush1.bf16.msra.mxu0 %v2285
    %2733 = vmatprep.subr.bf16.mxu0 %v2290
    %2734 = vmatpush1.bf16.msra.mxu0 %v2289
    %2735 = vmatprep.subr.bf16.mxu0 %v2294
    %2736 = vmatpush1.bf16.msra.mxu0 %v2293
    %2737 = vmatprep.subr.bf16.mxu0 %v2298
    %2738 = vmatpush1.bf16.msra.mxu0 %v2297
    %2739 = vmatprep.subr.bf16.mxu0 %v2302
    %2740 = vmatpush1.bf16.msra.mxu0 %v2301
    %2741 = vmatprep.subr.bf16.mxu0 %v2306
    %2742 = vmatpush1.bf16.msra.mxu0 %v2305
    %2743 = vmatprep.mubr.bf16.mxu0 %v1068
    %2744 = vmatmul.mubr.bf16.gmra.mrb[0].mxu0 %v1067
    %v2745 = vpop.f32.mrb[0].mxu0
    %v2746 = vadd.f32 %v2705, %v2745
    %v2747 = vpop.f32.mrb[0].mxu0
    %v2748 = vadd.f32 %v2707, %v2747
    %v2749 = vpop.f32.mrb[0].mxu0
    %v2750 = vpop.f32.mrb[0].mxu0
    %2751 = vdwg.mxu0
    %2752 = vmatprep.subr.bf16.mxu0 %v2310
    %2753 = vmatpush1.bf16.msra.mxu0 %v2309
    %2754 = vmatprep.subr.bf16.mxu0 %v2314
    %2755 = vmatpush1.bf16.msra.mxu0 %v2313
    %2756 = vmatprep.subr.bf16.mxu0 %v2318
    %2757 = vmatpush1.bf16.msra.mxu0 %v2317
    %2758 = vmatprep.subr.bf16.mxu0 %v2322
    %2759 = vmatpush1.bf16.msra.mxu0 %v2321
    %2760 = vmatprep.subr.bf16.mxu0 %v2326
    %2761 = vmatpush1.bf16.msra.mxu0 %v2325
    %2762 = vmatprep.subr.bf16.mxu0 %v2330
    %2763 = vmatpush1.bf16.msra.mxu0 %v2329
    %2764 = vmatprep.subr.bf16.mxu0 %v2334
    %2765 = vmatpush1.bf16.msra.mxu0 %v2333
    %2766 = vmatprep.subr.bf16.mxu0 %v2338
    %2767 = vmatpush1.bf16.msra.mxu0 %v2337
    %2768 = vmatprep.subr.bf16.mxu0 %v2342
    %2769 = vmatpush1.bf16.msra.mxu0 %v2341
    %2770 = vmatprep.subr.bf16.mxu0 %v2346
    %2771 = vmatpush1.bf16.msra.mxu0 %v2345
    %2772 = vmatprep.subr.bf16.mxu0 %v2350
    %2773 = vmatpush1.bf16.msra.mxu0 %v2349
    %2774 = vmatprep.subr.bf16.mxu0 %v2354
    %2775 = vmatpush1.bf16.msra.mxu0 %v2353
    %2776 = vmatprep.subr.bf16.mxu0 %v2358
    %2777 = vmatpush1.bf16.msra.mxu0 %v2357
    %2778 = vmatprep.subr.bf16.mxu0 %v2362
    %2779 = vmatpush1.bf16.msra.mxu0 %v2361
    %2780 = vmatprep.subr.bf16.mxu0 %v2366
    %2781 = vmatpush1.bf16.msra.mxu0 %v2365
    %2782 = vmatprep.subr.bf16.mxu0 %v2370
    %2783 = vmatpush1.bf16.msra.mxu0 %v2369
    %2784 = vmatprep.mubr.bf16.mxu0 %v1070
    %2785 = vmatmul.mubr.bf16.gmra.mrb[0].mxu0 %v1069
    %v2786 = vpop.f32.mrb[0].mxu0
    %v2787 = vadd.f32 %v2746, %v2786
    %v2788 = vpop.f32.mrb[0].mxu0
    %v2789 = vadd.f32 %v2748, %v2788
    %v2790 = vpop.f32.mrb[0].mxu0
    %v2791 = vpop.f32.mrb[0].mxu0
    %2792 = vdwg.mxu0
    %2793 = vmatprep.subr.bf16.mxu0 %v2120
    %2794 = vmatpush1.bf16.msra.mxu0 %v2119
    %2795 = vmatprep.subr.bf16.mxu0 %v2124
    %2796 = vmatpush1.bf16.msra.mxu0 %v2123
    %2797 = vmatprep.subr.bf16.mxu0 %v2128
    %2798 = vmatpush1.bf16.msra.mxu0 %v2127
    %2799 = vmatprep.subr.bf16.mxu0 %v2132
    %2800 = vmatpush1.bf16.msra.mxu0 %v2131
    %2801 = vmatprep.subr.bf16.mxu0 %v2136
    %2802 = vmatpush1.bf16.msra.mxu0 %v2135
    %2803 = vmatprep.subr.bf16.mxu0 %v2140
    %2804 = vmatpush1.bf16.msra.mxu0 %v2139
    %2805 = vmatprep.subr.bf16.mxu0 %v2144
    %2806 = vmatpush1.bf16.msra.mxu0 %v2143
    %2807 = vmatprep.subr.bf16.mxu0 %v2148
    %2808 = vmatpush1.bf16.msra.mxu0 %v2147
    %2809 = vmatprep.subr.bf16.mxu0 %v2152
    %2810 = vmatpush1.bf16.msra.mxu0 %v2151
    %2811 = vmatprep.subr.bf16.mxu0 %v2156
    %2812 = vmatpush1.bf16.msra.mxu0 %v2155
    %2813 = vmatprep.subr.bf16.mxu0 %v2160
    %2814 = vmatpush1.bf16.msra.mxu0 %v2159
    %2815 = vmatprep.subr.bf16.mxu0 %v2164
    %2816 = vmatpush1.bf16.msra.mxu0 %v2163
    %2817 = vmatprep.subr.bf16.mxu0 %v2168
    %2818 = vmatpush1.bf16.msra.mxu0 %v2167
    %2819 = vmatprep.subr.bf16.mxu0 %v2172
    %2820 = vmatpush1.bf16.msra.mxu0 %v2171
    %2821 = vmatprep.subr.bf16.mxu0 %v2176
    %2822 = vmatpush1.bf16.msra.mxu0 %v2175
    %2823 = vmatprep.subr.bf16.mxu0 %v2180
    %2824 = vmatpush1.bf16.msra.mxu0 %v2179
    %2825 = vmatprep.mubr.bf16.mxu0 %v1064
    %2826 = vmatmul.mubr.bf16.gmra.mrb[0].mxu0 %v1063
    %v2827 = vpop.f32.mrb[0].mxu0
    %v2828 = vadd.f32 %v1340, %v2827
    %v2829 = vpop.f32.mrb[0].mxu0
    %v2830 = vadd.f32 %v1344, %v2829
    %v2831 = vpop.f32.mrb[0].mxu0
    %v2832 = vpop.f32.mrb[0].mxu0
    %2833 = vdwg.mxu0
    %2834 = vmatprep.subr.bf16.mxu0 %v2184
    %2835 = vmatpush1.bf16.msra.mxu0 %v2183
    %2836 = vmatprep.subr.bf16.mxu0 %v2188
    %2837 = vmatpush1.bf16.msra.mxu0 %v2187
    %2838 = vmatprep.subr.bf16.mxu0 %v2192
    %2839 = vmatpush1.bf16.msra.mxu0 %v2191
    %2840 = vmatprep.subr.bf16.mxu0 %v2196
    %2841 = vmatpush1.bf16.msra.mxu0 %v2195
    %2842 = vmatprep.subr.bf16.mxu0 %v2200
    %2843 = vmatpush1.bf16.msra.mxu0 %v2199
    %2844 = vmatprep.subr.bf16.mxu0 %v2204
    %2845 = vmatpush1.bf16.msra.mxu0 %v2203
    %2846 = vmatprep.subr.bf16.mxu0 %v2208
    %2847 = vmatpush1.bf16.msra.mxu0 %v2207
    %2848 = vmatprep.subr.bf16.mxu0 %v2212
    %2849 = vmatpush1.bf16.msra.mxu0 %v2211
    %2850 = vmatprep.subr.bf16.mxu0 %v2216
    %2851 = vmatpush1.bf16.msra.mxu0 %v2215
    %2852 = vmatprep.subr.bf16.mxu0 %v2220
    %2853 = vmatpush1.bf16.msra.mxu0 %v2219
    %2854 = vmatprep.subr.bf16.mxu0 %v2224
    %2855 = vmatpush1.bf16.msra.mxu0 %v2223
    %2856 = vmatprep.subr.bf16.mxu0 %v2228
    %2857 = vmatpush1.bf16.msra.mxu0 %v2227
    %2858 = vmatprep.subr.bf16.mxu0 %v2232
    %2859 = vmatpush1.bf16.msra.mxu0 %v2231
    %2860 = vmatprep.subr.bf16.mxu0 %v2236
    %2861 = vmatpush1.bf16.msra.mxu0 %v2235
    %2862 = vmatprep.subr.bf16.mxu0 %v2240
    %2863 = vmatpush1.bf16.msra.mxu0 %v2239
    %2864 = vmatprep.subr.bf16.mxu0 %v2244
    %2865 = vmatpush1.bf16.msra.mxu0 %v2243
    %2866 = vmatprep.mubr.bf16.mxu0 %v1066
    %2867 = vmatmul.mubr.bf16.gmra.mrb[0].mxu0 %v1065
    %v2868 = vpop.f32.mrb[0].mxu0
    %v2869 = vadd.f32 %v2828, %v2868
    %v2870 = vpop.f32.mrb[0].mxu0
    %v2871 = vadd.f32 %v2830, %v2870
    %v2872 = vpop.f32.mrb[0].mxu0
    %v2873 = vpop.f32.mrb[0].mxu0
    %2874 = vdwg.mxu0
    %2875 = vmatprep.subr.bf16.mxu0 %v2248
    %2876 = vmatpush1.bf16.msra.mxu0 %v2247
    %2877 = vmatprep.subr.bf16.mxu0 %v2252
    %2878 = vmatpush1.bf16.msra.mxu0 %v2251
    %2879 = vmatprep.subr.bf16.mxu0 %v2256
    %2880 = vmatpush1.bf16.msra.mxu0 %v2255
    %2881 = vmatprep.subr.bf16.mxu0 %v2260
    %2882 = vmatpush1.bf16.msra.mxu0 %v2259
    %2883 = vmatprep.subr.bf16.mxu0 %v2264
    %2884 = vmatpush1.bf16.msra.mxu0 %v2263
    %2885 = vmatprep.subr.bf16.mxu0 %v2268
    %2886 = vmatpush1.bf16.msra.mxu0 %v2267
    %2887 = vmatprep.subr.bf16.mxu0 %v2272
    %2888 = vmatpush1.bf16.msra.mxu0 %v2271
    %2889 = vmatprep.subr.bf16.mxu0 %v2276
    %2890 = vmatpush1.bf16.msra.mxu0 %v2275
    %2891 = vmatprep.subr.bf16.mxu0 %v2280
    %2892 = vmatpush1.bf16.msra.mxu0 %v2279
    %2893 = vmatprep.subr.bf16.mxu0 %v2284
    %2894 = vmatpush1.bf16.msra.mxu0 %v2283
    %2895 = vmatprep.subr.bf16.mxu0 %v2288
    %2896 = vmatpush1.bf16.msra.mxu0 %v2287
    %2897 = vmatprep.subr.bf16.mxu0 %v2292
    %2898 = vmatpush1.bf16.msra.mxu0 %v2291
    %2899 = vmatprep.subr.bf16.mxu0 %v2296
    %2900 = vmatpush1.bf16.msra.mxu0 %v2295
    %2901 = vmatprep.subr.bf16.mxu0 %v2300
    %2902 = vmatpush1.bf16.msra.mxu0 %v2299
    %2903 = vmatprep.subr.bf16.mxu0 %v2304
    %2904 = vmatpush1.bf16.msra.mxu0 %v2303
    %2905 = vmatprep.subr.bf16.mxu0 %v2308
    %2906 = vmatpush1.bf16.msra.mxu0 %v2307
    %2907 = vmatprep.mubr.bf16.mxu0 %v1068
    %2908 = vmatmul.mubr.bf16.gmra.mrb[0].mxu0 %v1067
    %v2909 = vpop.f32.mrb[0].mxu0
    %v2910 = vadd.f32 %v2869, %v2909
    %v2911 = vpop.f32.mrb[0].mxu0
    %v2912 = vadd.f32 %v2871, %v2911
    %v2913 = vpop.f32.mrb[0].mxu0
    %v2914 = vpop.f32.mrb[0].mxu0
    %2915 = vdwg.mxu0
    %2916 = vmatprep.subr.bf16.mxu0 %v2312
    %2917 = vmatpush1.bf16.msra.mxu0 %v2311
    %2918 = vmatprep.subr.bf16.mxu0 %v2316
    %2919 = vmatpush1.bf16.msra.mxu0 %v2315
    %2920 = vmatprep.subr.bf16.mxu0 %v2320
    %2921 = vmatpush1.bf16.msra.mxu0 %v2319
    %2922 = vmatprep.subr.bf16.mxu0 %v2324
    %2923 = vmatpush1.bf16.msra.mxu0 %v2323
    %2924 = vmatprep.subr.bf16.mxu0 %v2328
    %2925 = vmatpush1.bf16.msra.mxu0 %v2327
    %2926 = vmatprep.subr.bf16.mxu0 %v2332
    %2927 = vmatpush1.bf16.msra.mxu0 %v2331
    %2928 = vmatprep.subr.bf16.mxu0 %v2336
    %2929 = vmatpush1.bf16.msra.mxu0 %v2335
    %2930 = vmatprep.subr.bf16.mxu0 %v2340
    %2931 = vmatpush1.bf16.msra.mxu0 %v2339
    %2932 = vmatprep.subr.bf16.mxu0 %v2344
    %2933 = vmatpush1.bf16.msra.mxu0 %v2343
    %2934 = vmatprep.subr.bf16.mxu0 %v2348
    %2935 = vmatpush1.bf16.msra.mxu0 %v2347
    %2936 = vmatprep.subr.bf16.mxu0 %v2352
    %2937 = vmatpush1.bf16.msra.mxu0 %v2351
    %2938 = vmatprep.subr.bf16.mxu0 %v2356
    %2939 = vmatpush1.bf16.msra.mxu0 %v2355
    %2940 = vmatprep.subr.bf16.mxu0 %v2360
    %2941 = vmatpush1.bf16.msra.mxu0 %v2359
    %2942 = vmatprep.subr.bf16.mxu0 %v2364
    %2943 = vmatpush1.bf16.msra.mxu0 %v2363
    %2944 = vmatprep.subr.bf16.mxu0 %v2368
    %2945 = vmatpush1.bf16.msra.mxu0 %v2367
    %2946 = vmatprep.subr.bf16.mxu0 %v2372
    %2947 = vmatpush1.bf16.msra.mxu0 %v2371
    %2948 = vmatprep.mubr.bf16.mxu0 %v1070
    %2949 = vmatmul.mubr.bf16.gmra.mrb[0].mxu0 %v1069
    %v2950 = vpop.f32.mrb[0].mxu0
    %v2951 = vadd.f32 %v2910, %v2950
    %v2952 = vpop.f32.mrb[0].mxu0
    %v2953 = vadd.f32 %v2912, %v2952
    %v2954 = vpop.f32.mrb[0].mxu0
    %v2955 = vpop.f32.mrb[0].mxu0
    %2956 = vdwg.mxu0
    %v2957 = vmax.f32 %v2787, 0.0
    %v2958 = vmax.f32 %v2789, 0.0
    %v2959 = vmax.f32 %v2951, 0.0
    %v2960 = vmax.f32 %v2953, 0.0
    %v2961 = vpack.c.bf16 %v2957, %v2957
    %v2962 = vpack.c.bf16 %v2958, %v2958
    %v2963 = vpack.c.bf16 %v2959, %v2959
    %v2964 = vpack.c.bf16 %v2960, %v2960
    %v2965 = vld [vmem:[%s6] sm:$0xf]
    %v2966 = vld [vmem:[%s6 + $0x4] sm:$0xf]
    %v2967 = vld [vmem:[%s6 + $0x8] sm:$0xf]
    %v2968 = vld [vmem:[%s6 + $0xc] sm:$0xf]
    %v2969 = vld [vmem:[%s6 + $0x10] sm:$0xf]
    %v2970 = vld [vmem:[%s6 + $0x14] sm:$0xf]
    %v2971 = vld [vmem:[%s6 + $0x18] sm:$0xf]
    %v2972 = vld [vmem:[%s6 + $0x1c] sm:$0xf]
    %v2973 = vld [vmem:[%s6 + $0x20] sm:$0xf]
    %v2974 = vld [vmem:[%s6 + $0x24] sm:$0xf]
    %v2975 = vld [vmem:[%s6 + $0x28] sm:$0xf]
    %v2976 = vld [vmem:[%s6 + $0x2c] sm:$0xf]
    %v2977 = vld [vmem:[%s6 + $0x30] sm:$0xf]
    %v2978 = vld [vmem:[%s6 + $0x34] sm:$0xf]
    %v2979 = vld [vmem:[%s6 + $0x38] sm:$0xf]
    %v2980 = vld [vmem:[%s6 + $0x3c] sm:$0xf]
    %v2981 = vld [vmem:[%s6 + $0x40] sm:$0xf]
    %v2982 = vld [vmem:[%s6 + $0x44] sm:$0xf]
    %v2983 = vld [vmem:[%s6 + $0x48] sm:$0xf]
    %v2984 = vld [vmem:[%s6 + $0x4c] sm:$0xf]
    %v2985 = vld [vmem:[%s6 + $0x50] sm:$0xf]
    %v2986 = vld [vmem:[%s6 + $0x54] sm:$0xf]
    %v2987 = vld [vmem:[%s6 + $0x58] sm:$0xf]
    %v2988 = vld [vmem:[%s6 + $0x5c] sm:$0xf]
    %v2989 = vld [vmem:[%s6 + $0x60] sm:$0xf]
    %v2990 = vld [vmem:[%s6 + $0x64] sm:$0xf]
    %v2991 = vld [vmem:[%s6 + $0x68] sm:$0xf]
    %v2992 = vld [vmem:[%s6 + $0x6c] sm:$0xf]
    %v2993 = vld [vmem:[%s6 + $0x70] sm:$0xf]
    %v2994 = vld [vmem:[%s6 + $0x74] sm:$0xf]
    %v2995 = vld [vmem:[%s6 + $0x78] sm:$0xf]
    %v2996 = vld [vmem:[%s6 + $0x7c] sm:$0xf]
    %v2997 = vld [vmem:[%s6 + $0x80] sm:$0xf]
    %v2998 = vld [vmem:[%s6 + $0x84] sm:$0xf]
    %v2999 = vld [vmem:[%s6 + $0x88] sm:$0xf]
    %v3000 = vld [vmem:[%s6 + $0x8c] sm:$0xf]
    %v3001 = vld [vmem:[%s6 + $0x90] sm:$0xf]
    %v3002 = vld [vmem:[%s6 + $0x94] sm:$0xf]
    %v3003 = vld [vmem:[%s6 + $0x98] sm:$0xf]
    %v3004 = vld [vmem:[%s6 + $0x9c] sm:$0xf]
    %v3005 = vld [vmem:[%s6 + $0xa0] sm:$0xf]
    %v3006 = vld [vmem:[%s6 + $0xa4] sm:$0xf]
    %v3007 = vld [vmem:[%s6 + $0xa8] sm:$0xf]
    %v3008 = vld [vmem:[%s6 + $0xac] sm:$0xf]
    %v3009 = vld [vmem:[%s6 + $0xb0] sm:$0xf]
    %v3010 = vld [vmem:[%s6 + $0xb4] sm:$0xf]
    %v3011 = vld [vmem:[%s6 + $0xb8] sm:$0xf]
    %v3012 = vld [vmem:[%s6 + $0xbc] sm:$0xf]
    %v3013 = vld [vmem:[%s6 + $0xc0] sm:$0xf]
    %v3014 = vld [vmem:[%s6 + $0xc4] sm:$0xf]
    %v3015 = vld [vmem:[%s6 + $0xc8] sm:$0xf]
    %v3016 = vld [vmem:[%s6 + $0xcc] sm:$0xf]
    %v3017 = vld [vmem:[%s6 + $0xd0] sm:$0xf]
    %v3018 = vld [vmem:[%s6 + $0xd4] sm:$0xf]
    %v3019 = vld [vmem:[%s6 + $0xd8] sm:$0xf]
    %v3020 = vld [vmem:[%s6 + $0xdc] sm:$0xf]
    %v3021 = vld [vmem:[%s6 + $0xe0] sm:$0xf]
    %v3022 = vld [vmem:[%s6 + $0xe4] sm:$0xf]
    %v3023 = vld [vmem:[%s6 + $0xe8] sm:$0xf]
    %v3024 = vld [vmem:[%s6 + $0xec] sm:$0xf]
    %v3025 = vld [vmem:[%s6 + $0xf0] sm:$0xf]
    %v3026 = vld [vmem:[%s6 + $0xf4] sm:$0xf]
    %v3027 = vld [vmem:[%s6 + $0xf8] sm:$0xf]
    %v3028 = vld [vmem:[%s6 + $0xfc] sm:$0xf]
    %v3029 = vld [vmem:[%s7] sm:$0x1]
    %v3031 = vlaneseq
    %v3032 = vshrl.u32 %v3031, 7
    %v3033 = vsub.s32 0, %v3032
    %v3034 = vrot.slane %v3029, %v3033
    %v3100 = vunpack.c.l.b16 %v2965
    %v3101 = vunpack.c.l.b16 %v2966
    %v3102 = vunpack.c.l.b16 %v2967
    %v3103 = vunpack.c.l.b16 %v2968
    %v3104 = vunpack.c.l.b16 %v2969
    %v3105 = vunpack.c.l.b16 %v2970
    %v3106 = vunpack.c.l.b16 %v2971
    %v3107 = vunpack.c.l.b16 %v2972
    %v3108 = vunpack.c.l.b16 %v2973
    %v3109 = vunpack.c.l.b16 %v2974
    %v3110 = vunpack.c.l.b16 %v2975
    %v3111 = vunpack.c.l.b16 %v2976
    %v3112 = vunpack.c.l.b16 %v2977
    %v3113 = vunpack.c.l.b16 %v2978
    %v3114 = vunpack.c.l.b16 %v2979
    %v3115 = vunpack.c.l.b16 %v2980
    %v3116 = vunpack.c.l.b16 %v2981
    %v3117 = vunpack.c.l.b16 %v2982
    %v3118 = vunpack.c.l.b16 %v2983
    %v3119 = vunpack.c.l.b16 %v2984
    %v3120 = vunpack.c.l.b16 %v2985
    %v3121 = vunpack.c.l.b16 %v2986
    %v3122 = vunpack.c.l.b16 %v2987
    %v3123 = vunpack.c.l.b16 %v2988
    %v3124 = vunpack.c.l.b16 %v2989
    %v3125 = vunpack.c.l.b16 %v2990
    %v3126 = vunpack.c.l.b16 %v2991
    %v3127 = vunpack.c.l.b16 %v2992
    %v3128 = vunpack.c.l.b16 %v2993
    %v3129 = vunpack.c.l.b16 %v2994
    %v3130 = vunpack.c.l.b16 %v2995
    %v3131 = vunpack.c.l.b16 %v2996
    %v3132 = vunpack.c.l.b16 %v2997
    %v3133 = vunpack.c.l.b16 %v2998
    %v3134 = vunpack.c.l.b16 %v2999
    %v3135 = vunpack.c.l.b16 %v3000
    %v3136 = vunpack.c.l.b16 %v3001
    %v3137 = vunpack.c.l.b16 %v3002
    %v3138 = vunpack.c.l.b16 %v3003
    %v3139 = vunpack.c.l.b16 %v3004
    %v3140 = vunpack.c.l.b16 %v3005
    %v3141 = vunpack.c.l.b16 %v3006
    %v3142 = vunpack.c.l.b16 %v3007
    %v3143 = vunpack.c.l.b16 %v3008
    %v3144 = vunpack.c.l.b16 %v3009
    %v3145 = vunpack.c.l.b16 %v3010
    %v3146 = vunpack.c.l.b16 %v3011
    %v3147 = vunpack.c.l.b16 %v3012
    %v3148 = vunpack.c.l.b16 %v3013
    %v3149 = vunpack.c.l.b16 %v3014
    %v3150 = vunpack.c.l.b16 %v3015
    %v3151 = vunpack.c.l.b16 %v3016
    %v3152 = vunpack.c.l.b16 %v3017
    %v3153 = vunpack.c.l.b16 %v3018
    %v3154 = vunpack.c.l.b16 %v3019
    %v3155 = vunpack.c.l.b16 %v3020
    %v3156 = vunpack.c.l.b16 %v3021
    %v3157 = vunpack.c.l.b16 %v3022
    %v3158 = vunpack.c.l.b16 %v3023
    %v3159 = vunpack.c.l.b16 %v3024
    %v3160 = vunpack.c.l.b16 %v3025
    %v3161 = vunpack.c.l.b16 %v3026
    %v3162 = vunpack.c.l.b16 %v3027
    %v3163 = vunpack.c.l.b16 %v3028
    %v3164 = vpack.c.b16 %v3101, %v3100
    %v3165 = vpack.c.b16 %v3103, %v3102
    %v3166 = vpack.c.b16 %v3105, %v3104
    %v3167 = vpack.c.b16 %v3107, %v3106
    %v3168 = vpack.c.b16 %v3109, %v3108
    %v3169 = vpack.c.b16 %v3111, %v3110
    %v3170 = vpack.c.b16 %v3113, %v3112
    %v3171 = vpack.c.b16 %v3115, %v3114
    %v3172 = vpack.c.b16 %v3117, %v3116
    %v3173 = vpack.c.b16 %v3119, %v3118
    %v3174 = vpack.c.b16 %v3121, %v3120
    %v3175 = vpack.c.b16 %v3123, %v3122
    %v3176 = vpack.c.b16 %v3125, %v3124
    %v3177 = vpack.c.b16 %v3127, %v3126
    %v3178 = vpack.c.b16 %v3129, %v3128
    %v3179 = vpack.c.b16 %v3131, %v3130
    %v3180 = vpack.c.b16 %v3133, %v3132
    %v3181 = vpack.c.b16 %v3135, %v3134
    %v3182 = vpack.c.b16 %v3137, %v3136
    %v3183 = vpack.c.b16 %v3139, %v3138
    %v3184 = vpack.c.b16 %v3141, %v3140
    %v3185 = vpack.c.b16 %v3143, %v3142
    %v3186 = vpack.c.b16 %v3145, %v3144
    %v3187 = vpack.c.b16 %v3147, %v3146
    %v3188 = vpack.c.b16 %v3149, %v3148
    %v3189 = vpack.c.b16 %v3151, %v3150
    %v3190 = vpack.c.b16 %v3153, %v3152
    %v3191 = vpack.c.b16 %v3155, %v3154
    %v3192 = vpack.c.b16 %v3157, %v3156
    %v3193 = vpack.c.b16 %v3159, %v3158
    %v3194 = vpack.c.b16 %v3161, %v3160
    %v3195 = vpack.c.b16 %v3163, %v3162
    %3228 = vmatprep.subr.bf16.mxu0 0
    %3229 = vmatpush1.bf16.msra.mxu0 %v3164
    %3230 = vmatprep.subr.bf16.mxu0 0
    %3231 = vmatpush1.bf16.msra.mxu0 %v3165
    %3232 = vmatprep.subr.bf16.mxu0 0
    %3233 = vmatpush1.bf16.msra.mxu0 %v3166
    %3234 = vmatprep.subr.bf16.mxu0 0
    %3235 = vmatpush1.bf16.msra.mxu0 %v3167
    %3236 = vmatprep.subr.bf16.mxu0 0
    %3237 = vmatpush1.bf16.msra.mxu0 %v3168
    %3238 = vmatprep.subr.bf16.mxu0 0
    %3239 = vmatpush1.bf16.msra.mxu0 %v3169
    %3240 = vmatprep.subr.bf16.mxu0 0
    %3241 = vmatpush1.bf16.msra.mxu0 %v3170
    %3242 = vmatprep.subr.bf16.mxu0 0
    %3243 = vmatpush1.bf16.msra.mxu0 %v3171
    %3244 = vmatprep.subr.bf16.mxu0 0
    %3245 = vmatpush1.bf16.msra.mxu0 %v3172
    %3246 = vmatprep.subr.bf16.mxu0 0
    %3247 = vmatpush1.bf16.msra.mxu0 %v3173
    %3248 = vmatprep.subr.bf16.mxu0 0
    %3249 = vmatpush1.bf16.msra.mxu0 %v3174
    %3250 = vmatprep.subr.bf16.mxu0 0
    %3251 = vmatpush1.bf16.msra.mxu0 %v3175
    %3252 = vmatprep.subr.bf16.mxu0 0
    %3253 = vmatpush1.bf16.msra.mxu0 %v3176
    %3254 = vmatprep.subr.bf16.mxu0 0
    %3255 = vmatpush1.bf16.msra.mxu0 %v3177
    %3256 = vmatprep.subr.bf16.mxu0 0
    %3257 = vmatpush1.bf16.msra.mxu0 %v3178
    %3258 = vmatprep.subr.bf16.mxu0 0
    %3259 = vmatpush1.bf16.msra.mxu0 %v3179
    %3260 = vmatprep.mubr.bf16.mxu0 %v2962
    %3261 = vmatmul.mubr.bf16.gmra.mrb[0].mxu0 %v2961
    %v3262 = vpop.f32.mrb[0].mxu0
    %v3263 = vadd.f32 %v3034, %v3262
    %v3264 = vpop.f32.mrb[0].mxu0
    %v3265 = vpop.f32.mrb[0].mxu0
    %v3266 = vpop.f32.mrb[0].mxu0
    %3267 = vdwg.mxu0
    %3268 = vmatprep.subr.bf16.mxu0 0
    %3269 = vmatpush1.bf16.msra.mxu0 %v3180
    %3270 = vmatprep.subr.bf16.mxu0 0
    %3271 = vmatpush1.bf16.msra.mxu0 %v3181
    %3272 = vmatprep.subr.bf16.mxu0 0
    %3273 = vmatpush1.bf16.msra.mxu0 %v3182
    %3274 = vmatprep.subr.bf16.mxu0 0
    %3275 = vmatpush1.bf16.msra.mxu0 %v3183
    %3276 = vmatprep.subr.bf16.mxu0 0
    %3277 = vmatpush1.bf16.msra.mxu0 %v3184
    %3278 = vmatprep.subr.bf16.mxu0 0
    %3279 = vmatpush1.bf16.msra.mxu0 %v3185
    %3280 = vmatprep.subr.bf16.mxu0 0
    %3281 = vmatpush1.bf16.msra.mxu0 %v3186
    %3282 = vmatprep.subr.bf16.mxu0 0
    %3283 = vmatpush1.bf16.msra.mxu0 %v3187
    %3284 = vmatprep.subr.bf16.mxu0 0
    %3285 = vmatpush1.bf16.msra.mxu0 %v3188
    %3286 = vmatprep.subr.bf16.mxu0 0
    %3287 = vmatpush1.bf16.msra.mxu0 %v3189
    %3288 = vmatprep.subr.bf16.mxu0 0
    %3289 = vmatpush1.bf16.msra.mxu0 %v3190
    %3290 = vmatprep.subr.bf16.mxu0 0
    %3291 = vmatpush1.bf16.msra.mxu0 %v3191
    %3292 = vmatprep.subr.bf16.mxu0 0
    %3293 = vmatpush1.bf16.msra.mxu0 %v3192
    %3294 = vmatprep.subr.bf16.mxu0 0
    %3295 = vmatpush1.bf16.msra.mxu0 %v3193
    %3296 = vmatprep.subr.bf16.mxu0 0
    %3297 = vmatpush1.bf16.msra.mxu0 %v3194
    %3298 = vmatprep.subr.bf16.mxu0 0
    %3299 = vmatpush1.bf16.msra.mxu0 %v3195
    %3300 = vmatprep.mubr.bf16.mxu0 %v2964
    %3301 = vmatmul.mubr.bf16.gmra.mrb[0].mxu0 %v2963
    %v3302 = vpop.f32.mrb[0].mxu0
    %v3303 = vadd.f32 %v3263, %v3302
    %v3304 = vpop.f32.mrb[0].mxu0
    %v3305 = vpop.f32.mrb[0].mxu0
    %v3306 = vpop.f32.mrb[0].mxu0
    %3307 = vdwg.mxu0
    %v3308 = vmax.f32 %v3303, 0.0
    %v3309 = vld [vmem:[%s8] sm:$0xff]
    %v3310 = vld [vmem:[%s8 + $0x8] sm:$0xff]
    %v3311 = vld [vmem:[%s8 + $0x10] sm:$0xff]
    %v3312 = vld [vmem:[%s8 + $0x18] sm:$0xff]
    %v3313 = vld [vmem:[%s8 + $0x20] sm:$0xff]
    %v3314 = vld [vmem:[%s8 + $0x28] sm:$0xff]
    %v3315 = vld [vmem:[%s8 + $0x30] sm:$0xff]
    %v3316 = vld [vmem:[%s8 + $0x38] sm:$0xff]
    %v3317 = vld [vmem:[%s9] sm:$0x1]
    %v3319 = vlaneseq
    %v3320 = vshrl.u32 %v3319, 7
    %v3321 = vsub.s32 0, %v3320
    %v3322 = vrot.slane %v3317, %v3321
    %vm3324 = vcmask 523264
    %v3326 = vsel %vm3324, %v3308, 0
    %3328 = vmatprep.subr.mxu0 0.0
    %3329 = vmatpush1.msra.mxu0 %v3309
    %3330 = vmatprep.subr.mxu0 0.0
    %3331 = vmatpush1.msra.mxu0 %v3310
    %3332 = vmatprep.subr.mxu0 0.0
    %3333 = vmatpush1.msra.mxu0 %v3311
    %3334 = vmatprep.subr.mxu0 0.0
    %3335 = vmatpush1.msra.mxu0 %v3312
    %3336 = vmatprep.subr.mxu0 0.0
    %3337 = vmatpush1.msra.mxu0 %v3313
    %3338 = vmatprep.subr.mxu0 0.0
    %3339 = vmatpush1.msra.mxu0 %v3314
    %3340 = vmatprep.subr.mxu0 0.0
    %3341 = vmatpush1.msra.mxu0 %v3315
    %3342 = vmatprep.subr.mxu0 0.0
    %3343 = vmatpush1.msra.mxu0 %v3316
    %3344 = vmatprep.subr.mxu0 0.0
    %3345 = vmatpush1.msra.mxu0 0.0
    %3346 = vmatprep.subr.mxu0 0.0
    %3347 = vmatpush1.msra.mxu0 0.0
    %3348 = vmatprep.subr.mxu0 0.0
    %3349 = vmatpush1.msra.mxu0 0.0
    %3350 = vmatprep.subr.mxu0 0.0
    %3351 = vmatpush1.msra.mxu0 0.0
    %3352 = vmatprep.subr.mxu0 0.0
    %3353 = vmatpush1.msra.mxu0 0.0
    %3354 = vmatprep.subr.mxu0 0.0
    %3355 = vmatpush1.msra.mxu0 0.0
    %3356 = vmatprep.subr.mxu0 0.0
    %3357 = vmatpush1.msra.mxu0 0.0
    %3358 = vmatprep.subr.mxu0 0.0
    %3359 = vmatpush1.msra.mxu0 0.0
    %3360 = vmatprep.subr.mxu0 0.0
    %3361 = vmatpush1.msra.mxu0 0.0
    %3362 = vmatprep.subr.mxu0 0.0
    %3363 = vmatpush1.msra.mxu0 0.0
    %3364 = vmatprep.subr.mxu0 0.0
    %3365 = vmatpush1.msra.mxu0 0.0
    %3366 = vmatprep.subr.mxu0 0.0
    %3367 = vmatpush1.msra.mxu0 0.0
    %3368 = vmatprep.subr.mxu0 0.0
    %3369 = vmatpush1.msra.mxu0 0.0
    %3370 = vmatprep.subr.mxu0 0.0
    %3371 = vmatpush1.msra.mxu0 0.0
    %3372 = vmatprep.subr.mxu0 0.0
    %3373 = vmatpush1.msra.mxu0 0.0
    %3374 = vmatprep.subr.mxu0 0.0
    %3375 = vmatpush1.msra.mxu0 0.0
    %3376 = vmatprep.subr.mxu0 0.0
    %3377 = vmatpush1.msra.mxu0 0.0
    %3378 = vmatprep.subr.mxu0 0.0
    %3379 = vmatpush1.msra.mxu0 0.0
    %3380 = vmatprep.subr.mxu0 0.0
    %3381 = vmatpush1.msra.mxu0 0.0
    %3382 = vmatprep.subr.mxu0 0.0
    %3383 = vmatpush1.msra.mxu0 0.0
    %3384 = vmatprep.subr.mxu0 0.0
    %3385 = vmatpush1.msra.mxu0 0.0
    %3386 = vmatprep.subr.mxu0 0.0
    %3387 = vmatpush1.msra.mxu0 0.0
    %3388 = vmatprep.subr.mxu0 0.0
    %3389 = vmatpush1.msra.mxu0 0.0
    %3390 = vmatprep.subr.mxu0 0.0
    %3391 = vmatpush1.msra.mxu0 0.0
    %3392 = vmatprep.mubr.f32.mxu0 0.0
    %3393 = vmatmul.mubr.f32.gmra.mrb[0].mxu0 %v3326
    %v3394 = vpop.f32.mrb[0].mxu0
    %v3395 = vadd.f32 %v3322, %v3394
    %v3396 = vpop.f32.mrb[0].mxu0
    %3397 = vdwg.mxu0
    %vm3398 = vcmask 58368
    %3399 = vst.msk [vmem:[#allocation7] sm:$0x3] %vm3398, %v3395
    %v3400 = vlaneseq
    %v3401 = vand.u32 %v3400, 127
    %v3402 = vadd.s32 %v3401, 128
    %v3403 = vcvt.s32.f32 %v3401
    %v3404 = vcvt.s32.f32 %v3402
    %v3405 = vmul.f32 %v3403, 0.0625
    %v3406 = vmul.f32 %v3404, 0.0625
    %v3407 = vfloor.f32 %v3405
    %v3408 = vfloor.f32 %v3406
    %v3409 = vmul.f32 %v3407, 16.0
    %v3410 = vmul.f32 %v3408, 16.0
    %v3411 = vsub.f32 %v3403, %v3409
    %v3412 = vsub.f32 %v3404, %v3410
    %v3413 = vmul.f32 %v3411, 2.0
    %v3414 = vmul.f32 %v3412, 2.0
    %v3415 = vadd.f32 %v3413, 1.0
    %v3416 = vadd.f32 %v3414, 1.0
    %v3417 = vmul.f32 %v3415, 0.0625
    %v3418 = vmul.f32 %v3416, 0.0625
    %v3419 = vsub.f32 %v3417, 1.0
    %v3420 = vsub.f32 %v3418, 1.0
    %v3421 = vmul.f32 %v3407, 2.0
    %v3422 = vmul.f32 %v3408, 2.0
    %v3423 = vadd.f32 %v3421, 1.0
    %v3424 = vadd.f32 %v3422, 1.0
    %v3425 = vmul.f32 %v3423, 0.0625
    %v3426 = vmul.f32 %v3424, 0.0625
    %v3427 = vsub.f32 %v3425, 1.0
    %v3428 = vsub.f32 %v3426, 1.0
    %v3429 = vlaneseq
    %v3430 = vshrl.u32 %v3429, 7
    %v3431 = vadd.s32 %v3430, 8
    %3433 = vset.pattern.permute.xlu0 0
    %3434 = vperm.xlu0 %3433, %v3395
    %v3435 = vpop.permute.xlu0 %3434
    %v3437 = vmul.f32 %v3435, %v3419
    %v3438 = vmul.f32 %v3435, %v3420
    %3439 = vset.pattern.permute.xlu0 1
    %3440 = vperm.xlu0 %3439, %v3395
    %v3441 = vpop.permute.xlu0 %3440
    %v3443 = vmul.f32 %v3441, %v3427
    %v3444 = vmul.f32 %v3441, %v3428
    %v3445 = vadd.f32 %v3437, %v3443
    %v3446 = vadd.f32 %v3438, %v3444
    %3447 = vset.pattern.permute.xlu0 2
    %3448 = vperm.xlu0 %3447, %v3395
    %v3449 = vpop.permute.xlu0 %3448
    %v3451 = vadd.f32 %v3445, %v3449
    %v3452 = vadd.f32 %v3446, %v3449
    %3453 = vset.pattern.permute.xlu0 3
    %3454 = vperm.xlu0 %3453, %v3395
    %v3455 = vpop.permute.xlu0 %3454
    %v3457 = vmul.f32 %v3455, %v3419
    %v3458 = vmul.f32 %v3455, %v3420
    %3459 = vset.pattern.permute.xlu0 4
    %3460 = vperm.xlu0 %3459, %v3395
    %v3461 = vpop.permute.xlu0 %3460
    %v3463 = vmul.f32 %v3461, %v3427
    %v3464 = vmul.f32 %v3461, %v3428
    %v3465 = vadd.f32 %v3457, %v3463
    %v3466 = vadd.f32 %v3458, %v3464
    %3467 = vset.pattern.permute.xlu0 5
    %3468 = vperm.xlu0 %3467, %v3395
    %v3469 = vpop.permute.xlu0 %3468
    %v3471 = vadd.f32 %v3465, %v3469
    %v3472 = vadd.f32 %v3466, %v3469
    %v3473 = vadd.f32 %v3451, 1.0
    %v3474 = vadd.f32 %v3452, 1.0
    %v3475 = vmul.f32 %v3473, 8.0
    %v3476 = vmul.f32 %v3474, 8.0
    %v3477 = vsub.f32 %v3475, 0.5
    %v3478 = vsub.f32 %v3476, 0.5
    %v3479 = vadd.f32 %v3471, 1.0
    %v3480 = vadd.f32 %v3472, 1.0
    %v3481 = vmul.f32 %v3479, 8.0
    %v3482 = vmul.f32 %v3480, 8.0
    %v3483 = vsub.f32 %v3481, 0.5
    %v3484 = vsub.f32 %v3482, 0.5
    %v3485 = vfloor.f32 %v3477
    %v3486 = vfloor.f32 %v3478
    %v3487 = vfloor.f32 %v3483
    %v3488 = vfloor.f32 %v3484
    %v3489 = vsub.f32 %v3477, %v3485
    %v3490 = vsub.f32 %v3478, %v3486
    %v3491 = vsub.f32 %v3483, %v3487
    %v3492 = vsub.f32 %v3484, %v3488
    %v3493 = vmax.f32 %v3485, -2.0
    %v3494 = vmax.f32 %v3486, -2.0
    %v3495 = vmin.f32 %v3493, 17.0
    %v3496 = vmin.f32 %v3494, 17.0
    %v3497 = vcvt.f32.s32.to.zero.pseudo %v3495
    %v3498 = vcvt.f32.s32.to.zero.pseudo %v3496
    %v3499 = vmax.f32 %v3487, -2.0
    %v3500 = vmax.f32 %v3488, -2.0
    %v3501 = vmin.f32 %v3499, 17.0
    %v3502 = vmin.f32 %v3500, 17.0
    %v3503 = vcvt.f32.s32.to.zero.pseudo %v3501
    %v3504 = vcvt.f32.s32.to.zero.pseudo %v3502
    %v3505 = vld [vmem:[%s1] sm:$0xff]
    %v3506 = vld [vmem:[%s1 + $0x8] sm:$0xff]
    %v3507 = vsub.f32 1.0, %v3489
    %v3508 = vsub.f32 1.0, %v3490
    %v3509 = vsub.f32 1.0, %v3491
    %v3510 = vsub.f32 1.0, %v3492
    %v3511 = vmul.f32 %v3507, %v3509
    %v3512 = vmul.f32 %v3508, %v3510
    %vm3513 = vcmp.ge.s32.totalorder %v3497, 0
    %vm3514 = vcmp.ge.s32.totalorder %v3498, 0
    %vm3515 = vcmp.lt.s32.totalorder %v3497, 16
    %vm3516 = vcmp.lt.s32.totalorder %v3498, 16
    %vm3517 = vmand %vm3513, %vm3515
    %vm3518 = vmand %vm3514, %vm3516
    %vm3519 = vcmp.ge.s32.totalorder %v3503, 0
    %vm3520 = vcmp.ge.s32.totalorder %v3504, 0
    %vm3521 = vmand %vm3517, %vm3519
    %vm3522 = vmand %vm3518, %vm3520
    %vm3523 = vcmp.lt.s32.totalorder %v3503, 16
    %vm3524 = vcmp.lt.s32.totalorder %v3504, 16
    %vm3525 = vmand %vm3521, %vm3523
    %vm3526 = vmand %vm3522, %vm3524
    %v3527 = vsel %vm3525, %v3511, 0.0
    %v3528 = vsel %vm3526, %v3512, 0.0
    %v3529 = vlaneseq
    %v3530 = vshrl.u32 %v3529, 7
    %v3531 = vsub.s32 0, %v3530
    %v3532 = vrot.slane %v3503, %v3531
    %v3533 = vlaneseq
    %v3534 = vshrl.u32 %v3533, 7
    %v3535 = vsub.s32 0, %v3534
    %v3536 = vrot.slane %v3504, %v3535
    %vm3537 = vcmp.eq.s32.totalorder %v3430, %v3532
    %vm3538 = vcmp.eq.s32.totalorder %v3430, %v3536
    %vm3539 = vcmp.eq.s32.totalorder %v3431, %v3532
    %vm3540 = vcmp.eq.s32.totalorder %v3431, %v3536
    %v3541 = vsel %vm3537, 1, 0
    %v3542 = vsel %vm3538, 1, 0
    %v3543 = vsel %vm3539, 1, 0
    %v3544 = vsel %vm3540, 1, 0
    %v3545 = vcvt.s32.f32 %v3541
    %v3546 = vcvt.s32.f32 %v3542
    %v3547 = vcvt.s32.f32 %v3543
    %v3548 = vcvt.s32.f32 %v3544
    %vm3549 = vcmask 130048
    %v3551 = vsel %vm3549, %v3505, 0
    %v3554 = vsel %vm3549, %v3506, 0
    %3556 = vmatprep.subr.mxu0 %v3546
    %3557 = vmatpush1.msra.mxu0 %v3545
    %3558 = vmatprep.subr.mxu0 %v3548
    %3559 = vmatpush1.msra.mxu0 %v3547
    %3560 = vmatprep.subr.mxu0 0.0
    %3561 = vmatpush1.msra.mxu0 0.0
    %3562 = vmatprep.subr.mxu0 0.0
    %3563 = vmatpush1.msra.mxu0 0.0
    %3564 = vmatprep.subr.mxu0 0.0
    %3565 = vmatpush1.msra.mxu0 0.0
    %3566 = vmatprep.subr.mxu0 0.0
    %3567 = vmatpush1.msra.mxu0 0.0
    %3568 = vmatprep.subr.mxu0 0.0
    %3569 = vmatpush1.msra.mxu0 0.0
    %3570 = vmatprep.subr.mxu0 0.0
    %3571 = vmatpush1.msra.mxu0 0.0
    %3572 = vmatprep.subr.mxu0 0.0
    %3573 = vmatpush1.msra.mxu0 0.0
    %3574 = vmatprep.subr.mxu0 0.0
    %3575 = vmatpush1.msra.mxu0 0.0
    %3576 = vmatprep.subr.mxu0 0.0
    %3577 = vmatpush1.msra.mxu0 0.0
    %3578 = vmatprep.subr.mxu0 0.0
    %3579 = vmatpush1.msra.mxu0 0.0
    %3580 = vmatprep.subr.mxu0 0.0
    %3581 = vmatpush1.msra.mxu0 0.0
    %3582 = vmatprep.subr.mxu0 0.0
    %3583 = vmatpush1.msra.mxu0 0.0
    %3584 = vmatprep.subr.mxu0 0.0
    %3585 = vmatpush1.msra.mxu0 0.0
    %3586 = vmatprep.subr.mxu0 0.0
    %3587 = vmatpush1.msra.mxu0 0.0
    %3588 = vmatprep.subr.mxu0 0.0
    %3589 = vmatpush1.msra.mxu0 0.0
    %3590 = vmatprep.subr.mxu0 0.0
    %3591 = vmatpush1.msra.mxu0 0.0
    %3592 = vmatprep.subr.mxu0 0.0
    %3593 = vmatpush1.msra.mxu0 0.0
    %3594 = vmatprep.subr.mxu0 0.0
    %3595 = vmatpush1.msra.mxu0 0.0
    %3596 = vmatprep.subr.mxu0 0.0
    %3597 = vmatpush1.msra.mxu0 0.0
    %3598 = vmatprep.subr.mxu0 0.0
    %3599 = vmatpush1.msra.mxu0 0.0
    %3600 = vmatprep.subr.mxu0 0.0
    %3601 = vmatpush1.msra.mxu0 0.0
    %3602 = vmatprep.subr.mxu0 0.0
    %3603 = vmatpush1.msra.mxu0 0.0
    %3604 = vmatprep.subr.mxu0 0.0
    %3605 = vmatpush1.msra.mxu0 0.0
    %3606 = vmatprep.subr.mxu0 0.0
    %3607 = vmatpush1.msra.mxu0 0.0
    %3608 = vmatprep.subr.mxu0 0.0
    %3609 = vmatpush1.msra.mxu0 0.0
    %3610 = vmatprep.subr.mxu0 0.0
    %3611 = vmatpush1.msra.mxu0 0.0
    %3612 = vmatprep.subr.mxu0 0.0
    %3613 = vmatpush1.msra.mxu0 0.0
    %3614 = vmatprep.subr.mxu0 0.0
    %3615 = vmatpush1.msra.mxu0 0.0
    %3616 = vmatprep.subr.mxu0 0.0
    %3617 = vmatpush1.msra.mxu0 0.0
    %3618 = vmatprep.subr.mxu0 0.0
    %3619 = vmatpush1.msra.mxu0 0.0
    %3620 = vmatprep.mubr.f32.mxu0 0.0
    %3621 = vmatmul.mubr.f32.gmra.mrb[0].mxu0 %v3551
    %v3622 = vpop.f32.mrb[0].mxu0
    %v3623 = vadd.f32 0.0, %v3622
    %v3624 = vpop.f32.mrb[0].mxu0
    %v3625 = vadd.f32 0.0, %v3624
    %3626 = vmatprep.mubr.f32.mxu0 0.0
    %3627 = vmatmul.mubr.f32.gmra.mrb[0].mxu0 %v3554
    %v3628 = vpop.f32.mrb[0].mxu0
    %v3629 = vadd.f32 0.0, %v3628
    %v3630 = vpop.f32.mrb[0].mxu0
    %v3631 = vadd.f32 0.0, %v3630
    %3632 = vdwg.mxu0
    %v3633 = vlaneseq
    %v3634 = vshrl.u32 %v3633, 7
    %v3635 = vsub.s32 0, %v3634
    %v3636 = vrot.slane %v3497, %v3635
    %v3637 = vlaneseq
    %v3638 = vshrl.u32 %v3637, 7
    %v3639 = vsub.s32 0, %v3638
    %v3640 = vrot.slane %v3498, %v3639
    %vm3641 = vcmp.eq.s32.totalorder %v3430, %v3636
    %vm3642 = vcmp.eq.s32.totalorder %v3430, %v3640
    %vm3643 = vcmp.eq.s32.totalorder %v3431, %v3636
    %vm3644 = vcmp.eq.s32.totalorder %v3431, %v3640
    %v3645 = vlaneseq
    %v3646 = vshrl.u32 %v3645, 7
    %v3647 = vsub.s32 0, %v3646
    %v3648 = vrot.slane %v3527, %v3647
    %v3649 = vlaneseq
    %v3650 = vshrl.u32 %v3649, 7
    %v3651 = vsub.s32 0, %v3650
    %v3652 = vrot.slane %v3528, %v3651
    %v3653 = vsel %vm3641, %v3648, 0.0
    %v3654 = vsel %vm3642, %v3652, 0.0
    %v3655 = vsel %vm3643, %v3648, 0.0
    %v3656 = vsel %vm3644, %v3652, 0.0
    %v3657 = vmul.f32 %v3623, %v3653
    %v3658 = vmul.f32 %v3625, %v3654
    %v3659 = vmul.f32 %v3629, %v3655
    %v3660 = vmul.f32 %v3631, %v3656
    %v3661 = vadd.f32 %v3657, %v3659
    %v3662 = vrot.slane %v3661, 4
    %v3663 = vadd.f32 %v3661, %v3662
    %v3664 = vrot.slane %v3663, 2
    %v3665 = vadd.f32 %v3663, %v3664
    %v3666 = vrot.slane %v3665, 1
    %v3667 = vadd.f32 %v3665, %v3666
    %v3668 = vadd.f32 %v3658, %v3660
    %v3669 = vrot.slane %v3668, 4
    %v3670 = vadd.f32 %v3668, %v3669
    %v3671 = vrot.slane %v3670, 2
    %v3672 = vadd.f32 %v3670, %v3671
    %v3673 = vrot.slane %v3672, 1
    %v3674 = vadd.f32 %v3672, %v3673
    %v3675 = vadd.f32 %v3667, 0.0
    %v3676 = vadd.f32 %v3674, 0.0
    %v3677 = vadd.s32 %v3497, 1
    %v3678 = vadd.s32 %v3498, 1
    %v3679 = vmul.f32 %v3489, %v3509
    %v3680 = vmul.f32 %v3490, %v3510
    %vm3681 = vcmp.ge.s32.totalorder %v3677, 0
    %vm3682 = vcmp.ge.s32.totalorder %v3678, 0
    %vm3683 = vcmp.lt.s32.totalorder %v3677, 16
    %vm3684 = vcmp.lt.s32.totalorder %v3678, 16
    %vm3685 = vmand %vm3681, %vm3683
    %vm3686 = vmand %vm3682, %vm3684
    %vm3687 = vmand %vm3685, %vm3519
    %vm3688 = vmand %vm3686, %vm3520
    %vm3689 = vmand %vm3687, %vm3523
    %vm3690 = vmand %vm3688, %vm3524
    %v3691 = vsel %vm3689, %v3679, 0.0
    %v3692 = vsel %vm3690, %v3680, 0.0
    %v3693 = vlaneseq
    %v3694 = vshrl.u32 %v3693, 7
    %v3695 = vsub.s32 0, %v3694
    %v3696 = vrot.slane %v3677, %v3695
    %v3697 = vlaneseq
    %v3698 = vshrl.u32 %v3697, 7
    %v3699 = vsub.s32 0, %v3698
    %v3700 = vrot.slane %v3678, %v3699
    %vm3701 = vcmp.eq.s32.totalorder %v3430, %v3696
    %vm3702 = vcmp.eq.s32.totalorder %v3430, %v3700
    %vm3703 = vcmp.eq.s32.totalorder %v3431, %v3696
    %vm3704 = vcmp.eq.s32.totalorder %v3431, %v3700
    %v3705 = vlaneseq
    %v3706 = vshrl.u32 %v3705, 7
    %v3707 = vsub.s32 0, %v3706
    %v3708 = vrot.slane %v3691, %v3707
    %v3709 = vlaneseq
    %v3710 = vshrl.u32 %v3709, 7
    %v3711 = vsub.s32 0, %v3710
    %v3712 = vrot.slane %v3692, %v3711
    %v3713 = vsel %vm3701, %v3708, 0.0
    %v3714 = vsel %vm3702, %v3712, 0.0
    %v3715 = vsel %vm3703, %v3708, 0.0
    %v3716 = vsel %vm3704, %v3712, 0.0
    %v3717 = vmul.f32 %v3623, %v3713
    %v3718 = vmul.f32 %v3625, %v3714
    %v3719 = vmul.f32 %v3629, %v3715
    %v3720 = vmul.f32 %v3631, %v3716
    %v3721 = vadd.f32 %v3717, %v3719
    %v3722 = vrot.slane %v3721, 4
    %v3723 = vadd.f32 %v3721, %v3722
    %v3724 = vrot.slane %v3723, 2
    %v3725 = vadd.f32 %v3723, %v3724
    %v3726 = vrot.slane %v3725, 1
    %v3727 = vadd.f32 %v3725, %v3726
    %v3728 = vadd.f32 %v3718, %v3720
    %v3729 = vrot.slane %v3728, 4
    %v3730 = vadd.f32 %v3728, %v3729
    %v3731 = vrot.slane %v3730, 2
    %v3732 = vadd.f32 %v3730, %v3731
    %v3733 = vrot.slane %v3732, 1
    %v3734 = vadd.f32 %v3732, %v3733
    %v3735 = vadd.f32 %v3675, %v3727
    %v3736 = vadd.f32 %v3676, %v3734
    %v3737 = vadd.s32 %v3503, 1
    %v3738 = vadd.s32 %v3504, 1
    %v3739 = vmul.f32 %v3507, %v3491
    %v3740 = vmul.f32 %v3508, %v3492
    %vm3741 = vcmp.ge.s32.totalorder %v3737, 0
    %vm3742 = vcmp.ge.s32.totalorder %v3738, 0
    %vm3743 = vmand %vm3517, %vm3741
    %vm3744 = vmand %vm3518, %vm3742
    %vm3745 = vcmp.lt.s32.totalorder %v3737, 16
    %vm3746 = vcmp.lt.s32.totalorder %v3738, 16
    %vm3747 = vmand %vm3743, %vm3745
    %vm3748 = vmand %vm3744, %vm3746
    %v3749 = vsel %vm3747, %v3739, 0.0
    %v3750 = vsel %vm3748, %v3740, 0.0
    %v3751 = vlaneseq
    %v3752 = vshrl.u32 %v3751, 7
    %v3753 = vsub.s32 0, %v3752
    %v3754 = vrot.slane %v3737, %v3753
    %v3755 = vlaneseq
    %v3756 = vshrl.u32 %v3755, 7
    %v3757 = vsub.s32 0, %v3756
    %v3758 = vrot.slane %v3738, %v3757
    %vm3759 = vcmp.eq.s32.totalorder %v3430, %v3754
    %vm3760 = vcmp.eq.s32.totalorder %v3430, %v3758
    %vm3761 = vcmp.eq.s32.totalorder %v3431, %v3754
    %vm3762 = vcmp.eq.s32.totalorder %v3431, %v3758
    %v3763 = vsel %vm3759, 1, 0
    %v3764 = vsel %vm3760, 1, 0
    %v3765 = vsel %vm3761, 1, 0
    %v3766 = vsel %vm3762, 1, 0
    %v3767 = vcvt.s32.f32 %v3763
    %v3768 = vcvt.s32.f32 %v3764
    %v3769 = vcvt.s32.f32 %v3765
    %v3770 = vcvt.s32.f32 %v3766
    %3771 = vmatprep.subr.mxu0 %v3768
    %3772 = vmatpush1.msra.mxu0 %v3767
    %3773 = vmatprep.subr.mxu0 %v3770
    %3774 = vmatpush1.msra.mxu0 %v3769
    %3775 = vmatprep.subr.mxu0 0.0
    %3776 = vmatpush1.msra.mxu0 0.0
    %3777 = vmatprep.subr.mxu0 0.0
    %3778 = vmatpush1.msra.mxu0 0.0
    %3779 = vmatprep.subr.mxu0 0.0
    %3780 = vmatpush1.msra.mxu0 0.0
    %3781 = vmatprep.subr.mxu0 0.0
    %3782 = vmatpush1.msra.mxu0 0.0
    %3783 = vmatprep.subr.mxu0 0.0
    %3784 = vmatpush1.msra.mxu0 0.0
    %3785 = vmatprep.subr.mxu0 0.0
    %3786 = vmatpush1.msra.mxu0 0.0
    %3787 = vmatprep.subr.mxu0 0.0
    %3788 = vmatpush1.msra.mxu0 0.0
    %3789 = vmatprep.subr.mxu0 0.0
    %3790 = vmatpush1.msra.mxu0 0.0
    %3791 = vmatprep.subr.mxu0 0.0
    %3792 = vmatpush1.msra.mxu0 0.0
    %3793 = vmatprep.subr.mxu0 0.0
    %3794 = vmatpush1.msra.mxu0 0.0
    %3795 = vmatprep.subr.mxu0 0.0
    %3796 = vmatpush1.msra.mxu0 0.0
    %3797 = vmatprep.subr.mxu0 0.0
    %3798 = vmatpush1.msra.mxu0 0.0
    %3799 = vmatprep.subr.mxu0 0.0
    %3800 = vmatpush1.msra.mxu0 0.0
    %3801 = vmatprep.subr.mxu0 0.0
    %3802 = vmatpush1.msra.mxu0 0.0
    %3803 = vmatprep.subr.mxu0 0.0
    %3804 = vmatpush1.msra.mxu0 0.0
    %3805 = vmatprep.subr.mxu0 0.0
    %3806 = vmatpush1.msra.mxu0 0.0
    %3807 = vmatprep.subr.mxu0 0.0
    %3808 = vmatpush1.msra.mxu0 0.0
    %3809 = vmatprep.subr.mxu0 0.0
    %3810 = vmatpush1.msra.mxu0 0.0
    %3811 = vmatprep.subr.mxu0 0.0
    %3812 = vmatpush1.msra.mxu0 0.0
    %3813 = vmatprep.subr.mxu0 0.0
    %3814 = vmatpush1.msra.mxu0 0.0
    %3815 = vmatprep.subr.mxu0 0.0
    %3816 = vmatpush1.msra.mxu0 0.0
    %3817 = vmatprep.subr.mxu0 0.0
    %3818 = vmatpush1.msra.mxu0 0.0
    %3819 = vmatprep.subr.mxu0 0.0
    %3820 = vmatpush1.msra.mxu0 0.0
    %3821 = vmatprep.subr.mxu0 0.0
    %3822 = vmatpush1.msra.mxu0 0.0
    %3823 = vmatprep.subr.mxu0 0.0
    %3824 = vmatpush1.msra.mxu0 0.0
    %3825 = vmatprep.subr.mxu0 0.0
    %3826 = vmatpush1.msra.mxu0 0.0
    %3827 = vmatprep.subr.mxu0 0.0
    %3828 = vmatpush1.msra.mxu0 0.0
    %3829 = vmatprep.subr.mxu0 0.0
    %3830 = vmatpush1.msra.mxu0 0.0
    %3831 = vmatprep.subr.mxu0 0.0
    %3832 = vmatpush1.msra.mxu0 0.0
    %3833 = vmatprep.subr.mxu0 0.0
    %3834 = vmatpush1.msra.mxu0 0.0
    %3835 = vmatprep.mubr.f32.mxu0 0.0
    %3836 = vmatmul.mubr.f32.gmra.mrb[0].mxu0 %v3551
    %v3837 = vpop.f32.mrb[0].mxu0
    %v3838 = vadd.f32 0.0, %v3837
    %v3839 = vpop.f32.mrb[0].mxu0
    %v3840 = vadd.f32 0.0, %v3839
    %3841 = vmatprep.mubr.f32.mxu0 0.0
    %3842 = vmatmul.mubr.f32.gmra.mrb[0].mxu0 %v3554
    %v3843 = vpop.f32.mrb[0].mxu0
    %v3844 = vadd.f32 0.0, %v3843
    %v3845 = vpop.f32.mrb[0].mxu0
    %v3846 = vadd.f32 0.0, %v3845
    %3847 = vdwg.mxu0
    %v3848 = vlaneseq
    %v3849 = vshrl.u32 %v3848, 7
    %v3850 = vsub.s32 0, %v3849
    %v3851 = vrot.slane %v3749, %v3850
    %v3852 = vlaneseq
    %v3853 = vshrl.u32 %v3852, 7
    %v3854 = vsub.s32 0, %v3853
    %v3855 = vrot.slane %v3750, %v3854
    %v3856 = vsel %vm3641, %v3851, 0.0
    %v3857 = vsel %vm3642, %v3855, 0.0
    %v3858 = vsel %vm3643, %v3851, 0.0
    %v3859 = vsel %vm3644, %v3855, 0.0
    %v3860 = vmul.f32 %v3838, %v3856
    %v3861 = vmul.f32 %v3840, %v3857
    %v3862 = vmul.f32 %v3844, %v3858
    %v3863 = vmul.f32 %v3846, %v3859
    %v3864 = vadd.f32 %v3860, %v3862
    %v3865 = vrot.slane %v3864, 4
    %v3866 = vadd.f32 %v3864, %v3865
    %v3867 = vrot.slane %v3866, 2
    %v3868 = vadd.f32 %v3866, %v3867
    %v3869 = vrot.slane %v3868, 1
    %v3870 = vadd.f32 %v3868, %v3869
    %v3871 = vadd.f32 %v3861, %v3863
    %v3872 = vrot.slane %v3871, 4
    %v3873 = vadd.f32 %v3871, %v3872
    %v3874 = vrot.slane %v3873, 2
    %v3875 = vadd.f32 %v3873, %v3874
    %v3876 = vrot.slane %v3875, 1
    %v3877 = vadd.f32 %v3875, %v3876
    %v3878 = vadd.f32 %v3735, %v3870
    %v3879 = vadd.f32 %v3736, %v3877
    %v3880 = vmul.f32 %v3489, %v3491
    %v3881 = vmul.f32 %v3490, %v3492
    %vm3882 = vmand %vm3685, %vm3741
    %vm3883 = vmand %vm3686, %vm3742
    %vm3884 = vmand %vm3882, %vm3745
    %vm3885 = vmand %vm3883, %vm3746
    %v3886 = vsel %vm3884, %v3880, 0.0
    %v3887 = vsel %vm3885, %v3881, 0.0
    %v3888 = vlaneseq
    %v3889 = vshrl.u32 %v3888, 7
    %v3890 = vsub.s32 0, %v3889
    %v3891 = vrot.slane %v3886, %v3890
    %v3892 = vlaneseq
    %v3893 = vshrl.u32 %v3892, 7
    %v3894 = vsub.s32 0, %v3893
    %v3895 = vrot.slane %v3887, %v3894
    %v3896 = vsel %vm3701, %v3891, 0.0
    %v3897 = vsel %vm3702, %v3895, 0.0
    %v3898 = vsel %vm3703, %v3891, 0.0
    %v3899 = vsel %vm3704, %v3895, 0.0
    %v3900 = vmul.f32 %v3838, %v3896
    %v3901 = vmul.f32 %v3840, %v3897
    %v3902 = vmul.f32 %v3844, %v3898
    %v3903 = vmul.f32 %v3846, %v3899
    %v3904 = vadd.f32 %v3900, %v3902
    %v3905 = vrot.slane %v3904, 4
    %v3906 = vadd.f32 %v3904, %v3905
    %v3907 = vrot.slane %v3906, 2
    %v3908 = vadd.f32 %v3906, %v3907
    %v3909 = vrot.slane %v3908, 1
    %v3910 = vadd.f32 %v3908, %v3909
    %v3911 = vadd.f32 %v3901, %v3903
    %v3912 = vrot.slane %v3911, 4
    %v3913 = vadd.f32 %v3911, %v3912
    %v3914 = vrot.slane %v3913, 2
    %v3915 = vadd.f32 %v3913, %v3914
    %v3916 = vrot.slane %v3915, 1
    %v3917 = vadd.f32 %v3915, %v3916
    %v3918 = vadd.f32 %v3878, %v3910
    %v3919 = vadd.f32 %v3879, %v3917
    %v3922 = vcombine.low %v3918, %v3919
    %v3924 = vunpack.c.l.s4 1966171168
    %v3925 = vunpack.c.0.s8 %v3924
    %v3926 = vlaneseq
    %v3927 = vshrl.u32 %v3926, 7
    %v3928 = vsub.s32 %v3925, %v3927
    %v3929 = vrot.slane %v3922, %v3928
    %v3931 = vunpack.c.l.s4 1966171168
    %v3932 = vunpack.c.0.s8 %v3931
    %v3933 = vlaneseq
    %v3934 = vshrl.u32 %v3933, 7
    %v3935 = vsub.s32 %v3932, %v3934
    %v3936 = vrot.slane %v3929, %v3935
    %v3938 = vlaneseq
    %vm3939 = vcmp.ge.s32.totalorder %v3938, 0
    %vm3940 = vcmp.lt.s32.totalorder %v3938, 256
    %vm3941 = vmand %vm3939, %vm3940
    %3942 = vst.msk [vmem:[%s10] ss:$2 sm:$0x3] %vm3941, %v3936
    %v3943 = vld [vmem:[%s1 + $0x10] sm:$0xff]
    %v3944 = vld [vmem:[%s1 + $0x18] sm:$0xff]
    %v3945 = vlaneseq
    %v3946 = vshrl.u32 %v3945, 7
    %v3947 = vsub.s32 1, %v3946
    %v3948 = vrot.slane %v3503, %v3947
    %v3949 = vlaneseq
    %v3950 = vshrl.u32 %v3949, 7
    %v3951 = vsub.s32 1, %v3950
    %v3952 = vrot.slane %v3504, %v3951
    %vm3953 = vcmp.eq.s32.totalorder %v3430, %v3948
    %vm3954 = vcmp.eq.s32.totalorder %v3430, %v3952
    %vm3955 = vcmp.eq.s32.totalorder %v3431, %v3948
    %vm3956 = vcmp.eq.s32.totalorder %v3431, %v3952
    %v3957 = vsel %vm3953, 1, 0
    %v3958 = vsel %vm3954, 1, 0
    %v3959 = vsel %vm3955, 1, 0
    %v3960 = vsel %vm3956, 1, 0
    %v3961 = vcvt.s32.f32 %v3957
    %v3962 = vcvt.s32.f32 %v3958
    %v3963 = vcvt.s32.f32 %v3959
    %v3964 = vcvt.s32.f32 %v3960
    %v3966 = vsel %vm3549, %v3943, 0
    %v3969 = vsel %vm3549, %v3944, 0
    %3971 = vmatprep.subr.mxu0 %v3962
    %3972 = vmatpush1.msra.mxu0 %v3961
    %3973 = vmatprep.subr.mxu0 %v3964
    %3974 = vmatpush1.msra.mxu0 %v3963
    %3975 = vmatprep.subr.mxu0 0.0
    %3976 = vmatpush1.msra.mxu0 0.0
    %3977 = vmatprep.subr.mxu0 0.0
    %3978 = vmatpush1.msra.mxu0 0.0
    %3979 = vmatprep.subr.mxu0 0.0
    %3980 = vmatpush1.msra.mxu0 0.0
    %3981 = vmatprep.subr.mxu0 0.0
    %3982 = vmatpush1.msra.mxu0 0.0
    %3983 = vmatprep.subr.mxu0 0.0
    %3984 = vmatpush1.msra.mxu0 0.0
    %3985 = vmatprep.subr.mxu0 0.0
    %3986 = vmatpush1.msra.mxu0 0.0
    %3987 = vmatprep.subr.mxu0 0.0
    %3988 = vmatpush1.msra.mxu0 0.0
    %3989 = vmatprep.subr.mxu0 0.0
    %3990 = vmatpush1.msra.mxu0 0.0
    %3991 = vmatprep.subr.mxu0 0.0
    %3992 = vmatpush1.msra.mxu0 0.0
    %3993 = vmatprep.subr.mxu0 0.0
    %3994 = vmatpush1.msra.mxu0 0.0
    %3995 = vmatprep.subr.mxu0 0.0
    %3996 = vmatpush1.msra.mxu0 0.0
    %3997 = vmatprep.subr.mxu0 0.0
    %3998 = vmatpush1.msra.mxu0 0.0
    %3999 = vmatprep.subr.mxu0 0.0
    %4000 = vmatpush1.msra.mxu0 0.0
    %4001 = vmatprep.subr.mxu0 0.0
    %4002 = vmatpush1.msra.mxu0 0.0
    %4003 = vmatprep.subr.mxu0 0.0
    %4004 = vmatpush1.msra.mxu0 0.0
    %4005 = vmatprep.subr.mxu0 0.0
    %4006 = vmatpush1.msra.mxu0 0.0
    %4007 = vmatprep.subr.mxu0 0.0
    %4008 = vmatpush1.msra.mxu0 0.0
    %4009 = vmatprep.subr.mxu0 0.0
    %4010 = vmatpush1.msra.mxu0 0.0
    %4011 = vmatprep.subr.mxu0 0.0
    %4012 = vmatpush1.msra.mxu0 0.0
    %4013 = vmatprep.subr.mxu0 0.0
    %4014 = vmatpush1.msra.mxu0 0.0
    %4015 = vmatprep.subr.mxu0 0.0
    %4016 = vmatpush1.msra.mxu0 0.0
    %4017 = vmatprep.subr.mxu0 0.0
    %4018 = vmatpush1.msra.mxu0 0.0
    %4019 = vmatprep.subr.mxu0 0.0
    %4020 = vmatpush1.msra.mxu0 0.0
    %4021 = vmatprep.subr.mxu0 0.0
    %4022 = vmatpush1.msra.mxu0 0.0
    %4023 = vmatprep.subr.mxu0 0.0
    %4024 = vmatpush1.msra.mxu0 0.0
    %4025 = vmatprep.subr.mxu0 0.0
    %4026 = vmatpush1.msra.mxu0 0.0
    %4027 = vmatprep.subr.mxu0 0.0
    %4028 = vmatpush1.msra.mxu0 0.0
    %4029 = vmatprep.subr.mxu0 0.0
    %4030 = vmatpush1.msra.mxu0 0.0
    %4031 = vmatprep.subr.mxu0 0.0
    %4032 = vmatpush1.msra.mxu0 0.0
    %4033 = vmatprep.subr.mxu0 0.0
    %4034 = vmatpush1.msra.mxu0 0.0
    %4035 = vmatprep.mubr.f32.mxu0 0.0
    %4036 = vmatmul.mubr.f32.gmra.mrb[0].mxu0 %v3966
    %v4037 = vpop.f32.mrb[0].mxu0
    %v4038 = vadd.f32 0.0, %v4037
    %v4039 = vpop.f32.mrb[0].mxu0
    %v4040 = vadd.f32 0.0, %v4039
    %4041 = vmatprep.mubr.f32.mxu0 0.0
    %4042 = vmatmul.mubr.f32.gmra.mrb[0].mxu0 %v3969
    %v4043 = vpop.f32.mrb[0].mxu0
    %v4044 = vadd.f32 0.0, %v4043
    %v4045 = vpop.f32.mrb[0].mxu0
    %v4046 = vadd.f32 0.0, %v4045
    %4047 = vdwg.mxu0
    %v4048 = vlaneseq
    %v4049 = vshrl.u32 %v4048, 7
    %v4050 = vsub.s32 1, %v4049
    %v4051 = vrot.slane %v3497, %v4050
    %v4052 = vlaneseq
    %v4053 = vshrl.u32 %v4052, 7
    %v4054 = vsub.s32 1, %v4053
    %v4055 = vrot.slane %v3498, %v4054
    %vm4056 = vcmp.eq.s32.totalorder %v3430, %v4051
    %vm4057 = vcmp.eq.s32.totalorder %v3430, %v4055
    %vm4058 = vcmp.eq.s32.totalorder %v3431, %v4051
    %vm4059 = vcmp.eq.s32.totalorder %v3431, %v4055
    %v4060 = vlaneseq
    %v4061 = vshrl.u32 %v4060, 7
    %v4062 = vsub.s32 1, %v4061
    %v4063 = vrot.slane %v3527, %v4062
    %v4064 = vlaneseq
    %v4065 = vshrl.u32 %v4064, 7
    %v4066 = vsub.s32 1, %v4065
    %v4067 = vrot.slane %v3528, %v4066
    %v4068 = vsel %vm4056, %v4063, 0.0
    %v4069 = vsel %vm4057, %v4067, 0.0
    %v4070 = vsel %vm4058, %v4063, 0.0
    %v4071 = vsel %vm4059, %v4067, 0.0
    %v4072 = vmul.f32 %v4038, %v4068
    %v4073 = vmul.f32 %v4040, %v4069
    %v4074 = vmul.f32 %v4044, %v4070
    %v4075 = vmul.f32 %v4046, %v4071
    %v4076 = vadd.f32 %v4072, %v4074
    %v4077 = vrot.slane %v4076, 4
    %v4078 = vadd.f32 %v4076, %v4077
    %v4079 = vrot.slane %v4078, 2
    %v4080 = vadd.f32 %v4078, %v4079
    %v4081 = vrot.slane %v4080, 1
    %v4082 = vadd.f32 %v4080, %v4081
    %v4083 = vadd.f32 %v4073, %v4075
    %v4084 = vrot.slane %v4083, 4
    %v4085 = vadd.f32 %v4083, %v4084
    %v4086 = vrot.slane %v4085, 2
    %v4087 = vadd.f32 %v4085, %v4086
    %v4088 = vrot.slane %v4087, 1
    %v4089 = vadd.f32 %v4087, %v4088
    %v4090 = vadd.f32 %v4082, 0.0
    %v4091 = vadd.f32 %v4089, 0.0
    %v4092 = vlaneseq
    %v4093 = vshrl.u32 %v4092, 7
    %v4094 = vsub.s32 1, %v4093
    %v4095 = vrot.slane %v3677, %v4094
    %v4096 = vlaneseq
    %v4097 = vshrl.u32 %v4096, 7
    %v4098 = vsub.s32 1, %v4097
    %v4099 = vrot.slane %v3678, %v4098
    %vm4100 = vcmp.eq.s32.totalorder %v3430, %v4095
    %vm4101 = vcmp.eq.s32.totalorder %v3430, %v4099
    %vm4102 = vcmp.eq.s32.totalorder %v3431, %v4095
    %vm4103 = vcmp.eq.s32.totalorder %v3431, %v4099
    %v4104 = vlaneseq
    %v4105 = vshrl.u32 %v4104, 7
    %v4106 = vsub.s32 1, %v4105
    %v4107 = vrot.slane %v3691, %v4106
    %v4108 = vlaneseq
    %v4109 = vshrl.u32 %v4108, 7
    %v4110 = vsub.s32 1, %v4109
    %v4111 = vrot.slane %v3692, %v4110
    %v4112 = vsel %vm4100, %v4107, 0.0
    %v4113 = vsel %vm4101, %v4111, 0.0
    %v4114 = vsel %vm4102, %v4107, 0.0
    %v4115 = vsel %vm4103, %v4111, 0.0
    %v4116 = vmul.f32 %v4038, %v4112
    %v4117 = vmul.f32 %v4040, %v4113
    %v4118 = vmul.f32 %v4044, %v4114
    %v4119 = vmul.f32 %v4046, %v4115
    %v4120 = vadd.f32 %v4116, %v4118
    %v4121 = vrot.slane %v4120, 4
    %v4122 = vadd.f32 %v4120, %v4121
    %v4123 = vrot.slane %v4122, 2
    %v4124 = vadd.f32 %v4122, %v4123
    %v4125 = vrot.slane %v4124, 1
    %v4126 = vadd.f32 %v4124, %v4125
    %v4127 = vadd.f32 %v4117, %v4119
    %v4128 = vrot.slane %v4127, 4
    %v4129 = vadd.f32 %v4127, %v4128
    %v4130 = vrot.slane %v4129, 2
    %v4131 = vadd.f32 %v4129, %v4130
    %v4132 = vrot.slane %v4131, 1
    %v4133 = vadd.f32 %v4131, %v4132
    %v4134 = vadd.f32 %v4090, %v4126
    %v4135 = vadd.f32 %v4091, %v4133
    %v4136 = vlaneseq
    %v4137 = vshrl.u32 %v4136, 7
    %v4138 = vsub.s32 1, %v4137
    %v4139 = vrot.slane %v3737, %v4138
    %v4140 = vlaneseq
    %v4141 = vshrl.u32 %v4140, 7
    %v4142 = vsub.s32 1, %v4141
    %v4143 = vrot.slane %v3738, %v4142
    %vm4144 = vcmp.eq.s32.totalorder %v3430, %v4139
    %vm4145 = vcmp.eq.s32.totalorder %v3430, %v4143
    %vm4146 = vcmp.eq.s32.totalorder %v3431, %v4139
    %vm4147 = vcmp.eq.s32.totalorder %v3431, %v4143
    %v4148 = vsel %vm4144, 1, 0
    %v4149 = vsel %vm4145, 1, 0
    %v4150 = vsel %vm4146, 1, 0
    %v4151 = vsel %vm4147, 1, 0
    %v4152 = vcvt.s32.f32 %v4148
    %v4153 = vcvt.s32.f32 %v4149
    %v4154 = vcvt.s32.f32 %v4150
    %v4155 = vcvt.s32.f32 %v4151
    %4156 = vmatprep.subr.mxu0 %v4153
    %4157 = vmatpush1.msra.mxu0 %v4152
    %4158 = vmatprep.subr.mxu0 %v4155
    %4159 = vmatpush1.msra.mxu0 %v4154
    %4160 = vmatprep.subr.mxu0 0.0
    %4161 = vmatpush1.msra.mxu0 0.0
    %4162 = vmatprep.subr.mxu0 0.0
    %4163 = vmatpush1.msra.mxu0 0.0
    %4164 = vmatprep.subr.mxu0 0.0
    %4165 = vmatpush1.msra.mxu0 0.0
    %4166 = vmatprep.subr.mxu0 0.0
    %4167 = vmatpush1.msra.mxu0 0.0
    %4168 = vmatprep.subr.mxu0 0.0
    %4169 = vmatpush1.msra.mxu0 0.0
    %4170 = vmatprep.subr.mxu0 0.0
    %4171 = vmatpush1.msra.mxu0 0.0
    %4172 = vmatprep.subr.mxu0 0.0
    %4173 = vmatpush1.msra.mxu0 0.0
    %4174 = vmatprep.subr.mxu0 0.0
    %4175 = vmatpush1.msra.mxu0 0.0
    %4176 = vmatprep.subr.mxu0 0.0
    %4177 = vmatpush1.msra.mxu0 0.0
    %4178 = vmatprep.subr.mxu0 0.0
    %4179 = vmatpush1.msra.mxu0 0.0
    %4180 = vmatprep.subr.mxu0 0.0
    %4181 = vmatpush1.msra.mxu0 0.0
    %4182 = vmatprep.subr.mxu0 0.0
    %4183 = vmatpush1.msra.mxu0 0.0
    %4184 = vmatprep.subr.mxu0 0.0
    %4185 = vmatpush1.msra.mxu0 0.0
    %4186 = vmatprep.subr.mxu0 0.0
    %4187 = vmatpush1.msra.mxu0 0.0
    %4188 = vmatprep.subr.mxu0 0.0
    %4189 = vmatpush1.msra.mxu0 0.0
    %4190 = vmatprep.subr.mxu0 0.0
    %4191 = vmatpush1.msra.mxu0 0.0
    %4192 = vmatprep.subr.mxu0 0.0
    %4193 = vmatpush1.msra.mxu0 0.0
    %4194 = vmatprep.subr.mxu0 0.0
    %4195 = vmatpush1.msra.mxu0 0.0
    %4196 = vmatprep.subr.mxu0 0.0
    %4197 = vmatpush1.msra.mxu0 0.0
    %4198 = vmatprep.subr.mxu0 0.0
    %4199 = vmatpush1.msra.mxu0 0.0
    %4200 = vmatprep.subr.mxu0 0.0
    %4201 = vmatpush1.msra.mxu0 0.0
    %4202 = vmatprep.subr.mxu0 0.0
    %4203 = vmatpush1.msra.mxu0 0.0
    %4204 = vmatprep.subr.mxu0 0.0
    %4205 = vmatpush1.msra.mxu0 0.0
    %4206 = vmatprep.subr.mxu0 0.0
    %4207 = vmatpush1.msra.mxu0 0.0
    %4208 = vmatprep.subr.mxu0 0.0
    %4209 = vmatpush1.msra.mxu0 0.0
    %4210 = vmatprep.subr.mxu0 0.0
    %4211 = vmatpush1.msra.mxu0 0.0
    %4212 = vmatprep.subr.mxu0 0.0
    %4213 = vmatpush1.msra.mxu0 0.0
    %4214 = vmatprep.subr.mxu0 0.0
    %4215 = vmatpush1.msra.mxu0 0.0
    %4216 = vmatprep.subr.mxu0 0.0
    %4217 = vmatpush1.msra.mxu0 0.0
    %4218 = vmatprep.subr.mxu0 0.0
    %4219 = vmatpush1.msra.mxu0 0.0
    %4220 = vmatprep.mubr.f32.mxu0 0.0
    %4221 = vmatmul.mubr.f32.gmra.mrb[0].mxu0 %v3966
    %v4222 = vpop.f32.mrb[0].mxu0
    %v4223 = vadd.f32 0.0, %v4222
    %v4224 = vpop.f32.mrb[0].mxu0
    %v4225 = vadd.f32 0.0, %v4224
    %4226 = vmatprep.mubr.f32.mxu0 0.0
    %4227 = vmatmul.mubr.f32.gmra.mrb[0].mxu0 %v3969
    %v4228 = vpop.f32.mrb[0].mxu0
    %v4229 = vadd.f32 0.0, %v4228
    %v4230 = vpop.f32.mrb[0].mxu0
    %v4231 = vadd.f32 0.0, %v4230
    %4232 = vdwg.mxu0
    %v4233 = vlaneseq
    %v4234 = vshrl.u32 %v4233, 7
    %v4235 = vsub.s32 1, %v4234
    %v4236 = vrot.slane %v3749, %v4235
    %v4237 = vlaneseq
    %v4238 = vshrl.u32 %v4237, 7
    %v4239 = vsub.s32 1, %v4238
    %v4240 = vrot.slane %v3750, %v4239
    %v4241 = vsel %vm4056, %v4236, 0.0
    %v4242 = vsel %vm4057, %v4240, 0.0
    %v4243 = vsel %vm4058, %v4236, 0.0
    %v4244 = vsel %vm4059, %v4240, 0.0
    %v4245 = vmul.f32 %v4223, %v4241
    %v4246 = vmul.f32 %v4225, %v4242
    %v4247 = vmul.f32 %v4229, %v4243
    %v4248 = vmul.f32 %v4231, %v4244
    %v4249 = vadd.f32 %v4245, %v4247
    %v4250 = vrot.slane %v4249, 4
    %v4251 = vadd.f32 %v4249, %v4250
    %v4252 = vrot.slane %v4251, 2
    %v4253 = vadd.f32 %v4251, %v4252
    %v4254 = vrot.slane %v4253, 1
    %v4255 = vadd.f32 %v4253, %v4254
    %v4256 = vadd.f32 %v4246, %v4248
    %v4257 = vrot.slane %v4256, 4
    %v4258 = vadd.f32 %v4256, %v4257
    %v4259 = vrot.slane %v4258, 2
    %v4260 = vadd.f32 %v4258, %v4259
    %v4261 = vrot.slane %v4260, 1
    %v4262 = vadd.f32 %v4260, %v4261
    %v4263 = vadd.f32 %v4134, %v4255
    %v4264 = vadd.f32 %v4135, %v4262
    %v4265 = vlaneseq
    %v4266 = vshrl.u32 %v4265, 7
    %v4267 = vsub.s32 1, %v4266
    %v4268 = vrot.slane %v3886, %v4267
    %v4269 = vlaneseq
    %v4270 = vshrl.u32 %v4269, 7
    %v4271 = vsub.s32 1, %v4270
    %v4272 = vrot.slane %v3887, %v4271
    %v4273 = vsel %vm4100, %v4268, 0.0
    %v4274 = vsel %vm4101, %v4272, 0.0
    %v4275 = vsel %vm4102, %v4268, 0.0
    %v4276 = vsel %vm4103, %v4272, 0.0
    %v4277 = vmul.f32 %v4223, %v4273
    %v4278 = vmul.f32 %v4225, %v4274
    %v4279 = vmul.f32 %v4229, %v4275
    %v4280 = vmul.f32 %v4231, %v4276
    %v4281 = vadd.f32 %v4277, %v4279
    %v4282 = vrot.slane %v4281, 4
    %v4283 = vadd.f32 %v4281, %v4282
    %v4284 = vrot.slane %v4283, 2
    %v4285 = vadd.f32 %v4283, %v4284
    %v4286 = vrot.slane %v4285, 1
    %v4287 = vadd.f32 %v4285, %v4286
    %v4288 = vadd.f32 %v4278, %v4280
    %v4289 = vrot.slane %v4288, 4
    %v4290 = vadd.f32 %v4288, %v4289
    %v4291 = vrot.slane %v4290, 2
    %v4292 = vadd.f32 %v4290, %v4291
    %v4293 = vrot.slane %v4292, 1
    %v4294 = vadd.f32 %v4292, %v4293
    %v4295 = vadd.f32 %v4263, %v4287
    %v4296 = vadd.f32 %v4264, %v4294
    %v4299 = vcombine.low %v4295, %v4296
    %v4301 = vunpack.c.l.s4 1966171168
    %v4302 = vunpack.c.0.s8 %v4301
    %v4303 = vlaneseq
    %v4304 = vshrl.u32 %v4303, 7
    %v4305 = vsub.s32 %v4302, %v4304
    %v4306 = vrot.slane %v4299, %v4305
    %v4308 = vunpack.c.l.s4 1966171168
    %v4309 = vunpack.c.0.s8 %v4308
    %v4310 = vlaneseq
    %v4311 = vshrl.u32 %v4310, 7
    %v4312 = vsub.s32 %v4309, %v4311
    %v4313 = vrot.slane %v4306, %v4312
    %s4315 = scalar_lea.vmem %s10, 1
    %4316 = vst.msk [vmem:[%s4315] ss:$2 sm:$0x3] %vm3941, %v4313
    // Predicated region
    $region50: #{stn_forward.1} parent=1 // pred_check
      _
    $region51: #{stn_forward.1} parent=1 // pred_check_branch
      %4318 = sbr.rel (0) target = $region53
    $region52: #{stn_forward.1} parent=1 // pred_region
      _
    $region53: #{stn_forward.1} parent=1 // pred_fallthru
      _
    // Predicated region
    $region54: #{stn_forward.1} parent=1 // pred_check
      _
    $region55: #{stn_forward.1} parent=1 // pred_check_branch
      %4320 = sbr.rel (0) target = $region57
    $region56: #{stn_forward.1} parent=1 // pred_region
      %s4322 = ssub.s32 32, 32
      %4323 = vsyncadd [#allocation4], %s4322
      %s4325 = sshll.u32 [#allocation7], 4
      %s4326 = int_to_ptr.vmem [resolvable:$true] %s4325
      %4328 = dma.vmem_to_hbm [thread:$0]  %s4326, 32, %s11, [#allocation4]
    $region57: #{stn_forward.1} parent=1 // pred_fallthru
      _
    // Predicated region
    $region58: #{stn_forward.1} parent=1 // pred_check
      _
    $region59: #{stn_forward.1} parent=1 // pred_check_branch
      %4330 = sbr.rel (0) target = $region61
    $region60: #{stn_forward.1} parent=1 // pred_region
      _
    $region61: #{stn_forward.1} parent=1 // pred_fallthru
      _
    // Predicated region
    $region62: #{stn_forward.1} parent=1 // pred_check
      _
    $region63: #{stn_forward.1} parent=1 // pred_check_branch
      %4332 = sbr.rel (0) target = $region65
    $region64: #{stn_forward.1} parent=1 // pred_region
      %4333 = dma.done [#allocation4], 32
    $region65: #{stn_forward.1} parent=1 // pred_fallthru
      _
    %4334 = vsyncpa [#allocation3], 1
    %4335 = vsyncpa [#allocation6], 1
    %4336 = vsyncpa [#allocation4], 1

</llo_original>
